<compile_context>
chip_gen: v6e
topology: v6e:2x2x1
jax: 0.10.0
libtpu: 0.0.40
codegen_flags: <defaults>
</compile_context>

<pallas_src>
import functools

import jax
import jax.numpy as jnp
from jax.experimental import pallas as pl
from jax.experimental.pallas import tpu as pltpu

EPS = 1e-5  # PyTorch BatchNorm2d default eps


def _round_up(x, m):
    return ((x + m - 1) // m) * m


def double_conv_kernel(p1_ref, w1_ref, g1_ref, be1_ref, w2_ref, g2_ref, be2_ref,
                       o_ref, p2_ref, *, n, h, w, cmid_p, mm_dtype):
    """DoubleConv. p1_ref is the wrapper-built lane-dense (M, K1_p) im2col of conv1."""
    M = n * h * w
    inv_m = 1.0 / M
    cout_p = w2_ref.shape[1]

    def bn_relu(acc, g_ref, be_ref):
        # Two-pass training-mode batch statistics (biased variance), all f32.
        mean = jnp.sum(acc, axis=0, keepdims=True) * inv_m
        xc = acc - mean
        var = jnp.sum(xc * xc, axis=0, keepdims=True) * inv_m
        scale = jax.lax.rsqrt(var + EPS) * g_ref[...]
        return jnp.maximum(xc * scale + be_ref[...], 0.0)

    # ---- conv1 -> BN -> ReLU: one fused MXU matmul (K = 9*Cin, lane-padded) ----
    acc1 = jnp.dot(p1_ref[...], w1_ref[...], preferred_element_type=jnp.float32)
    y1 = bn_relu(acc1, g1_ref, be1_ref)                        # (M, cmid_p) f32

    # ---- stage conv2 padded input with contiguous full-width stores only:
    #      top/bottom halo rows zeroed; left/right zero columns folded into the
    #      single interior row store (no 1-wide strided column stores).
    zrow = jnp.zeros((n, 1, w + 2, cmid_p), jnp.float32)
    zcol = jnp.zeros((n, h, 1, cmid_p), jnp.float32)
    p2_ref[:, 0:1, :, :] = zrow
    p2_ref[:, h + 1:h + 2, :, :] = zrow
    p2_ref[:, 1:h + 1, :, :] = jnp.concatenate(
        [zcol, y1.reshape(n, h, w, cmid_p), zcol], axis=2)

    # ---- conv2: accumulate three per-ky slabs (K = 3*cmid_p each) instead of
    #      materializing the full (M, 9*cmid_p) patch matrix.
    k_slab = 3 * cmid_p
    acc2 = jnp.zeros((M, cout_p), jnp.float32)
    for ky in range(3):
        slab = p2_ref[:, ky:ky + h, :, :]                      # (n, h, w+2, cmid_p)
        pk = jnp.concatenate([slab[:, :, kx:kx + w, :] for kx in range(3)],
                             axis=-1).reshape(M, k_slab).astype(mm_dtype)
        acc2 = acc2 + jnp.dot(pk, w2_ref[ky * k_slab:(ky + 1) * k_slab, :],
                              preferred_element_type=jnp.float32)

    # ---- conv2 BN -> ReLU -> lane-dense (channel-padded) output store ----
    y2 = bn_relu(acc2, g2_ref, be2_ref)                        # (M, cout_p)
    o_ref[...] = y2.reshape(n, h, w, cout_p)


def _interp_matrix(out_size, in_size):
    """Row-interpolation matrix for bilinear upsampling with align_corners=True."""
    if in_size == 1:
        return jnp.ones((out_size, 1), jnp.float32)
    coords = jnp.arange(out_size, dtype=jnp.float32) * ((in_size - 1) / (out_size - 1))
    lo = jnp.clip(jnp.floor(coords).astype(jnp.int32), 0, in_size - 2)
    frac = coords - lo.astype(jnp.float32)
    rows = jnp.arange(out_size)
    m = jnp.zeros((out_size, in_size), jnp.float32)
    m = m.at[rows, lo].add(1.0 - frac)
    m = m.at[rows, lo + 1].add(frac)
    return m


def _bilinear_up_pad_concat_nhwc(x1_nhwc, x2_nhwc):
    """Up.forward's upsample + F.pad + cat([x2, x1]) done channels-last."""
    _, H1, W1, _ = x1_nhwc.shape
    H2, W2 = x2_nhwc.shape[1], x2_nhwc.shape[2]
    Uh = _interp_matrix(2 * H1, H1)
    Uw = _interp_matrix(2 * W1, W1)
    xu = jnp.einsum('oh,nhwc->nowc', Uh, x1_nhwc)
    xu = jnp.einsum('pw,nowc->nopc', Uw, xu)
    dY = H2 - xu.shape[1]
    dX = W2 - xu.shape[2]
    xu = jnp.pad(xu, ((0, 0), (dY // 2, dY - dY // 2),
                      (dX // 2, dX - dX // 2), (0, 0)))
    return jnp.concatenate([x2_nhwc, xu], axis=-1)


def _im2col_3x3(x_nhwc):
    """3x3 'SAME' im2col, NHWC -> (N*H*W, 9*C). Column index = (ky*3+kx)*C + c."""
    N, H, W, C = x_nhwc.shape
    xp = jnp.pad(x_nhwc, ((0, 0), (1, 1), (1, 1), (0, 0)))
    cols = [xp[:, ky:ky + H, kx:kx + W, :] for ky in range(3) for kx in range(3)]
    return jnp.concatenate(cols, axis=-1).reshape(N * H * W, 9 * C)


def prepare_up_params(params, mm_dtype=jnp.bfloat16):
    """One-time weight prep: fused im2col weight matrices, lane padding, MXU dtype."""
    w1, b1, g1, be1, w2, b2, g2, be2 = params
    del b1, b2  # conv biases cancel exactly under training-mode BatchNorm
    cmid, cin = w1.shape[0], w1.shape[1]
    cout = w2.shape[0]
    cmid_p = _round_up(cmid, 128)
    # v6e/v7x MXUs are 2x256^2: once the real Cout reaches 128, round the padded
    # width to 256; keep toy-sized Cout at 128 to avoid wasted epilogue traffic.
    cout_p = _round_up(cout, 256) if cout >= 128 else _round_up(cout, 128)
    k1 = 9 * cin
    k1_p = _round_up(k1, 128)

    def prep_w(wt):  # OIHW -> (kh*kw*I, O), row index = (ky*3+kx)*I + i
        o, i = wt.shape[0], wt.shape[1]
        return jnp.transpose(wt, (2, 3, 1, 0)).reshape(9 * i, o)

    w1_mat = jnp.pad(prep_w(w1),
                     ((0, k1_p - k1), (0, cmid_p - cmid))).astype(mm_dtype)
    w2_ip = jnp.pad(w2, ((0, 0), (0, cmid_p - cmid), (0, 0), (0, 0)))  # pad I axis
    w2_mat = jnp.pad(prep_w(w2_ip), ((0, 0), (0, cout_p - cout))).astype(mm_dtype)

    def pad_vec(v, width):
        return jnp.pad(v.reshape(1, -1).astype(jnp.float32),
                       ((0, 0), (0, width - v.shape[0])))

    return dict(w1_mat=w1_mat, g1=pad_vec(g1, cmid_p), be1=pad_vec(be1, cmid_p),
                w2_mat=w2_mat, g2=pad_vec(g2, cout_p), be2=pad_vec(be2, cout_p),
                cmid_p=cmid_p, cout=cout, cout_p=cout_p, k1_p=k1_p,
                mm_dtype=mm_dtype)


def up_forward(x1, x2, prepped):
    """x1: (N,C1,H1,W1) deeper feature map, x2: (N,C2,H2,W2) skip connection."""
    mm_dtype = prepped["mm_dtype"]
    cmid_p, cout, cout_p = prepped["cmid_p"], prepped["cout"], prepped["cout_p"]
    N = x1.shape[0]
    H2, W2 = x2.shape[2], x2.shape[3]

    # Channels-last glue: one transpose per input, then upsample/pad/concat and
    # conv1's im2col all fuse in XLA before the kernel.
    x1_nhwc = jnp.transpose(x1, (0, 2, 3, 1))
    x2_nhwc = jnp.transpose(x2, (0, 2, 3, 1))
    x = _bilinear_up_pad_concat_nhwc(x1_nhwc, x2_nhwc)       # (N, H2, W2, Cin)

    p1 = _im2col_3x3(x)                                      # (M, 9*Cin)
    p1 = jnp.pad(p1, ((0, 0), (0, prepped["k1_p"] - p1.shape[1]))).astype(mm_dtype)

    kernel = functools.partial(double_conv_kernel, n=N, h=H2, w=W2,
                               cmid_p=cmid_p, mm_dtype=mm_dtype)
    out_nhwc = pl.pallas_call(
        kernel,
        out_shape=jax.ShapeDtypeStruct((N, H2, W2, cout_p), jnp.float32),
        in_specs=[pl.BlockSpec(memory_space=pltpu.MemorySpace.VMEM)] * 7,
        out_specs=pl.BlockSpec(memory_space=pltpu.MemorySpace.VMEM),
        scratch_shapes=[
            pltpu.VMEM((N, H2 + 2, W2 + 2, cmid_p), jnp.float32),  # conv2 padded in
        ],
        # Working set here is ~a few MiB; keep a modest explicit cap. Re-derive
        # per generation (v7x: 64 MiB physical) once this is gridded for big H,W.
        compiler_params=pltpu.CompilerParams(vmem_limit_bytes=32 * 1024 * 1024),
    )(p1, prepped["w1_mat"], prepped["g1"], prepped["be1"],
      prepped["w2_mat"], prepped["g2"], prepped["be2"])

    out = out_nhwc[..., :cout]
    return jnp.transpose(out, (0, 3, 1, 2))  # back to NCHW


# ------------------------- pure-JAX reference (NCHW) -------------------------

def _bilinear_up_pad_concat_nchw(x1, x2):
    _, _, H1, W1 = x1.shape
    H2, W2 = x2.shape[2], x2.shape[3]
    Uh = _interp_matrix(2 * H1, H1)
    Uw = _interp_matrix(2 * W1, W1)
    xu = jnp.einsum('oh,nchw->ncow', Uh, x1)
    xu = jnp.einsum('pw,ncow->ncop', Uw, xu)
    dY = H2 - xu.shape[2]
    dX = W2 - xu.shape[3]
    xu = jnp.pad(xu, ((0, 0), (0, 0),
                      (dY // 2, dY - dY // 2), (dX // 2, dX - dX // 2)))
    return jnp.concatenate([x2, xu], axis=1)


def ref_up_forward(x1, x2, params):
    """Pure-JAX reference matching the PyTorch Up module in train mode."""
    w1, b1, g1, be1, w2, b2, g2, be2 = params
    x = _bilinear_up_pad_concat_nchw(x1, x2)

    def conv_bn_relu(inp, w, b, g, be):
        y = jax.lax.conv_general_dilated(inp, w, (1, 1), 'SAME',
                                         dimension_numbers=('NCHW', 'OIHW', 'NCHW'))
        y = y + b[None, :, None, None]
        mean = jnp.mean(y, axis=(0, 2, 3), keepdims=True)
        var = jnp.mean((y - mean) ** 2, axis=(0, 2, 3), keepdims=True)
        y = (y - mean) * jax.lax.rsqrt(var + EPS)
        y = y * g[None, :, None, None] + be[None, :, None, None]
        return jnp.maximum(y, 0.0)

    h = conv_bn_relu(x, w1, b1, g1, be1)
    return conv_bn_relu(h, w2, b2, g2, be2)


if __name__ == "__main__":
    key = jax.random.PRNGKey(0)
    # Up(in_channels=8, out_channels=8, bilinear=True):
    #   x1 (deeper map): (N, 4, 8, 8);  x2 (skip): (N, 4, 16, 16)
    #   concat -> 8 channels, DoubleConv mid = in_channels // 2 = 4, out = 8
    N = 2
    C1, H1, W1 = 4, 8, 8
    C2, H2, W2 = 4, 16, 16
    Cin = C1 + C2          # 8
    Cmid = Cin // 2        # 4
    Cout = 8

    ks = jax.random.split(key, 10)
    x1 = jax.random.normal(ks[0], (N, C1, H1, W1), jnp.float32)
    x2 = jax.random.normal(ks[1], (N, C2, H2, W2), jnp.float32)
    w1 = 0.1 * jax.random.normal(ks[2], (Cmid, Cin, 3, 3), jnp.float32)
    b1 = 0.1 * jax.random.normal(ks[3], (Cmid,), jnp.float32)
    g1 = 1.0 + 0.1 * jax.random.normal(ks[4], (Cmid,), jnp.float32)
    be1 = 0.1 * jax.random.normal(ks[5], (Cmid,), jnp.float32)
    w2 = 0.1 * jax.random.normal(ks[6], (Cout, Cmid, 3, 3), jnp.float32)
    b2 = 0.1 * jax.random.normal(ks[7], (Cout,), jnp.float32)
    g2 = 1.0 + 0.1 * jax.random.normal(ks[8], (Cout,), jnp.float32)
    be2 = 0.1 * jax.random.normal(ks[9], (Cout,), jnp.float32)
    params = (w1, b1, g1, be1, w2, b2, g2, be2)

    ref = ref_up_forward(x1, x2, params)

    # f32 MXU operands: tight check against the f32 reference.
    prep_f32 = prepare_up_params(params, mm_dtype=jnp.float32)
    out_f32 = jax.block_until_ready(up_forward(x1, x2, prep_f32))
    assert out_f32.shape == (N, Cout, H2, W2), out_f32.shape
    err32 = float(jnp.max(jnp.abs(out_f32 - ref)))
    assert err32 < 1e-4, err32

    # bf16 MXU operands (default fast path): expected quantization, looser tol.
    prep_bf16 = prepare_up_params(params)   # mm_dtype=jnp.bfloat16
    out_bf16 = jax.block_until_ready(up_forward(x1, x2, prep_bf16))
    err16 = float(jnp.max(jnp.abs(out_bf16 - ref)))
    assert err16 < 5e-2, err16

    print("KERNEL_OK")
</pallas_src>

<mosaic_0001>
module attributes {stable_mosaic.version = 11 : i64} {
  func.func @double_conv_kernel(%arg0: memref<512x128xf32, #tpu.memory_space<vmem>>, %arg1: memref<128x128xf32, #tpu.memory_space<vmem>>, %arg2: memref<1x128xf32, #tpu.memory_space<vmem>>, %arg3: memref<1x128xf32, #tpu.memory_space<vmem>>, %arg4: memref<1152x128xf32, #tpu.memory_space<vmem>>, %arg5: memref<1x128xf32, #tpu.memory_space<vmem>>, %arg6: memref<1x128xf32, #tpu.memory_space<vmem>>, %arg7: memref<2x16x16x128xf32, #tpu.memory_space<vmem>>, %arg8: memref<2x18x18x128xf32, #tpu.memory_space<vmem>>) attributes {dimension_semantics = [], scalar_prefetch = 0 : i64, scratch_operands = 1 : i64, tpu.core_type = #tpu.core_type<tc>} {
    %c0 = arith.constant 0 : index
    %c0_0 = arith.constant 0 : index
    %0 = vector.load %arg0[%c0, %c0_0] : memref<512x128xf32, #tpu.memory_space<vmem>>, vector<512x128xf32>
    %c0_1 = arith.constant 0 : index
    %c0_2 = arith.constant 0 : index
    %1 = vector.load %arg1[%c0_1, %c0_2] : memref<128x128xf32, #tpu.memory_space<vmem>>, vector<128x128xf32>
    %cst = arith.constant dense<0.000000e+00> : vector<512x128xf32>
    %2 = tpu.matmul %0, %1, %cst {dimension_numbers = #tpu.dot_dimension_numbers<[1], [0], [0], [1], [0, 0, 1, 1], [], []>} : vector<512x128xf32>, vector<128x128xf32>, vector<512x128xf32> -> vector<512x128xf32>
    %cst_3 = arith.constant dense<0.000000e+00> : vector<128xf32>
    %3 = vector.multi_reduction <add>, %2, %cst_3 [0] : vector<512x128xf32> to vector<128xf32>
    %4 = vector.shape_cast %3 : vector<128xf32> to vector<1x128xf32>
    %cst_4 = arith.constant 0.001953125 : f32
    %5 = vector.broadcast %cst_4 : f32 to vector<1x128xf32>
    %6 = arith.mulf %4, %5 : vector<1x128xf32>
    %7 = vector.broadcast %6 : vector<1x128xf32> to vector<512x128xf32>
    %8 = arith.subf %2, %7 : vector<512x128xf32>
    %9 = arith.mulf %8, %8 : vector<512x128xf32>
    %cst_5 = arith.constant dense<0.000000e+00> : vector<128xf32>
    %10 = vector.multi_reduction <add>, %9, %cst_5 [0] : vector<512x128xf32> to vector<128xf32>
    %11 = vector.shape_cast %10 : vector<128xf32> to vector<1x128xf32>
    %cst_6 = arith.constant 0.001953125 : f32
    %12 = vector.broadcast %cst_6 : f32 to vector<1x128xf32>
    %13 = arith.mulf %11, %12 : vector<1x128xf32>
    %cst_7 = arith.constant 9.99999974E-6 : f32
    %14 = vector.broadcast %cst_7 : f32 to vector<1x128xf32>
    %15 = arith.addf %13, %14 : vector<1x128xf32>
    %16 = math.rsqrt %15 : vector<1x128xf32>
    %c0_8 = arith.constant 0 : index
    %c0_9 = arith.constant 0 : index
    %17 = vector.load %arg2[%c0_8, %c0_9] : memref<1x128xf32, #tpu.memory_space<vmem>>, vector<1x128xf32>
    %18 = arith.mulf %16, %17 : vector<1x128xf32>
    %19 = vector.broadcast %18 : vector<1x128xf32> to vector<512x128xf32>
    %20 = arith.mulf %8, %19 : vector<512x128xf32>
    %c0_10 = arith.constant 0 : index
    %c0_11 = arith.constant 0 : index
    %21 = vector.load %arg3[%c0_10, %c0_11] : memref<1x128xf32, #tpu.memory_space<vmem>>, vector<1x128xf32>
    %22 = vector.broadcast %21 : vector<1x128xf32> to vector<512x128xf32>
    %23 = arith.addf %20, %22 : vector<512x128xf32>
    %cst_12 = arith.constant 0.000000e+00 : f32
    %24 = vector.broadcast %cst_12 : f32 to vector<512x128xf32>
    %25 = arith.maximumf %23, %24 : vector<512x128xf32>
    %cst_13 = arith.constant 0.000000e+00 : f32
    %26 = vector.broadcast %cst_13 : f32 to vector<2x1x18x128xf32>
    %cst_14 = arith.constant 0.000000e+00 : f32
    %27 = vector.broadcast %cst_14 : f32 to vector<2x16x1x128xf32>
    %c0_15 = arith.constant 0 : index
    %c0_16 = arith.constant 0 : index
    %c0_17 = arith.constant 0 : index
    %c0_18 = arith.constant 0 : index
    %28 = vector.load %arg8[%c0_15, %c0_16, %c0_17, %c0_18] : memref<2x18x18x128xf32, #tpu.memory_space<vmem>>, vector<2x1x18x128xf32>
    tpu.vector_store %arg8[%c0_15, %c0_16, %c0_17, %c0_18], %26 {strides = array<i32>} : memref<2x18x18x128xf32, #tpu.memory_space<vmem>>, vector<2x1x18x128xf32>,
    %c0_19 = arith.constant 0 : index
    %c17 = arith.constant 17 : index
    %c0_20 = arith.constant 0 : index
    %c0_21 = arith.constant 0 : index
    %29 = vector.load %arg8[%c0_19, %c17, %c0_20, %c0_21] : memref<2x18x18x128xf32, #tpu.memory_space<vmem>>, vector<2x1x18x128xf32>
    tpu.vector_store %arg8[%c0_19, %c17, %c0_20, %c0_21], %26 {strides = array<i32>} : memref<2x18x18x128xf32, #tpu.memory_space<vmem>>, vector<2x1x18x128xf32>,
    %30 = vector.shape_cast %25 : vector<512x128xf32> to vector<2x16x16x128xf32>
    %31 = tpu.concatenate %27, %30, %27 in 2 : vector<2x16x1x128xf32>, vector<2x16x16x128xf32>, vector<2x16x1x128xf32> -> vector<2x16x18x128xf32>
    %c0_22 = arith.constant 0 : index
    %c1 = arith.constant 1 : index
    %c0_23 = arith.constant 0 : index
    %c0_24 = arith.constant 0 : index
    %32 = vector.load %arg8[%c0_22, %c1, %c0_23, %c0_24] : memref<2x18x18x128xf32, #tpu.memory_space<vmem>>, vector<2x16x18x128xf32>
    tpu.vector_store %arg8[%c0_22, %c1, %c0_23, %c0_24], %31 {strides = array<i32>} : memref<2x18x18x128xf32, #tpu.memory_space<vmem>>, vector<2x16x18x128xf32>,
    %cst_25 = arith.constant 0.000000e+00 : f32
    %33 = vector.broadcast %cst_25 : f32 to vector<512x128xf32>
    %c0_26 = arith.constant 0 : index
    %c0_27 = arith.constant 0 : index
    %c0_28 = arith.constant 0 : index
    %c0_29 = arith.constant 0 : index
    %34 = vector.load %arg8[%c0_26, %c0_27, %c0_28, %c0_29] : memref<2x18x18x128xf32, #tpu.memory_space<vmem>>, vector<2x16x18x128xf32>
    %35 = vector.extract_strided_slice %34 {offsets = [0, 0, 0, 0], sizes = [2, 16, 16, 128], strides = [1, 1, 1, 1]} : vector<2x16x18x128xf32> to vector<2x16x16x128xf32>
    %36 = vector.extract_strided_slice %34 {offsets = [0, 0, 1, 0], sizes = [2, 16, 16, 128], strides = [1, 1, 1, 1]} : vector<2x16x18x128xf32> to vector<2x16x16x128xf32>
    %37 = vector.extract_strided_slice %34 {offsets = [0, 0, 2, 0], sizes = [2, 16, 16, 128], strides = [1, 1, 1, 1]} : vector<2x16x18x128xf32> to vector<2x16x16x128xf32>
    %38 = tpu.concatenate %35, %36, %37 in 3 : vector<2x16x16x128xf32>, vector<2x16x16x128xf32>, vector<2x16x16x128xf32> -> vector<2x16x16x384xf32>
    %39 = vector.shape_cast %38 : vector<2x16x16x384xf32> to vector<512x384xf32>
    %c0_30 = arith.constant 0 : index
    %c0_31 = arith.constant 0 : index
    %40 = vector.load %arg4[%c0_30, %c0_31] : memref<1152x128xf32, #tpu.memory_space<vmem>>, vector<384x128xf32>
    %cst_32 = arith.constant dense<0.000000e+00> : vector<512x128xf32>
    %41 = tpu.matmul %39, %40, %cst_32 {dimension_numbers = #tpu.dot_dimension_numbers<[1], [0], [0], [1], [0, 0, 1, 1], [], []>} : vector<512x384xf32>, vector<384x128xf32>, vector<512x128xf32> -> vector<512x128xf32>
    %42 = arith.addf %33, %41 : vector<512x128xf32>
    %c0_33 = arith.constant 0 : index
    %c1_34 = arith.constant 1 : index
    %c0_35 = arith.constant 0 : index
    %c0_36 = arith.constant 0 : index
    %43 = vector.load %arg8[%c0_33, %c1_34, %c0_35, %c0_36] : memref<2x18x18x128xf32, #tpu.memory_space<vmem>>, vector<2x16x18x128xf32>
    %44 = vector.extract_strided_slice %43 {offsets = [0, 0, 0, 0], sizes = [2, 16, 16, 128], strides = [1, 1, 1, 1]} : vector<2x16x18x128xf32> to vector<2x16x16x128xf32>
    %45 = vector.extract_strided_slice %43 {offsets = [0, 0, 1, 0], sizes = [2, 16, 16, 128], strides = [1, 1, 1, 1]} : vector<2x16x18x128xf32> to vector<2x16x16x128xf32>
    %46 = vector.extract_strided_slice %43 {offsets = [0, 0, 2, 0], sizes = [2, 16, 16, 128], strides = [1, 1, 1, 1]} : vector<2x16x18x128xf32> to vector<2x16x16x128xf32>
    %47 = tpu.concatenate %44, %45, %46 in 3 : vector<2x16x16x128xf32>, vector<2x16x16x128xf32>, vector<2x16x16x128xf32> -> vector<2x16x16x384xf32>
    %48 = vector.shape_cast %47 : vector<2x16x16x384xf32> to vector<512x384xf32>
    %c384 = arith.constant 384 : index
    %c0_37 = arith.constant 0 : index
    %49 = vector.load %arg4[%c384, %c0_37] : memref<1152x128xf32, #tpu.memory_space<vmem>>, vector<384x128xf32>
    %cst_38 = arith.constant dense<0.000000e+00> : vector<512x128xf32>
    %50 = tpu.matmul %48, %49, %cst_38 {dimension_numbers = #tpu.dot_dimension_numbers<[1], [0], [0], [1], [0, 0, 1, 1], [], []>} : vector<512x384xf32>, vector<384x128xf32>, vector<512x128xf32> -> vector<512x128xf32>
    %51 = arith.addf %42, %50 : vector<512x128xf32>
    %c0_39 = arith.constant 0 : index
    %c2 = arith.constant 2 : index
    %c0_40 = arith.constant 0 : index
    %c0_41 = arith.constant 0 : index
    %52 = vector.load %arg8[%c0_39, %c2, %c0_40, %c0_41] : memref<2x18x18x128xf32, #tpu.memory_space<vmem>>, vector<2x16x18x128xf32>
    %53 = vector.extract_strided_slice %52 {offsets = [0, 0, 0, 0], sizes = [2, 16, 16, 128], strides = [1, 1, 1, 1]} : vector<2x16x18x128xf32> to vector<2x16x16x128xf32>
    %54 = vector.extract_strided_slice %52 {offsets = [0, 0, 1, 0], sizes = [2, 16, 16, 128], strides = [1, 1, 1, 1]} : vector<2x16x18x128xf32> to vector<2x16x16x128xf32>
    %55 = vector.extract_strided_slice %52 {offsets = [0, 0, 2, 0], sizes = [2, 16, 16, 128], strides = [1, 1, 1, 1]} : vector<2x16x18x128xf32> to vector<2x16x16x128xf32>
    %56 = tpu.concatenate %53, %54, %55 in 3 : vector<2x16x16x128xf32>, vector<2x16x16x128xf32>, vector<2x16x16x128xf32> -> vector<2x16x16x384xf32>
    %57 = vector.shape_cast %56 : vector<2x16x16x384xf32> to vector<512x384xf32>
    %c768 = arith.constant 768 : index
    %c0_42 = arith.constant 0 : index
    %58 = vector.load %arg4[%c768, %c0_42] : memref<1152x128xf32, #tpu.memory_space<vmem>>, vector<384x128xf32>
    %cst_43 = arith.constant dense<0.000000e+00> : vector<512x128xf32>
    %59 = tpu.matmul %57, %58, %cst_43 {dimension_numbers = #tpu.dot_dimension_numbers<[1], [0], [0], [1], [0, 0, 1, 1], [], []>} : vector<512x384xf32>, vector<384x128xf32>, vector<512x128xf32> -> vector<512x128xf32>
    %60 = arith.addf %51, %59 : vector<512x128xf32>
    %cst_44 = arith.constant dense<0.000000e+00> : vector<128xf32>
    %61 = vector.multi_reduction <add>, %60, %cst_44 [0] : vector<512x128xf32> to vector<128xf32>
    %62 = vector.shape_cast %61 : vector<128xf32> to vector<1x128xf32>
    %cst_45 = arith.constant 0.001953125 : f32
    %63 = vector.broadcast %cst_45 : f32 to vector<1x128xf32>
    %64 = arith.mulf %62, %63 : vector<1x128xf32>
    %65 = vector.broadcast %64 : vector<1x128xf32> to vector<512x128xf32>
    %66 = arith.subf %60, %65 : vector<512x128xf32>
    %67 = arith.mulf %66, %66 : vector<512x128xf32>
    %cst_46 = arith.constant dense<0.000000e+00> : vector<128xf32>
    %68 = vector.multi_reduction <add>, %67, %cst_46 [0] : vector<512x128xf32> to vector<128xf32>
    %69 = vector.shape_cast %68 : vector<128xf32> to vector<1x128xf32>
    %cst_47 = arith.constant 0.001953125 : f32
    %70 = vector.broadcast %cst_47 : f32 to vector<1x128xf32>
    %71 = arith.mulf %69, %70 : vector<1x128xf32>
    %cst_48 = arith.constant 9.99999974E-6 : f32
    %72 = vector.broadcast %cst_48 : f32 to vector<1x128xf32>
    %73 = arith.addf %71, %72 : vector<1x128xf32>
    %74 = math.rsqrt %73 : vector<1x128xf32>
    %c0_49 = arith.constant 0 : index
    %c0_50 = arith.constant 0 : index
    %75 = vector.load %arg5[%c0_49, %c0_50] : memref<1x128xf32, #tpu.memory_space<vmem>>, vector<1x128xf32>
    %76 = arith.mulf %74, %75 : vector<1x128xf32>
    %77 = vector.broadcast %76 : vector<1x128xf32> to vector<512x128xf32>
    %78 = arith.mulf %66, %77 : vector<512x128xf32>
    %c0_51 = arith.constant 0 : index
    %c0_52 = arith.constant 0 : index
    %79 = vector.load %arg6[%c0_51, %c0_52] : memref<1x128xf32, #tpu.memory_space<vmem>>, vector<1x128xf32>
    %80 = vector.broadcast %79 : vector<1x128xf32> to vector<512x128xf32>
    %81 = arith.addf %78, %80 : vector<512x128xf32>
    %cst_53 = arith.constant 0.000000e+00 : f32
    %82 = vector.broadcast %cst_53 : f32 to vector<512x128xf32>
    %83 = arith.maximumf %81, %82 : vector<512x128xf32>
    %84 = vector.shape_cast %83 : vector<512x128xf32> to vector<2x16x16x128xf32>
    %c0_54 = arith.constant 0 : index
    %c0_55 = arith.constant 0 : index
    %c0_56 = arith.constant 0 : index
    %c0_57 = arith.constant 0 : index
    %85 = vector.load %arg7[%c0_54, %c0_55, %c0_56, %c0_57] : memref<2x16x16x128xf32, #tpu.memory_space<vmem>>, vector<2x16x16x128xf32>
    tpu.vector_store %arg7[%c0_54, %c0_55, %c0_56, %c0_57], %84 {strides = array<i32>} : memref<2x16x16x128xf32, #tpu.memory_space<vmem>>, vector<2x16x16x128xf32>,
    return
  }
}

</mosaic_0001>

<llo_original>
// kernel: tpu_custom_call.1
$region0: #{tpu_custom_call.1}
  #allocation0 [shape = 'u32[]', space=smem, size = 0x4, offset = 0x4, fixed_abs, tag = 'smem constant byte address 0x4 - core index']
  #allocation1 [shape = 'u32[144,128]{1,0:T(1,128)}', space=vmem, size = 0x12000, scoped, tag = 'internal scratch']
  #allocation2 [shape = 'f32[2,18,18,128]{3,2,1,0:T(8,128)}', space=vmem, size = 0x6c000, scoped, tag = 'scratch operand']
  %s0 = inlined_call_operand.hbm [shape: f32[512,128], index: 0, kind: input, shape index: {}]
  %s1 = inlined_call_operand.hbm [shape: f32[128,128], index: 1, kind: input, shape index: {}]
  %s2 = inlined_call_operand.vmem [shape: f32[1,128], index: 2, kind: input, shape index: {}]
  %s3 = inlined_call_operand.vmem [shape: f32[1,128], index: 3, kind: input, shape index: {}]
  %s4 = inlined_call_operand.hbm [shape: f32[1152,128], index: 4, kind: input, shape index: {}]
  %s5 = inlined_call_operand.vmem [shape: f32[1,128], index: 5, kind: input, shape index: {}]
  %s6 = inlined_call_operand.vmem [shape: f32[1,128], index: 6, kind: input, shape index: {}]
  %s7 = inlined_call_operand.hbm [shape: f32[2,16,16,128], index: 7, kind: output, shape index: {}]
  %s8 = sld [smem:[#allocation0]]
  $region50: #{tpu_custom_call.1} parent=0
    _
  %s10 = ssub.s32 1, %s8
  %s11 = scalar_select 0, %s10, %s8
  $region1: #{tpu_custom_call.1} parent=0
    #allocation3 [shape = 'u8[262144]{0}', space=vmem, size = 0x40000, scoped, tag = 'input window, operand 0, single buffered']
    #allocation4 [shape = 's32[1]{0}', space=sflag, size = 0x4, scoped, tag = 'scoped memory for tpu_custom_call.1']
    #allocation5 [shape = 's32[1]{0}', space=sflag, size = 0x4, scoped, tag = 'scoped memory for tpu_custom_call.1']
    #allocation6 [shape = 'u8[65536]{0}', space=vmem, size = 0x10000, scoped, tag = 'input window, operand 1, single buffered']
    #allocation7 [shape = 's32[1]{0}', space=sflag, size = 0x4, scoped, tag = 'scoped memory for tpu_custom_call.1']
    #allocation8 [shape = 'u8[589824]{0}', space=vmem, size = 0x90000, scoped, tag = 'input window, operand 4, single buffered']
    #allocation9 [shape = 'u8[262144]{0}', space=vmem, size = 0x40000, scoped, tag = 'output window, operand 0, single buffered']
    %12 = vsyncpa [#allocation4], 0
    %13 = vsyncpa [#allocation7], 0
    %14 = vsyncpa [#allocation5], 0
    // Predicated region
    $region2: #{tpu_custom_call.1} parent=1 // pred_check
      _
    $region3: #{tpu_custom_call.1} parent=1 // pred_check_branch
      %16 = sbr.rel (0) target = $region5
    $region4: #{tpu_custom_call.1} parent=1 // pred_region
      %s18 = ssub.s32 8192, 8192
      %19 = vsyncadd [#allocation4], %s18
      %s20 = sshll.u32 [#allocation3], 4
      %s21 = int_to_ptr.vmem [resolvable:$true] %s20
      %26 = dma.hbm_to_vmem [thread:$0]  %s0, 8192, %s21, [#allocation4], 128, 128, 8
    $region5: #{tpu_custom_call.1} parent=1 // pred_fallthru
      _
    // Predicated region
    $region6: #{tpu_custom_call.1} parent=1 // pred_check
      _
    $region7: #{tpu_custom_call.1} parent=1 // pred_check_branch
      %28 = sbr.rel (0) target = $region9
    $region8: #{tpu_custom_call.1} parent=1 // pred_region
      %s30 = ssub.s32 2048, 2048
      %31 = vsyncadd [#allocation7], %s30
      %s32 = sshll.u32 [#allocation6], 4
      %s33 = int_to_ptr.vmem [resolvable:$true] %s32
      %38 = dma.hbm_to_vmem [thread:$0]  %s1, 2048, %s33, [#allocation7], 128, 128, 8
    $region9: #{tpu_custom_call.1} parent=1 // pred_fallthru
      _
    // Predicated region
    $region10: #{tpu_custom_call.1} parent=1 // pred_check
      _
    $region11: #{tpu_custom_call.1} parent=1 // pred_check_branch
      %40 = sbr.rel (0) target = $region13
    $region12: #{tpu_custom_call.1} parent=1 // pred_region
      _
    $region13: #{tpu_custom_call.1} parent=1 // pred_fallthru
      _
    // Predicated region
    $region14: #{tpu_custom_call.1} parent=1 // pred_check
      _
    $region15: #{tpu_custom_call.1} parent=1 // pred_check_branch
      %42 = sbr.rel (0) target = $region17
    $region16: #{tpu_custom_call.1} parent=1 // pred_region
      _
    $region17: #{tpu_custom_call.1} parent=1 // pred_fallthru
      _
    // Predicated region
    $region18: #{tpu_custom_call.1} parent=1 // pred_check
      _
    $region19: #{tpu_custom_call.1} parent=1 // pred_check_branch
      %44 = sbr.rel (0) target = $region21
    $region20: #{tpu_custom_call.1} parent=1 // pred_region
      %s46 = ssub.s32 18432, 18432
      %47 = vsyncadd [#allocation7], %s46
      %s48 = sshll.u32 [#allocation8], 4
      %s49 = int_to_ptr.vmem [resolvable:$true] %s48
      %54 = dma.hbm_to_vmem [thread:$0]  %s4, 18432, %s49, [#allocation7], 128, 128, 8
    $region21: #{tpu_custom_call.1} parent=1 // pred_fallthru
      _
    // Predicated region
    $region22: #{tpu_custom_call.1} parent=1 // pred_check
      _
    $region23: #{tpu_custom_call.1} parent=1 // pred_check_branch
      %56 = sbr.rel (0) target = $region25
    $region24: #{tpu_custom_call.1} parent=1 // pred_region
      _
    $region25: #{tpu_custom_call.1} parent=1 // pred_fallthru
      _
    // Predicated region
    $region26: #{tpu_custom_call.1} parent=1 // pred_check
      _
    $region27: #{tpu_custom_call.1} parent=1 // pred_check_branch
      %58 = sbr.rel (0) target = $region29
    $region28: #{tpu_custom_call.1} parent=1 // pred_region
      _
    $region29: #{tpu_custom_call.1} parent=1 // pred_fallthru
      _
    // Predicated region
    $region30: #{tpu_custom_call.1} parent=1 // pred_check
      _
    $region31: #{tpu_custom_call.1} parent=1 // pred_check_branch
      %60 = sbr.rel (0) target = $region33
    $region32: #{tpu_custom_call.1} parent=1 // pred_region
      %61 = dma.done [#allocation4], 8192
    $region33: #{tpu_custom_call.1} parent=1 // pred_fallthru
      _
    // Predicated region
    $region34: #{tpu_custom_call.1} parent=1 // pred_check
      _
    $region35: #{tpu_custom_call.1} parent=1 // pred_check_branch
      %63 = sbr.rel (0) target = $region37
    $region36: #{tpu_custom_call.1} parent=1 // pred_region
      %64 = dma.done [#allocation7], 2048
    $region37: #{tpu_custom_call.1} parent=1 // pred_fallthru
      _
    // Predicated region
    $region38: #{tpu_custom_call.1} parent=1 // pred_check
      _
    $region39: #{tpu_custom_call.1} parent=1 // pred_check_branch
      %66 = sbr.rel (0) target = $region41
    $region40: #{tpu_custom_call.1} parent=1 // pred_region
      %67 = dma.done [#allocation7], 18432
    $region41: #{tpu_custom_call.1} parent=1 // pred_fallthru
      _
    %v68 = vld [vmem:[#allocation3] sm:$0xff]
    %v69 = vld [vmem:[#allocation3 + $0x8] sm:$0xff]
    %v70 = vld [vmem:[#allocation3 + $0x10] sm:$0xff]
    %v71 = vld [vmem:[#allocation3 + $0x18] sm:$0xff]
    %v72 = vld [vmem:[#allocation3 + $0x20] sm:$0xff]
    %v73 = vld [vmem:[#allocation3 + $0x28] sm:$0xff]
    %v74 = vld [vmem:[#allocation3 + $0x30] sm:$0xff]
    %v75 = vld [vmem:[#allocation3 + $0x38] sm:$0xff]
    %v76 = vld [vmem:[#allocation3 + $0x40] sm:$0xff]
    %v77 = vld [vmem:[#allocation3 + $0x48] sm:$0xff]
    %v78 = vld [vmem:[#allocation3 + $0x50] sm:$0xff]
    %v79 = vld [vmem:[#allocation3 + $0x58] sm:$0xff]
    %v80 = vld [vmem:[#allocation3 + $0x60] sm:$0xff]
    %v81 = vld [vmem:[#allocation3 + $0x68] sm:$0xff]
    %v82 = vld [vmem:[#allocation3 + $0x70] sm:$0xff]
    %v83 = vld [vmem:[#allocation3 + $0x78] sm:$0xff]
    %v84 = vld [vmem:[#allocation3 + $0x80] sm:$0xff]
    %v85 = vld [vmem:[#allocation3 + $0x88] sm:$0xff]
    %v86 = vld [vmem:[#allocation3 + $0x90] sm:$0xff]
    %v87 = vld [vmem:[#allocation3 + $0x98] sm:$0xff]
    %v88 = vld [vmem:[#allocation3 + $0xa0] sm:$0xff]
    %v89 = vld [vmem:[#allocation3 + $0xa8] sm:$0xff]
    %v90 = vld [vmem:[#allocation3 + $0xb0] sm:$0xff]
    %v91 = vld [vmem:[#allocation3 + $0xb8] sm:$0xff]
    %v92 = vld [vmem:[#allocation3 + $0xc0] sm:$0xff]
    %v93 = vld [vmem:[#allocation3 + $0xc8] sm:$0xff]
    %v94 = vld [vmem:[#allocation3 + $0xd0] sm:$0xff]
    %v95 = vld [vmem:[#allocation3 + $0xd8] sm:$0xff]
    %v96 = vld [vmem:[#allocation3 + $0xe0] sm:$0xff]
    %v97 = vld [vmem:[#allocation3 + $0xe8] sm:$0xff]
    %v98 = vld [vmem:[#allocation3 + $0xf0] sm:$0xff]
    %v99 = vld [vmem:[#allocation3 + $0xf8] sm:$0xff]
    %v100 = vld [vmem:[#allocation3 + $0x100] sm:$0xff]
    %v101 = vld [vmem:[#allocation3 + $0x108] sm:$0xff]
    %v102 = vld [vmem:[#allocation3 + $0x110] sm:$0xff]
    %v103 = vld [vmem:[#allocation3 + $0x118] sm:$0xff]
    %v104 = vld [vmem:[#allocation3 + $0x120] sm:$0xff]
    %v105 = vld [vmem:[#allocation3 + $0x128] sm:$0xff]
    %v106 = vld [vmem:[#allocation3 + $0x130] sm:$0xff]
    %v107 = vld [vmem:[#allocation3 + $0x138] sm:$0xff]
    %v108 = vld [vmem:[#allocation3 + $0x140] sm:$0xff]
    %v109 = vld [vmem:[#allocation3 + $0x148] sm:$0xff]
    %v110 = vld [vmem:[#allocation3 + $0x150] sm:$0xff]
    %v111 = vld [vmem:[#allocation3 + $0x158] sm:$0xff]
    %v112 = vld [vmem:[#allocation3 + $0x160] sm:$0xff]
    %v113 = vld [vmem:[#allocation3 + $0x168] sm:$0xff]
    %v114 = vld [vmem:[#allocation3 + $0x170] sm:$0xff]
    %v115 = vld [vmem:[#allocation3 + $0x178] sm:$0xff]
    %v116 = vld [vmem:[#allocation3 + $0x180] sm:$0xff]
    %v117 = vld [vmem:[#allocation3 + $0x188] sm:$0xff]
    %v118 = vld [vmem:[#allocation3 + $0x190] sm:$0xff]
    %v119 = vld [vmem:[#allocation3 + $0x198] sm:$0xff]
    %v120 = vld [vmem:[#allocation3 + $0x1a0] sm:$0xff]
    %v121 = vld [vmem:[#allocation3 + $0x1a8] sm:$0xff]
    %v122 = vld [vmem:[#allocation3 + $0x1b0] sm:$0xff]
    %v123 = vld [vmem:[#allocation3 + $0x1b8] sm:$0xff]
    %v124 = vld [vmem:[#allocation3 + $0x1c0] sm:$0xff]
    %v125 = vld [vmem:[#allocation3 + $0x1c8] sm:$0xff]
    %v126 = vld [vmem:[#allocation3 + $0x1d0] sm:$0xff]
    %v127 = vld [vmem:[#allocation3 + $0x1d8] sm:$0xff]
    %v128 = vld [vmem:[#allocation3 + $0x1e0] sm:$0xff]
    %v129 = vld [vmem:[#allocation3 + $0x1e8] sm:$0xff]
    %v130 = vld [vmem:[#allocation3 + $0x1f0] sm:$0xff]
    %v131 = vld [vmem:[#allocation3 + $0x1f8] sm:$0xff]
    %v132 = vld [vmem:[#allocation6] sm:$0xff]
    %v133 = vld [vmem:[#allocation6 + $0x8] sm:$0xff]
    %v134 = vld [vmem:[#allocation6 + $0x10] sm:$0xff]
    %v135 = vld [vmem:[#allocation6 + $0x18] sm:$0xff]
    %v136 = vld [vmem:[#allocation6 + $0x20] sm:$0xff]
    %v137 = vld [vmem:[#allocation6 + $0x28] sm:$0xff]
    %v138 = vld [vmem:[#allocation6 + $0x30] sm:$0xff]
    %v139 = vld [vmem:[#allocation6 + $0x38] sm:$0xff]
    %v140 = vld [vmem:[#allocation6 + $0x40] sm:$0xff]
    %v141 = vld [vmem:[#allocation6 + $0x48] sm:$0xff]
    %v142 = vld [vmem:[#allocation6 + $0x50] sm:$0xff]
    %v143 = vld [vmem:[#allocation6 + $0x58] sm:$0xff]
    %v144 = vld [vmem:[#allocation6 + $0x60] sm:$0xff]
    %v145 = vld [vmem:[#allocation6 + $0x68] sm:$0xff]
    %v146 = vld [vmem:[#allocation6 + $0x70] sm:$0xff]
    %v147 = vld [vmem:[#allocation6 + $0x78] sm:$0xff]
    %148 = vmatprep.subr.mxu0 0.0
    %149 = vmatpush1.msra.mxu0 %v147
    %150 = vmatprep.subr.mxu0 0.0
    %151 = vmatpush1.msra.mxu0 %v146
    %152 = vmatprep.subr.mxu0 0.0
    %153 = vmatpush1.msra.mxu0 %v145
    %154 = vmatprep.subr.mxu0 0.0
    %155 = vmatpush1.msra.mxu0 %v144
    %156 = vmatprep.subr.mxu0 0.0
    %157 = vmatpush1.msra.mxu0 %v143
    %158 = vmatprep.subr.mxu0 0.0
    %159 = vmatpush1.msra.mxu0 %v142
    %160 = vmatprep.subr.mxu0 0.0
    %161 = vmatpush1.msra.mxu0 %v141
    %162 = vmatprep.subr.mxu0 0.0
    %163 = vmatpush1.msra.mxu0 %v140
    %164 = vmatprep.subr.mxu0 0.0
    %165 = vmatpush1.msra.mxu0 %v139
    %166 = vmatprep.subr.mxu0 0.0
    %167 = vmatpush1.msra.mxu0 %v138
    %168 = vmatprep.subr.mxu0 0.0
    %169 = vmatpush1.msra.mxu0 %v137
    %170 = vmatprep.subr.mxu0 0.0
    %171 = vmatpush1.msra.mxu0 %v136
    %172 = vmatprep.subr.mxu0 0.0
    %173 = vmatpush1.msra.mxu0 %v135
    %174 = vmatprep.subr.mxu0 0.0
    %175 = vmatpush1.msra.mxu0 %v134
    %176 = vmatprep.subr.mxu0 0.0
    %177 = vmatpush1.msra.mxu0 %v133
    %178 = vmatprep.subr.mxu0 0.0
    %179 = vmatpush1.msra.mxu0 %v132
    %180 = vmatprep.subr.mxu0 0.0
    %181 = vmatpush2.msra.mxu0 0.0
    %182 = vmatprep.subr.mxu0 0.0
    %183 = vmatpush2.msra.mxu0 0.0
    %184 = vmatprep.subr.mxu0 0.0
    %185 = vmatpush2.msra.mxu0 0.0
    %186 = vmatprep.subr.mxu0 0.0
    %187 = vmatpush2.msra.mxu0 0.0
    %188 = vmatprep.subr.mxu0 0.0
    %189 = vmatpush2.msra.mxu0 0.0
    %190 = vmatprep.subr.mxu0 0.0
    %191 = vmatpush2.msra.mxu0 0.0
    %192 = vmatprep.subr.mxu0 0.0
    %193 = vmatpush2.msra.mxu0 0.0
    %194 = vmatprep.subr.mxu0 0.0
    %195 = vmatpush2.msra.mxu0 0.0
    %196 = vmatprep.subr.mxu0 0.0
    %197 = vmatpush2.msra.mxu0 0.0
    %198 = vmatprep.subr.mxu0 0.0
    %199 = vmatpush2.msra.mxu0 0.0
    %200 = vmatprep.subr.mxu0 0.0
    %201 = vmatpush2.msra.mxu0 0.0
    %202 = vmatprep.subr.mxu0 0.0
    %203 = vmatpush2.msra.mxu0 0.0
    %204 = vmatprep.subr.mxu0 0.0
    %205 = vmatpush2.msra.mxu0 0.0
    %206 = vmatprep.subr.mxu0 0.0
    %207 = vmatpush2.msra.mxu0 0.0
    %208 = vmatprep.subr.mxu0 0.0
    %209 = vmatpush2.msra.mxu0 0.0
    %210 = vmatprep.subr.mxu0 0.0
    %211 = vmatpush2.msra.mxu0 0.0
    %212 = vmatprep.mubr.f32.mxu0 0.0
    %213 = vmatmul.mubr.f32.gmra.mxu0 %v68
    %v214 = vpop.f32.mrf.mxu0
    %v215 = vadd.f32 0.0, %v214
    %v216 = vpop.f32.mrf.mxu0
    %217 = vmatprep.mubr.f32.mxu0 0.0
    %218 = vmatmul.mubr.f32.gmra.mxu0 %v69
    %v219 = vpop.f32.mrf.mxu0
    %v220 = vadd.f32 0.0, %v219
    %v221 = vpop.f32.mrf.mxu0
    %222 = vmatprep.mubr.f32.mxu0 0.0
    %223 = vmatmul.mubr.f32.gmra.mxu0 %v70
    %v224 = vpop.f32.mrf.mxu0
    %v225 = vadd.f32 0.0, %v224
    %v226 = vpop.f32.mrf.mxu0
    %227 = vmatprep.mubr.f32.mxu0 0.0
    %228 = vmatmul.mubr.f32.gmra.mxu0 %v71
    %v229 = vpop.f32.mrf.mxu0
    %v230 = vadd.f32 0.0, %v229
    %v231 = vpop.f32.mrf.mxu0
    %232 = vmatprep.mubr.f32.mxu0 0.0
    %233 = vmatmul.mubr.f32.gmra.mxu0 %v72
    %v234 = vpop.f32.mrf.mxu0
    %v235 = vadd.f32 0.0, %v234
    %v236 = vpop.f32.mrf.mxu0
    %237 = vmatprep.mubr.f32.mxu0 0.0
    %238 = vmatmul.mubr.f32.gmra.mxu0 %v73
    %v239 = vpop.f32.mrf.mxu0
    %v240 = vadd.f32 0.0, %v239
    %v241 = vpop.f32.mrf.mxu0
    %242 = vmatprep.mubr.f32.mxu0 0.0
    %243 = vmatmul.mubr.f32.gmra.mxu0 %v74
    %v244 = vpop.f32.mrf.mxu0
    %v245 = vadd.f32 0.0, %v244
    %v246 = vpop.f32.mrf.mxu0
    %247 = vmatprep.mubr.f32.mxu0 0.0
    %248 = vmatmul.mubr.f32.gmra.mxu0 %v75
    %v249 = vpop.f32.mrf.mxu0
    %v250 = vadd.f32 0.0, %v249
    %v251 = vpop.f32.mrf.mxu0
    %252 = vmatprep.mubr.f32.mxu0 0.0
    %253 = vmatmul.mubr.f32.gmra.mxu0 %v76
    %v254 = vpop.f32.mrf.mxu0
    %v255 = vadd.f32 0.0, %v254
    %v256 = vpop.f32.mrf.mxu0
    %257 = vmatprep.mubr.f32.mxu0 0.0
    %258 = vmatmul.mubr.f32.gmra.mxu0 %v77
    %v259 = vpop.f32.mrf.mxu0
    %v260 = vadd.f32 0.0, %v259
    %v261 = vpop.f32.mrf.mxu0
    %262 = vmatprep.mubr.f32.mxu0 0.0
    %263 = vmatmul.mubr.f32.gmra.mxu0 %v78
    %v264 = vpop.f32.mrf.mxu0
    %v265 = vadd.f32 0.0, %v264
    %v266 = vpop.f32.mrf.mxu0
    %267 = vmatprep.mubr.f32.mxu0 0.0
    %268 = vmatmul.mubr.f32.gmra.mxu0 %v79
    %v269 = vpop.f32.mrf.mxu0
    %v270 = vadd.f32 0.0, %v269
    %v271 = vpop.f32.mrf.mxu0
    %272 = vmatprep.mubr.f32.mxu0 0.0
    %273 = vmatmul.mubr.f32.gmra.mxu0 %v80
    %v274 = vpop.f32.mrf.mxu0
    %v275 = vadd.f32 0.0, %v274
    %v276 = vpop.f32.mrf.mxu0
    %277 = vmatprep.mubr.f32.mxu0 0.0
    %278 = vmatmul.mubr.f32.gmra.mxu0 %v81
    %v279 = vpop.f32.mrf.mxu0
    %v280 = vadd.f32 0.0, %v279
    %v281 = vpop.f32.mrf.mxu0
    %282 = vmatprep.mubr.f32.mxu0 0.0
    %283 = vmatmul.mubr.f32.gmra.mxu0 %v82
    %v284 = vpop.f32.mrf.mxu0
    %v285 = vadd.f32 0.0, %v284
    %v286 = vpop.f32.mrf.mxu0
    %287 = vmatprep.mubr.f32.mxu0 0.0
    %288 = vmatmul.mubr.f32.gmra.mxu0 %v83
    %v289 = vpop.f32.mrf.mxu0
    %v290 = vadd.f32 0.0, %v289
    %v291 = vpop.f32.mrf.mxu0
    %292 = vmatprep.mubr.f32.mxu0 0.0
    %293 = vmatmul.mubr.f32.gmra.mxu0 %v84
    %v294 = vpop.f32.mrf.mxu0
    %v295 = vadd.f32 0.0, %v294
    %v296 = vpop.f32.mrf.mxu0
    %297 = vmatprep.mubr.f32.mxu0 0.0
    %298 = vmatmul.mubr.f32.gmra.mxu0 %v85
    %v299 = vpop.f32.mrf.mxu0
    %v300 = vadd.f32 0.0, %v299
    %v301 = vpop.f32.mrf.mxu0
    %302 = vmatprep.mubr.f32.mxu0 0.0
    %303 = vmatmul.mubr.f32.gmra.mxu0 %v86
    %v304 = vpop.f32.mrf.mxu0
    %v305 = vadd.f32 0.0, %v304
    %v306 = vpop.f32.mrf.mxu0
    %307 = vmatprep.mubr.f32.mxu0 0.0
    %308 = vmatmul.mubr.f32.gmra.mxu0 %v87
    %v309 = vpop.f32.mrf.mxu0
    %v310 = vadd.f32 0.0, %v309
    %v311 = vpop.f32.mrf.mxu0
    %312 = vmatprep.mubr.f32.mxu0 0.0
    %313 = vmatmul.mubr.f32.gmra.mxu0 %v88
    %v314 = vpop.f32.mrf.mxu0
    %v315 = vadd.f32 0.0, %v314
    %v316 = vpop.f32.mrf.mxu0
    %317 = vmatprep.mubr.f32.mxu0 0.0
    %318 = vmatmul.mubr.f32.gmra.mxu0 %v89
    %v319 = vpop.f32.mrf.mxu0
    %v320 = vadd.f32 0.0, %v319
    %v321 = vpop.f32.mrf.mxu0
    %322 = vmatprep.mubr.f32.mxu0 0.0
    %323 = vmatmul.mubr.f32.gmra.mxu0 %v90
    %v324 = vpop.f32.mrf.mxu0
    %v325 = vadd.f32 0.0, %v324
    %v326 = vpop.f32.mrf.mxu0
    %327 = vmatprep.mubr.f32.mxu0 0.0
    %328 = vmatmul.mubr.f32.gmra.mxu0 %v91
    %v329 = vpop.f32.mrf.mxu0
    %v330 = vadd.f32 0.0, %v329
    %v331 = vpop.f32.mrf.mxu0
    %332 = vmatprep.mubr.f32.mxu0 0.0
    %333 = vmatmul.mubr.f32.gmra.mxu0 %v92
    %v334 = vpop.f32.mrf.mxu0
    %v335 = vadd.f32 0.0, %v334
    %v336 = vpop.f32.mrf.mxu0
    %337 = vmatprep.mubr.f32.mxu0 0.0
    %338 = vmatmul.mubr.f32.gmra.mxu0 %v93
    %v339 = vpop.f32.mrf.mxu0
    %v340 = vadd.f32 0.0, %v339
    %v341 = vpop.f32.mrf.mxu0
    %342 = vmatprep.mubr.f32.mxu0 0.0
    %343 = vmatmul.mubr.f32.gmra.mxu0 %v94
    %v344 = vpop.f32.mrf.mxu0
    %v345 = vadd.f32 0.0, %v344
    %v346 = vpop.f32.mrf.mxu0
    %347 = vmatprep.mubr.f32.mxu0 0.0
    %348 = vmatmul.mubr.f32.gmra.mxu0 %v95
    %v349 = vpop.f32.mrf.mxu0
    %v350 = vadd.f32 0.0, %v349
    %v351 = vpop.f32.mrf.mxu0
    %352 = vmatprep.mubr.f32.mxu0 0.0
    %353 = vmatmul.mubr.f32.gmra.mxu0 %v96
    %v354 = vpop.f32.mrf.mxu0
    %v355 = vadd.f32 0.0, %v354
    %v356 = vpop.f32.mrf.mxu0
    %357 = vmatprep.mubr.f32.mxu0 0.0
    %358 = vmatmul.mubr.f32.gmra.mxu0 %v97
    %v359 = vpop.f32.mrf.mxu0
    %v360 = vadd.f32 0.0, %v359
    %v361 = vpop.f32.mrf.mxu0
    %362 = vmatprep.mubr.f32.mxu0 0.0
    %363 = vmatmul.mubr.f32.gmra.mxu0 %v98
    %v364 = vpop.f32.mrf.mxu0
    %v365 = vadd.f32 0.0, %v364
    %v366 = vpop.f32.mrf.mxu0
    %367 = vmatprep.mubr.f32.mxu0 0.0
    %368 = vmatmul.mubr.f32.gmra.mxu0 %v99
    %v369 = vpop.f32.mrf.mxu0
    %v370 = vadd.f32 0.0, %v369
    %v371 = vpop.f32.mrf.mxu0
    %372 = vmatprep.mubr.f32.mxu0 0.0
    %373 = vmatmul.mubr.f32.gmra.mxu0 %v100
    %v374 = vpop.f32.mrf.mxu0
    %v375 = vadd.f32 0.0, %v374
    %v376 = vpop.f32.mrf.mxu0
    %377 = vmatprep.mubr.f32.mxu0 0.0
    %378 = vmatmul.mubr.f32.gmra.mxu0 %v101
    %v379 = vpop.f32.mrf.mxu0
    %v380 = vadd.f32 0.0, %v379
    %v381 = vpop.f32.mrf.mxu0
    %382 = vmatprep.mubr.f32.mxu0 0.0
    %383 = vmatmul.mubr.f32.gmra.mxu0 %v102
    %v384 = vpop.f32.mrf.mxu0
    %v385 = vadd.f32 0.0, %v384
    %v386 = vpop.f32.mrf.mxu0
    %387 = vmatprep.mubr.f32.mxu0 0.0
    %388 = vmatmul.mubr.f32.gmra.mxu0 %v103
    %v389 = vpop.f32.mrf.mxu0
    %v390 = vadd.f32 0.0, %v389
    %v391 = vpop.f32.mrf.mxu0
    %392 = vmatprep.mubr.f32.mxu0 0.0
    %393 = vmatmul.mubr.f32.gmra.mxu0 %v104
    %v394 = vpop.f32.mrf.mxu0
    %v395 = vadd.f32 0.0, %v394
    %v396 = vpop.f32.mrf.mxu0
    %397 = vmatprep.mubr.f32.mxu0 0.0
    %398 = vmatmul.mubr.f32.gmra.mxu0 %v105
    %v399 = vpop.f32.mrf.mxu0
    %v400 = vadd.f32 0.0, %v399
    %v401 = vpop.f32.mrf.mxu0
    %402 = vmatprep.mubr.f32.mxu0 0.0
    %403 = vmatmul.mubr.f32.gmra.mxu0 %v106
    %v404 = vpop.f32.mrf.mxu0
    %v405 = vadd.f32 0.0, %v404
    %v406 = vpop.f32.mrf.mxu0
    %407 = vmatprep.mubr.f32.mxu0 0.0
    %408 = vmatmul.mubr.f32.gmra.mxu0 %v107
    %v409 = vpop.f32.mrf.mxu0
    %v410 = vadd.f32 0.0, %v409
    %v411 = vpop.f32.mrf.mxu0
    %412 = vmatprep.mubr.f32.mxu0 0.0
    %413 = vmatmul.mubr.f32.gmra.mxu0 %v108
    %v414 = vpop.f32.mrf.mxu0
    %v415 = vadd.f32 0.0, %v414
    %v416 = vpop.f32.mrf.mxu0
    %417 = vmatprep.mubr.f32.mxu0 0.0
    %418 = vmatmul.mubr.f32.gmra.mxu0 %v109
    %v419 = vpop.f32.mrf.mxu0
    %v420 = vadd.f32 0.0, %v419
    %v421 = vpop.f32.mrf.mxu0
    %422 = vmatprep.mubr.f32.mxu0 0.0
    %423 = vmatmul.mubr.f32.gmra.mxu0 %v110
    %v424 = vpop.f32.mrf.mxu0
    %v425 = vadd.f32 0.0, %v424
    %v426 = vpop.f32.mrf.mxu0
    %427 = vmatprep.mubr.f32.mxu0 0.0
    %428 = vmatmul.mubr.f32.gmra.mxu0 %v111
    %v429 = vpop.f32.mrf.mxu0
    %v430 = vadd.f32 0.0, %v429
    %v431 = vpop.f32.mrf.mxu0
    %432 = vmatprep.mubr.f32.mxu0 0.0
    %433 = vmatmul.mubr.f32.gmra.mxu0 %v112
    %v434 = vpop.f32.mrf.mxu0
    %v435 = vadd.f32 0.0, %v434
    %v436 = vpop.f32.mrf.mxu0
    %437 = vmatprep.mubr.f32.mxu0 0.0
    %438 = vmatmul.mubr.f32.gmra.mxu0 %v113
    %v439 = vpop.f32.mrf.mxu0
    %v440 = vadd.f32 0.0, %v439
    %v441 = vpop.f32.mrf.mxu0
    %442 = vmatprep.mubr.f32.mxu0 0.0
    %443 = vmatmul.mubr.f32.gmra.mxu0 %v114
    %v444 = vpop.f32.mrf.mxu0
    %v445 = vadd.f32 0.0, %v444
    %v446 = vpop.f32.mrf.mxu0
    %447 = vmatprep.mubr.f32.mxu0 0.0
    %448 = vmatmul.mubr.f32.gmra.mxu0 %v115
    %v449 = vpop.f32.mrf.mxu0
    %v450 = vadd.f32 0.0, %v449
    %v451 = vpop.f32.mrf.mxu0
    %452 = vmatprep.mubr.f32.mxu0 0.0
    %453 = vmatmul.mubr.f32.gmra.mxu0 %v116
    %v454 = vpop.f32.mrf.mxu0
    %v455 = vadd.f32 0.0, %v454
    %v456 = vpop.f32.mrf.mxu0
    %457 = vmatprep.mubr.f32.mxu0 0.0
    %458 = vmatmul.mubr.f32.gmra.mxu0 %v117
    %v459 = vpop.f32.mrf.mxu0
    %v460 = vadd.f32 0.0, %v459
    %v461 = vpop.f32.mrf.mxu0
    %462 = vmatprep.mubr.f32.mxu0 0.0
    %463 = vmatmul.mubr.f32.gmra.mxu0 %v118
    %v464 = vpop.f32.mrf.mxu0
    %v465 = vadd.f32 0.0, %v464
    %v466 = vpop.f32.mrf.mxu0
    %467 = vmatprep.mubr.f32.mxu0 0.0
    %468 = vmatmul.mubr.f32.gmra.mxu0 %v119
    %v469 = vpop.f32.mrf.mxu0
    %v470 = vadd.f32 0.0, %v469
    %v471 = vpop.f32.mrf.mxu0
    %472 = vmatprep.mubr.f32.mxu0 0.0
    %473 = vmatmul.mubr.f32.gmra.mxu0 %v120
    %v474 = vpop.f32.mrf.mxu0
    %v475 = vadd.f32 0.0, %v474
    %v476 = vpop.f32.mrf.mxu0
    %477 = vmatprep.mubr.f32.mxu0 0.0
    %478 = vmatmul.mubr.f32.gmra.mxu0 %v121
    %v479 = vpop.f32.mrf.mxu0
    %v480 = vadd.f32 0.0, %v479
    %v481 = vpop.f32.mrf.mxu0
    %482 = vmatprep.mubr.f32.mxu0 0.0
    %483 = vmatmul.mubr.f32.gmra.mxu0 %v122
    %v484 = vpop.f32.mrf.mxu0
    %v485 = vadd.f32 0.0, %v484
    %v486 = vpop.f32.mrf.mxu0
    %487 = vmatprep.mubr.f32.mxu0 0.0
    %488 = vmatmul.mubr.f32.gmra.mxu0 %v123
    %v489 = vpop.f32.mrf.mxu0
    %v490 = vadd.f32 0.0, %v489
    %v491 = vpop.f32.mrf.mxu0
    %492 = vmatprep.mubr.f32.mxu0 0.0
    %493 = vmatmul.mubr.f32.gmra.mxu0 %v124
    %v494 = vpop.f32.mrf.mxu0
    %v495 = vadd.f32 0.0, %v494
    %v496 = vpop.f32.mrf.mxu0
    %497 = vmatprep.mubr.f32.mxu0 0.0
    %498 = vmatmul.mubr.f32.gmra.mxu0 %v125
    %v499 = vpop.f32.mrf.mxu0
    %v500 = vadd.f32 0.0, %v499
    %v501 = vpop.f32.mrf.mxu0
    %502 = vmatprep.mubr.f32.mxu0 0.0
    %503 = vmatmul.mubr.f32.gmra.mxu0 %v126
    %v504 = vpop.f32.mrf.mxu0
    %v505 = vadd.f32 0.0, %v504
    %v506 = vpop.f32.mrf.mxu0
    %507 = vmatprep.mubr.f32.mxu0 0.0
    %508 = vmatmul.mubr.f32.gmra.mxu0 %v127
    %v509 = vpop.f32.mrf.mxu0
    %v510 = vadd.f32 0.0, %v509
    %v511 = vpop.f32.mrf.mxu0
    %512 = vmatprep.mubr.f32.mxu0 0.0
    %513 = vmatmul.mubr.f32.gmra.mxu0 %v128
    %v514 = vpop.f32.mrf.mxu0
    %v515 = vadd.f32 0.0, %v514
    %v516 = vpop.f32.mrf.mxu0
    %517 = vmatprep.mubr.f32.mxu0 0.0
    %518 = vmatmul.mubr.f32.gmra.mxu0 %v129
    %v519 = vpop.f32.mrf.mxu0
    %v520 = vadd.f32 0.0, %v519
    %v521 = vpop.f32.mrf.mxu0
    %522 = vmatprep.mubr.f32.mxu0 0.0
    %523 = vmatmul.mubr.f32.gmra.mxu0 %v130
    %v524 = vpop.f32.mrf.mxu0
    %v525 = vadd.f32 0.0, %v524
    %v526 = vpop.f32.mrf.mxu0
    %527 = vmatprep.mubr.f32.mxu0 0.0
    %528 = vmatmul.mubr.f32.gmra.mxu0 %v131
    %v529 = vpop.f32.mrf.mxu0
    %v530 = vadd.f32 0.0, %v529
    %v531 = vpop.f32.mrf.mxu0
    %532 = vdwg.mxu0
    %v533 = vadd.f32 %v215, %v220
    %v534 = vadd.f32 %v533, %v225
    %v535 = vadd.f32 %v534, %v230
    %v536 = vadd.f32 %v535, %v235
    %v537 = vadd.f32 %v536, %v240
    %v538 = vadd.f32 %v537, %v245
    %v539 = vadd.f32 %v538, %v250
    %v540 = vadd.f32 %v539, %v255
    %v541 = vadd.f32 %v540, %v260
    %v542 = vadd.f32 %v541, %v265
    %v543 = vadd.f32 %v542, %v270
    %v544 = vadd.f32 %v543, %v275
    %v545 = vadd.f32 %v544, %v280
    %v546 = vadd.f32 %v545, %v285
    %v547 = vadd.f32 %v546, %v290
    %v548 = vadd.f32 %v547, %v295
    %v549 = vadd.f32 %v548, %v300
    %v550 = vadd.f32 %v549, %v305
    %v551 = vadd.f32 %v550, %v310
    %v552 = vadd.f32 %v551, %v315
    %v553 = vadd.f32 %v552, %v320
    %v554 = vadd.f32 %v553, %v325
    %v555 = vadd.f32 %v554, %v330
    %v556 = vadd.f32 %v555, %v335
    %v557 = vadd.f32 %v556, %v340
    %v558 = vadd.f32 %v557, %v345
    %v559 = vadd.f32 %v558, %v350
    %v560 = vadd.f32 %v559, %v355
    %v561 = vadd.f32 %v560, %v360
    %v562 = vadd.f32 %v561, %v365
    %v563 = vadd.f32 %v562, %v370
    %v564 = vadd.f32 %v563, %v375
    %v565 = vadd.f32 %v564, %v380
    %v566 = vadd.f32 %v565, %v385
    %v567 = vadd.f32 %v566, %v390
    %v568 = vadd.f32 %v567, %v395
    %v569 = vadd.f32 %v568, %v400
    %v570 = vadd.f32 %v569, %v405
    %v571 = vadd.f32 %v570, %v410
    %v572 = vadd.f32 %v571, %v415
    %v573 = vadd.f32 %v572, %v420
    %v574 = vadd.f32 %v573, %v425
    %v575 = vadd.f32 %v574, %v430
    %v576 = vadd.f32 %v575, %v435
    %v577 = vadd.f32 %v576, %v440
    %v578 = vadd.f32 %v577, %v445
    %v579 = vadd.f32 %v578, %v450
    %v580 = vadd.f32 %v579, %v455
    %v581 = vadd.f32 %v580, %v460
    %v582 = vadd.f32 %v581, %v465
    %v583 = vadd.f32 %v582, %v470
    %v584 = vadd.f32 %v583, %v475
    %v585 = vadd.f32 %v584, %v480
    %v586 = vadd.f32 %v585, %v485
    %v587 = vadd.f32 %v586, %v490
    %v588 = vadd.f32 %v587, %v495
    %v589 = vadd.f32 %v588, %v500
    %v590 = vadd.f32 %v589, %v505
    %v591 = vadd.f32 %v590, %v510
    %v592 = vadd.f32 %v591, %v515
    %v593 = vadd.f32 %v592, %v520
    %v594 = vadd.f32 %v593, %v525
    %v595 = vadd.f32 %v594, %v530
    %v596 = vrot.slane %v595, 4
    %v597 = vadd.f32 %v595, %v596
    %v598 = vrot.slane %v597, 2
    %v599 = vadd.f32 %v597, %v598
    %v600 = vrot.slane %v599, 1
    %v601 = vadd.f32 %v599, %v600
    %v602 = vmul.f32 %v601, 0.001953125
    %v603 = vsub.f32 %v215, %v602
    %v604 = vsub.f32 %v220, %v602
    %v605 = vsub.f32 %v225, %v602
    %v606 = vsub.f32 %v230, %v602
    %v607 = vsub.f32 %v235, %v602
    %v608 = vsub.f32 %v240, %v602
    %v609 = vsub.f32 %v245, %v602
    %v610 = vsub.f32 %v250, %v602
    %v611 = vsub.f32 %v255, %v602
    %v612 = vsub.f32 %v260, %v602
    %v613 = vsub.f32 %v265, %v602
    %v614 = vsub.f32 %v270, %v602
    %v615 = vsub.f32 %v275, %v602
    %v616 = vsub.f32 %v280, %v602
    %v617 = vsub.f32 %v285, %v602
    %v618 = vsub.f32 %v290, %v602
    %v619 = vsub.f32 %v295, %v602
    %v620 = vsub.f32 %v300, %v602
    %v621 = vsub.f32 %v305, %v602
    %v622 = vsub.f32 %v310, %v602
    %v623 = vsub.f32 %v315, %v602
    %v624 = vsub.f32 %v320, %v602
    %v625 = vsub.f32 %v325, %v602
    %v626 = vsub.f32 %v330, %v602
    %v627 = vsub.f32 %v335, %v602
    %v628 = vsub.f32 %v340, %v602
    %v629 = vsub.f32 %v345, %v602
    %v630 = vsub.f32 %v350, %v602
    %v631 = vsub.f32 %v355, %v602
    %v632 = vsub.f32 %v360, %v602
    %v633 = vsub.f32 %v365, %v602
    %v634 = vsub.f32 %v370, %v602
    %v635 = vsub.f32 %v375, %v602
    %v636 = vsub.f32 %v380, %v602
    %v637 = vsub.f32 %v385, %v602
    %v638 = vsub.f32 %v390, %v602
    %v639 = vsub.f32 %v395, %v602
    %v640 = vsub.f32 %v400, %v602
    %v641 = vsub.f32 %v405, %v602
    %v642 = vsub.f32 %v410, %v602
    %v643 = vsub.f32 %v415, %v602
    %v644 = vsub.f32 %v420, %v602
    %v645 = vsub.f32 %v425, %v602
    %v646 = vsub.f32 %v430, %v602
    %v647 = vsub.f32 %v435, %v602
    %v648 = vsub.f32 %v440, %v602
    %v649 = vsub.f32 %v445, %v602
    %v650 = vsub.f32 %v450, %v602
    %v651 = vsub.f32 %v455, %v602
    %v652 = vsub.f32 %v460, %v602
    %v653 = vsub.f32 %v465, %v602
    %v654 = vsub.f32 %v470, %v602
    %v655 = vsub.f32 %v475, %v602
    %v656 = vsub.f32 %v480, %v602
    %v657 = vsub.f32 %v485, %v602
    %v658 = vsub.f32 %v490, %v602
    %v659 = vsub.f32 %v495, %v602
    %v660 = vsub.f32 %v500, %v602
    %v661 = vsub.f32 %v505, %v602
    %v662 = vsub.f32 %v510, %v602
    %v663 = vsub.f32 %v515, %v602
    %v664 = vsub.f32 %v520, %v602
    %v665 = vsub.f32 %v525, %v602
    %v666 = vsub.f32 %v530, %v602
    %v667 = vmul.f32 %v603, %v603
    %v668 = vmul.f32 %v604, %v604
    %v669 = vmul.f32 %v605, %v605
    %v670 = vmul.f32 %v606, %v606
    %v671 = vmul.f32 %v607, %v607
    %v672 = vmul.f32 %v608, %v608
    %v673 = vmul.f32 %v609, %v609
    %v674 = vmul.f32 %v610, %v610
    %v675 = vmul.f32 %v611, %v611
    %v676 = vmul.f32 %v612, %v612
    %v677 = vmul.f32 %v613, %v613
    %v678 = vmul.f32 %v614, %v614
    %v679 = vmul.f32 %v615, %v615
    %v680 = vmul.f32 %v616, %v616
    %v681 = vmul.f32 %v617, %v617
    %v682 = vmul.f32 %v618, %v618
    %v683 = vmul.f32 %v619, %v619
    %v684 = vmul.f32 %v620, %v620
    %v685 = vmul.f32 %v621, %v621
    %v686 = vmul.f32 %v622, %v622
    %v687 = vmul.f32 %v623, %v623
    %v688 = vmul.f32 %v624, %v624
    %v689 = vmul.f32 %v625, %v625
    %v690 = vmul.f32 %v626, %v626
    %v691 = vmul.f32 %v627, %v627
    %v692 = vmul.f32 %v628, %v628
    %v693 = vmul.f32 %v629, %v629
    %v694 = vmul.f32 %v630, %v630
    %v695 = vmul.f32 %v631, %v631
    %v696 = vmul.f32 %v632, %v632
    %v697 = vmul.f32 %v633, %v633
    %v698 = vmul.f32 %v634, %v634
    %v699 = vmul.f32 %v635, %v635
    %v700 = vmul.f32 %v636, %v636
    %v701 = vmul.f32 %v637, %v637
    %v702 = vmul.f32 %v638, %v638
    %v703 = vmul.f32 %v639, %v639
    %v704 = vmul.f32 %v640, %v640
    %v705 = vmul.f32 %v641, %v641
    %v706 = vmul.f32 %v642, %v642
    %v707 = vmul.f32 %v643, %v643
    %v708 = vmul.f32 %v644, %v644
    %v709 = vmul.f32 %v645, %v645
    %v710 = vmul.f32 %v646, %v646
    %v711 = vmul.f32 %v647, %v647
    %v712 = vmul.f32 %v648, %v648
    %v713 = vmul.f32 %v649, %v649
    %v714 = vmul.f32 %v650, %v650
    %v715 = vmul.f32 %v651, %v651
    %v716 = vmul.f32 %v652, %v652
    %v717 = vmul.f32 %v653, %v653
    %v718 = vmul.f32 %v654, %v654
    %v719 = vmul.f32 %v655, %v655
    %v720 = vmul.f32 %v656, %v656
    %v721 = vmul.f32 %v657, %v657
    %v722 = vmul.f32 %v658, %v658
    %v723 = vmul.f32 %v659, %v659
    %v724 = vmul.f32 %v660, %v660
    %v725 = vmul.f32 %v661, %v661
    %v726 = vmul.f32 %v662, %v662
    %v727 = vmul.f32 %v663, %v663
    %v728 = vmul.f32 %v664, %v664
    %v729 = vmul.f32 %v665, %v665
    %v730 = vmul.f32 %v666, %v666
    %v731 = vadd.f32 %v667, %v668
    %v732 = vadd.f32 %v731, %v669
    %v733 = vadd.f32 %v732, %v670
    %v734 = vadd.f32 %v733, %v671
    %v735 = vadd.f32 %v734, %v672
    %v736 = vadd.f32 %v735, %v673
    %v737 = vadd.f32 %v736, %v674
    %v738 = vadd.f32 %v737, %v675
    %v739 = vadd.f32 %v738, %v676
    %v740 = vadd.f32 %v739, %v677
    %v741 = vadd.f32 %v740, %v678
    %v742 = vadd.f32 %v741, %v679
    %v743 = vadd.f32 %v742, %v680
    %v744 = vadd.f32 %v743, %v681
    %v745 = vadd.f32 %v744, %v682
    %v746 = vadd.f32 %v745, %v683
    %v747 = vadd.f32 %v746, %v684
    %v748 = vadd.f32 %v747, %v685
    %v749 = vadd.f32 %v748, %v686
    %v750 = vadd.f32 %v749, %v687
    %v751 = vadd.f32 %v750, %v688
    %v752 = vadd.f32 %v751, %v689
    %v753 = vadd.f32 %v752, %v690
    %v754 = vadd.f32 %v753, %v691
    %v755 = vadd.f32 %v754, %v692
    %v756 = vadd.f32 %v755, %v693
    %v757 = vadd.f32 %v756, %v694
    %v758 = vadd.f32 %v757, %v695
    %v759 = vadd.f32 %v758, %v696
    %v760 = vadd.f32 %v759, %v697
    %v761 = vadd.f32 %v760, %v698
    %v762 = vadd.f32 %v761, %v699
    %v763 = vadd.f32 %v762, %v700
    %v764 = vadd.f32 %v763, %v701
    %v765 = vadd.f32 %v764, %v702
    %v766 = vadd.f32 %v765, %v703
    %v767 = vadd.f32 %v766, %v704
    %v768 = vadd.f32 %v767, %v705
    %v769 = vadd.f32 %v768, %v706
    %v770 = vadd.f32 %v769, %v707
    %v771 = vadd.f32 %v770, %v708
    %v772 = vadd.f32 %v771, %v709
    %v773 = vadd.f32 %v772, %v710
    %v774 = vadd.f32 %v773, %v711
    %v775 = vadd.f32 %v774, %v712
    %v776 = vadd.f32 %v775, %v713
    %v777 = vadd.f32 %v776, %v714
    %v778 = vadd.f32 %v777, %v715
    %v779 = vadd.f32 %v778, %v716
    %v780 = vadd.f32 %v779, %v717
    %v781 = vadd.f32 %v780, %v718
    %v782 = vadd.f32 %v781, %v719
    %v783 = vadd.f32 %v782, %v720
    %v784 = vadd.f32 %v783, %v721
    %v785 = vadd.f32 %v784, %v722
    %v786 = vadd.f32 %v785, %v723
    %v787 = vadd.f32 %v786, %v724
    %v788 = vadd.f32 %v787, %v725
    %v789 = vadd.f32 %v788, %v726
    %v790 = vadd.f32 %v789, %v727
    %v791 = vadd.f32 %v790, %v728
    %v792 = vadd.f32 %v791, %v729
    %v793 = vadd.f32 %v792, %v730
    %v794 = vrot.slane %v793, 4
    %v795 = vadd.f32 %v793, %v794
    %v796 = vrot.slane %v795, 2
    %v797 = vadd.f32 %v795, %v796
    %v798 = vrot.slane %v797, 1
    %v799 = vadd.f32 %v797, %v798
    %v800 = vmul.f32 %v799, 0.001953125
    %v801 = vadd.f32 %v800, 1e-05
    %v802 = vrsqrt.pop %v801
    %v803 = vld [vmem:[%s2] sm:$0x1]
    %v804 = vmul.f32 %v802, %v803
    %v805 = vlaneseq
    %v806 = vshrl.u32 %v805, 7
    %v807 = vsub.s32 0, %v806
    %v808 = vrot.slane %v804, %v807
    %v809 = vmul.f32 %v603, %v808
    %v810 = vmul.f32 %v604, %v808
    %v811 = vmul.f32 %v605, %v808
    %v812 = vmul.f32 %v606, %v808
    %v813 = vmul.f32 %v607, %v808
    %v814 = vmul.f32 %v608, %v808
    %v815 = vmul.f32 %v609, %v808
    %v816 = vmul.f32 %v610, %v808
    %v817 = vmul.f32 %v611, %v808
    %v818 = vmul.f32 %v612, %v808
    %v819 = vmul.f32 %v613, %v808
    %v820 = vmul.f32 %v614, %v808
    %v821 = vmul.f32 %v615, %v808
    %v822 = vmul.f32 %v616, %v808
    %v823 = vmul.f32 %v617, %v808
    %v824 = vmul.f32 %v618, %v808
    %v825 = vmul.f32 %v619, %v808
    %v826 = vmul.f32 %v620, %v808
    %v827 = vmul.f32 %v621, %v808
    %v828 = vmul.f32 %v622, %v808
    %v829 = vmul.f32 %v623, %v808
    %v830 = vmul.f32 %v624, %v808
    %v831 = vmul.f32 %v625, %v808
    %v832 = vmul.f32 %v626, %v808
    %v833 = vmul.f32 %v627, %v808
    %v834 = vmul.f32 %v628, %v808
    %v835 = vmul.f32 %v629, %v808
    %v836 = vmul.f32 %v630, %v808
    %v837 = vmul.f32 %v631, %v808
    %v838 = vmul.f32 %v632, %v808
    %v839 = vmul.f32 %v633, %v808
    %v840 = vmul.f32 %v634, %v808
    %v841 = vmul.f32 %v635, %v808
    %v842 = vmul.f32 %v636, %v808
    %v843 = vmul.f32 %v637, %v808
    %v844 = vmul.f32 %v638, %v808
    %v845 = vmul.f32 %v639, %v808
    %v846 = vmul.f32 %v640, %v808
    %v847 = vmul.f32 %v641, %v808
    %v848 = vmul.f32 %v642, %v808
    %v849 = vmul.f32 %v643, %v808
    %v850 = vmul.f32 %v644, %v808
    %v851 = vmul.f32 %v645, %v808
    %v852 = vmul.f32 %v646, %v808
    %v853 = vmul.f32 %v647, %v808
    %v854 = vmul.f32 %v648, %v808
    %v855 = vmul.f32 %v649, %v808
    %v856 = vmul.f32 %v650, %v808
    %v857 = vmul.f32 %v651, %v808
    %v858 = vmul.f32 %v652, %v808
    %v859 = vmul.f32 %v653, %v808
    %v860 = vmul.f32 %v654, %v808
    %v861 = vmul.f32 %v655, %v808
    %v862 = vmul.f32 %v656, %v808
    %v863 = vmul.f32 %v657, %v808
    %v864 = vmul.f32 %v658, %v808
    %v865 = vmul.f32 %v659, %v808
    %v866 = vmul.f32 %v660, %v808
    %v867 = vmul.f32 %v661, %v808
    %v868 = vmul.f32 %v662, %v808
    %v869 = vmul.f32 %v663, %v808
    %v870 = vmul.f32 %v664, %v808
    %v871 = vmul.f32 %v665, %v808
    %v872 = vmul.f32 %v666, %v808
    %v873 = vld [vmem:[%s3] sm:$0x1]
    %v875 = vlaneseq
    %v876 = vshrl.u32 %v875, 7
    %v877 = vsub.s32 0, %v876
    %v878 = vrot.slane %v873, %v877
    %v880 = vadd.f32 %v809, %v878
    %v881 = vadd.f32 %v810, %v878
    %v882 = vadd.f32 %v811, %v878
    %v883 = vadd.f32 %v812, %v878
    %v884 = vadd.f32 %v813, %v878
    %v885 = vadd.f32 %v814, %v878
    %v886 = vadd.f32 %v815, %v878
    %v887 = vadd.f32 %v816, %v878
    %v888 = vadd.f32 %v817, %v878
    %v889 = vadd.f32 %v818, %v878
    %v890 = vadd.f32 %v819, %v878
    %v891 = vadd.f32 %v820, %v878
    %v892 = vadd.f32 %v821, %v878
    %v893 = vadd.f32 %v822, %v878
    %v894 = vadd.f32 %v823, %v878
    %v895 = vadd.f32 %v824, %v878
    %v896 = vadd.f32 %v825, %v878
    %v897 = vadd.f32 %v826, %v878
    %v898 = vadd.f32 %v827, %v878
    %v899 = vadd.f32 %v828, %v878
    %v900 = vadd.f32 %v829, %v878
    %v901 = vadd.f32 %v830, %v878
    %v902 = vadd.f32 %v831, %v878
    %v903 = vadd.f32 %v832, %v878
    %v904 = vadd.f32 %v833, %v878
    %v905 = vadd.f32 %v834, %v878
    %v906 = vadd.f32 %v835, %v878
    %v907 = vadd.f32 %v836, %v878
    %v908 = vadd.f32 %v837, %v878
    %v909 = vadd.f32 %v838, %v878
    %v910 = vadd.f32 %v839, %v878
    %v911 = vadd.f32 %v840, %v878
    %v912 = vadd.f32 %v841, %v878
    %v913 = vadd.f32 %v842, %v878
    %v914 = vadd.f32 %v843, %v878
    %v915 = vadd.f32 %v844, %v878
    %v916 = vadd.f32 %v845, %v878
    %v917 = vadd.f32 %v846, %v878
    %v918 = vadd.f32 %v847, %v878
    %v919 = vadd.f32 %v848, %v878
    %v920 = vadd.f32 %v849, %v878
    %v921 = vadd.f32 %v850, %v878
    %v922 = vadd.f32 %v851, %v878
    %v923 = vadd.f32 %v852, %v878
    %v924 = vadd.f32 %v853, %v878
    %v925 = vadd.f32 %v854, %v878
    %v926 = vadd.f32 %v855, %v878
    %v927 = vadd.f32 %v856, %v878
    %v928 = vadd.f32 %v857, %v878
    %v929 = vadd.f32 %v858, %v878
    %v930 = vadd.f32 %v859, %v878
    %v931 = vadd.f32 %v860, %v878
    %v932 = vadd.f32 %v861, %v878
    %v933 = vadd.f32 %v862, %v878
    %v934 = vadd.f32 %v863, %v878
    %v935 = vadd.f32 %v864, %v878
    %v936 = vadd.f32 %v865, %v878
    %v937 = vadd.f32 %v866, %v878
    %v938 = vadd.f32 %v867, %v878
    %v939 = vadd.f32 %v868, %v878
    %v940 = vadd.f32 %v869, %v878
    %v941 = vadd.f32 %v870, %v878
    %v942 = vadd.f32 %v871, %v878
    %v943 = vadd.f32 %v872, %v878
    %v944 = vmax.f32 %v880, 0.0
    %v945 = vmax.f32 %v881, 0.0
    %v946 = vmax.f32 %v882, 0.0
    %v947 = vmax.f32 %v883, 0.0
    %v948 = vmax.f32 %v884, 0.0
    %v949 = vmax.f32 %v885, 0.0
    %v950 = vmax.f32 %v886, 0.0
    %v951 = vmax.f32 %v887, 0.0
    %v952 = vmax.f32 %v888, 0.0
    %v953 = vmax.f32 %v889, 0.0
    %v954 = vmax.f32 %v890, 0.0
    %v955 = vmax.f32 %v891, 0.0
    %v956 = vmax.f32 %v892, 0.0
    %v957 = vmax.f32 %v893, 0.0
    %v958 = vmax.f32 %v894, 0.0
    %v959 = vmax.f32 %v895, 0.0
    %v960 = vmax.f32 %v896, 0.0
    %v961 = vmax.f32 %v897, 0.0
    %v962 = vmax.f32 %v898, 0.0
    %v963 = vmax.f32 %v899, 0.0
    %v964 = vmax.f32 %v900, 0.0
    %v965 = vmax.f32 %v901, 0.0
    %v966 = vmax.f32 %v902, 0.0
    %v967 = vmax.f32 %v903, 0.0
    %v968 = vmax.f32 %v904, 0.0
    %v969 = vmax.f32 %v905, 0.0
    %v970 = vmax.f32 %v906, 0.0
    %v971 = vmax.f32 %v907, 0.0
    %v972 = vmax.f32 %v908, 0.0
    %v973 = vmax.f32 %v909, 0.0
    %v974 = vmax.f32 %v910, 0.0
    %v975 = vmax.f32 %v911, 0.0
    %v976 = vmax.f32 %v912, 0.0
    %v977 = vmax.f32 %v913, 0.0
    %v978 = vmax.f32 %v914, 0.0
    %v979 = vmax.f32 %v915, 0.0
    %v980 = vmax.f32 %v916, 0.0
    %v981 = vmax.f32 %v917, 0.0
    %v982 = vmax.f32 %v918, 0.0
    %v983 = vmax.f32 %v919, 0.0
    %v984 = vmax.f32 %v920, 0.0
    %v985 = vmax.f32 %v921, 0.0
    %v986 = vmax.f32 %v922, 0.0
    %v987 = vmax.f32 %v923, 0.0
    %v988 = vmax.f32 %v924, 0.0
    %v989 = vmax.f32 %v925, 0.0
    %v990 = vmax.f32 %v926, 0.0
    %v991 = vmax.f32 %v927, 0.0
    %v992 = vmax.f32 %v928, 0.0
    %v993 = vmax.f32 %v929, 0.0
    %v994 = vmax.f32 %v930, 0.0
    %v995 = vmax.f32 %v931, 0.0
    %v996 = vmax.f32 %v932, 0.0
    %v997 = vmax.f32 %v933, 0.0
    %v998 = vmax.f32 %v934, 0.0
    %v999 = vmax.f32 %v935, 0.0
    %v1000 = vmax.f32 %v936, 0.0
    %v1001 = vmax.f32 %v937, 0.0
    %v1002 = vmax.f32 %v938, 0.0
    %v1003 = vmax.f32 %v939, 0.0
    %v1004 = vmax.f32 %v940, 0.0
    %v1005 = vmax.f32 %v941, 0.0
    %v1006 = vmax.f32 %v942, 0.0
    %v1007 = vmax.f32 %v943, 0.0
    %1008 = vst [vmem:[#allocation2] sm:$0xff] 0.0
    %1009 = vst [vmem:[#allocation2 + $0x8] sm:$0xff] 0.0
    %1010 = vst [vmem:[#allocation2 + $0x10] sm:$0x3] 0.0
    %1011 = vst [vmem:[#allocation2 + $0x1b0] sm:$0xff] 0.0
    %1012 = vst [vmem:[#allocation2 + $0x1b8] sm:$0xff] 0.0
    %1013 = vst [vmem:[#allocation2 + $0x1c0] sm:$0x3] 0.0
    %s1014 = scalar_lea.vmem [#allocation2], 408
    %1015 = vst [vmem:[%s1014] sm:$0xff] 0.0
    %1016 = vst [vmem:[%s1014 + $0x8] sm:$0xff] 0.0
    %1017 = vst [vmem:[%s1014 + $0x10] sm:$0x3] 0.0
    %1018 = vst [vmem:[%s1014 + $0x1b0] sm:$0xff] 0.0
    %1019 = vst [vmem:[%s1014 + $0x1b8] sm:$0xff] 0.0
    %1020 = vst [vmem:[%s1014 + $0x1c0] sm:$0x3] 0.0
    %vm1085 = vcmask 1040384
    %v1086 = vrot.slane %v944, 7
    %v1087 = vrot.slane %v945, 7
    %v1088 = vsel %vm1085, %v1086, %v1087
    %v1089 = vrot.slane %v946, 7
    %v1090 = vrot.slane %v947, 7
    %v1091 = vsel %vm1085, %v1089, %v1090
    %v1092 = vrot.slane %v948, 7
    %v1093 = vrot.slane %v949, 7
    %v1094 = vsel %vm1085, %v1092, %v1093
    %v1095 = vrot.slane %v950, 7
    %v1096 = vrot.slane %v951, 7
    %v1097 = vsel %vm1085, %v1095, %v1096
    %v1098 = vrot.slane %v952, 7
    %v1099 = vrot.slane %v953, 7
    %v1100 = vsel %vm1085, %v1098, %v1099
    %v1101 = vrot.slane %v954, 7
    %v1102 = vrot.slane %v955, 7
    %v1103 = vsel %vm1085, %v1101, %v1102
    %v1104 = vrot.slane %v956, 7
    %v1105 = vrot.slane %v957, 7
    %v1106 = vsel %vm1085, %v1104, %v1105
    %v1107 = vrot.slane %v958, 7
    %v1108 = vrot.slane %v959, 7
    %v1109 = vsel %vm1085, %v1107, %v1108
    %v1110 = vrot.slane %v960, 7
    %v1111 = vrot.slane %v961, 7
    %v1112 = vsel %vm1085, %v1110, %v1111
    %v1113 = vrot.slane %v962, 7
    %v1114 = vrot.slane %v963, 7
    %v1115 = vsel %vm1085, %v1113, %v1114
    %v1116 = vrot.slane %v964, 7
    %v1117 = vrot.slane %v965, 7
    %v1118 = vsel %vm1085, %v1116, %v1117
    %v1119 = vrot.slane %v966, 7
    %v1120 = vrot.slane %v967, 7
    %v1121 = vsel %vm1085, %v1119, %v1120
    %v1122 = vrot.slane %v968, 7
    %v1123 = vrot.slane %v969, 7
    %v1124 = vsel %vm1085, %v1122, %v1123
    %v1125 = vrot.slane %v970, 7
    %v1126 = vrot.slane %v971, 7
    %v1127 = vsel %vm1085, %v1125, %v1126
    %v1128 = vrot.slane %v972, 7
    %v1129 = vrot.slane %v973, 7
    %v1130 = vsel %vm1085, %v1128, %v1129
    %v1131 = vrot.slane %v974, 7
    %v1132 = vrot.slane %v975, 7
    %v1133 = vsel %vm1085, %v1131, %v1132
    %v1134 = vrot.slane %v976, 7
    %v1135 = vrot.slane %v977, 7
    %v1136 = vsel %vm1085, %v1134, %v1135
    %v1137 = vrot.slane %v978, 7
    %v1138 = vrot.slane %v979, 7
    %v1139 = vsel %vm1085, %v1137, %v1138
    %v1140 = vrot.slane %v980, 7
    %v1141 = vrot.slane %v981, 7
    %v1142 = vsel %vm1085, %v1140, %v1141
    %v1143 = vrot.slane %v982, 7
    %v1144 = vrot.slane %v983, 7
    %v1145 = vsel %vm1085, %v1143, %v1144
    %v1146 = vrot.slane %v984, 7
    %v1147 = vrot.slane %v985, 7
    %v1148 = vsel %vm1085, %v1146, %v1147
    %v1149 = vrot.slane %v986, 7
    %v1150 = vrot.slane %v987, 7
    %v1151 = vsel %vm1085, %v1149, %v1150
    %v1152 = vrot.slane %v988, 7
    %v1153 = vrot.slane %v989, 7
    %v1154 = vsel %vm1085, %v1152, %v1153
    %v1155 = vrot.slane %v990, 7
    %v1156 = vrot.slane %v991, 7
    %v1157 = vsel %vm1085, %v1155, %v1156
    %v1158 = vrot.slane %v992, 7
    %v1159 = vrot.slane %v993, 7
    %v1160 = vsel %vm1085, %v1158, %v1159
    %v1161 = vrot.slane %v994, 7
    %v1162 = vrot.slane %v995, 7
    %v1163 = vsel %vm1085, %v1161, %v1162
    %v1164 = vrot.slane %v996, 7
    %v1165 = vrot.slane %v997, 7
    %v1166 = vsel %vm1085, %v1164, %v1165
    %v1167 = vrot.slane %v998, 7
    %v1168 = vrot.slane %v999, 7
    %v1169 = vsel %vm1085, %v1167, %v1168
    %v1170 = vrot.slane %v1000, 7
    %v1171 = vrot.slane %v1001, 7
    %v1172 = vsel %vm1085, %v1170, %v1171
    %v1173 = vrot.slane %v1002, 7
    %v1174 = vrot.slane %v1003, 7
    %v1175 = vsel %vm1085, %v1173, %v1174
    %v1176 = vrot.slane %v1004, 7
    %v1177 = vrot.slane %v1005, 7
    %v1178 = vsel %vm1085, %v1176, %v1177
    %v1179 = vrot.slane %v1006, 7
    %v1180 = vrot.slane %v1007, 7
    %v1181 = vsel %vm1085, %v1179, %v1180
    %v1278 = vsel %vm1085, 0.0, %v1086
    %v1279 = vsel %vm1085, 0.0, %v1089
    %v1280 = vsel %vm1085, 0.0, %v1092
    %v1281 = vsel %vm1085, 0.0, %v1095
    %v1282 = vsel %vm1085, 0.0, %v1098
    %v1283 = vsel %vm1085, 0.0, %v1101
    %v1284 = vsel %vm1085, 0.0, %v1104
    %v1285 = vsel %vm1085, 0.0, %v1107
    %v1286 = vsel %vm1085, 0.0, %v1110
    %v1287 = vsel %vm1085, 0.0, %v1113
    %v1288 = vsel %vm1085, 0.0, %v1116
    %v1289 = vsel %vm1085, 0.0, %v1119
    %v1290 = vsel %vm1085, 0.0, %v1122
    %v1291 = vsel %vm1085, 0.0, %v1125
    %v1292 = vsel %vm1085, 0.0, %v1128
    %v1293 = vsel %vm1085, 0.0, %v1131
    %v1294 = vsel %vm1085, 0.0, %v1134
    %v1295 = vsel %vm1085, 0.0, %v1137
    %v1296 = vsel %vm1085, 0.0, %v1140
    %v1297 = vsel %vm1085, 0.0, %v1143
    %v1298 = vsel %vm1085, 0.0, %v1146
    %v1299 = vsel %vm1085, 0.0, %v1149
    %v1300 = vsel %vm1085, 0.0, %v1152
    %v1301 = vsel %vm1085, 0.0, %v1155
    %v1302 = vsel %vm1085, 0.0, %v1158
    %v1303 = vsel %vm1085, 0.0, %v1161
    %v1304 = vsel %vm1085, 0.0, %v1164
    %v1305 = vsel %vm1085, 0.0, %v1167
    %v1306 = vsel %vm1085, 0.0, %v1170
    %v1307 = vsel %vm1085, 0.0, %v1173
    %v1308 = vsel %vm1085, 0.0, %v1176
    %v1309 = vsel %vm1085, 0.0, %v1179
    %v1310 = vsel %vm1085, %v1087, 0.0
    %v1311 = vsel %vm1085, %v1090, 0.0
    %v1312 = vsel %vm1085, %v1093, 0.0
    %v1313 = vsel %vm1085, %v1096, 0.0
    %v1314 = vsel %vm1085, %v1099, 0.0
    %v1315 = vsel %vm1085, %v1102, 0.0
    %v1316 = vsel %vm1085, %v1105, 0.0
    %v1317 = vsel %vm1085, %v1108, 0.0
    %v1318 = vsel %vm1085, %v1111, 0.0
    %v1319 = vsel %vm1085, %v1114, 0.0
    %v1320 = vsel %vm1085, %v1117, 0.0
    %v1321 = vsel %vm1085, %v1120, 0.0
    %v1322 = vsel %vm1085, %v1123, 0.0
    %v1323 = vsel %vm1085, %v1126, 0.0
    %v1324 = vsel %vm1085, %v1129, 0.0
    %v1325 = vsel %vm1085, %v1132, 0.0
    %v1326 = vsel %vm1085, %v1135, 0.0
    %v1327 = vsel %vm1085, %v1138, 0.0
    %v1328 = vsel %vm1085, %v1141, 0.0
    %v1329 = vsel %vm1085, %v1144, 0.0
    %v1330 = vsel %vm1085, %v1147, 0.0
    %v1331 = vsel %vm1085, %v1150, 0.0
    %v1332 = vsel %vm1085, %v1153, 0.0
    %v1333 = vsel %vm1085, %v1156, 0.0
    %v1334 = vsel %vm1085, %v1159, 0.0
    %v1335 = vsel %vm1085, %v1162, 0.0
    %v1336 = vsel %vm1085, %v1165, 0.0
    %v1337 = vsel %vm1085, %v1168, 0.0
    %v1338 = vsel %vm1085, %v1171, 0.0
    %v1339 = vsel %vm1085, %v1174, 0.0
    %v1340 = vsel %vm1085, %v1177, 0.0
    %v1341 = vsel %vm1085, %v1180, 0.0
    %s1342 = scalar_lea.vmem [#allocation2], 24
    %1343 = vst [vmem:[%s1342] sm:$0xff] %v1278
    %1344 = vst [vmem:[%s1342 + $0x8] sm:$0xff] %v1088
    %1345 = vst [vmem:[%s1342 + $0x10] sm:$0x3] %v1310
    %1346 = vst [vmem:[%s1342 + $0x18] sm:$0xff] %v1279
    %1347 = vst [vmem:[%s1342 + $0x20] sm:$0xff] %v1091
    %1348 = vst [vmem:[%s1342 + $0x28] sm:$0x3] %v1311
    %1349 = vst [vmem:[%s1342 + $0x30] sm:$0xff] %v1280
    %1350 = vst [vmem:[%s1342 + $0x38] sm:$0xff] %v1094
    %1351 = vst [vmem:[%s1342 + $0x40] sm:$0x3] %v1312
    %1352 = vst [vmem:[%s1342 + $0x48] sm:$0xff] %v1281
    %1353 = vst [vmem:[%s1342 + $0x50] sm:$0xff] %v1097
    %1354 = vst [vmem:[%s1342 + $0x58] sm:$0x3] %v1313
    %1355 = vst [vmem:[%s1342 + $0x60] sm:$0xff] %v1282
    %1356 = vst [vmem:[%s1342 + $0x68] sm:$0xff] %v1100
    %1357 = vst [vmem:[%s1342 + $0x70] sm:$0x3] %v1314
    %1358 = vst [vmem:[%s1342 + $0x78] sm:$0xff] %v1283
    %1359 = vst [vmem:[%s1342 + $0x80] sm:$0xff] %v1103
    %1360 = vst [vmem:[%s1342 + $0x88] sm:$0x3] %v1315
    %1361 = vst [vmem:[%s1342 + $0x90] sm:$0xff] %v1284
    %1362 = vst [vmem:[%s1342 + $0x98] sm:$0xff] %v1106
    %1363 = vst [vmem:[%s1342 + $0xa0] sm:$0x3] %v1316
    %1364 = vst [vmem:[%s1342 + $0xa8] sm:$0xff] %v1285
    %1365 = vst [vmem:[%s1342 + $0xb0] sm:$0xff] %v1109
    %1366 = vst [vmem:[%s1342 + $0xb8] sm:$0x3] %v1317
    %1367 = vst [vmem:[%s1342 + $0xc0] sm:$0xff] %v1286
    %1368 = vst [vmem:[%s1342 + $0xc8] sm:$0xff] %v1112
    %1369 = vst [vmem:[%s1342 + $0xd0] sm:$0x3] %v1318
    %1370 = vst [vmem:[%s1342 + $0xd8] sm:$0xff] %v1287
    %1371 = vst [vmem:[%s1342 + $0xe0] sm:$0xff] %v1115
    %1372 = vst [vmem:[%s1342 + $0xe8] sm:$0x3] %v1319
    %1373 = vst [vmem:[%s1342 + $0xf0] sm:$0xff] %v1288
    %1374 = vst [vmem:[%s1342 + $0xf8] sm:$0xff] %v1118
    %1375 = vst [vmem:[%s1342 + $0x100] sm:$0x3] %v1320
    %1376 = vst [vmem:[%s1342 + $0x108] sm:$0xff] %v1289
    %1377 = vst [vmem:[%s1342 + $0x110] sm:$0xff] %v1121
    %1378 = vst [vmem:[%s1342 + $0x118] sm:$0x3] %v1321
    %1379 = vst [vmem:[%s1342 + $0x120] sm:$0xff] %v1290
    %1380 = vst [vmem:[%s1342 + $0x128] sm:$0xff] %v1124
    %1381 = vst [vmem:[%s1342 + $0x130] sm:$0x3] %v1322
    %1382 = vst [vmem:[%s1342 + $0x138] sm:$0xff] %v1291
    %1383 = vst [vmem:[%s1342 + $0x140] sm:$0xff] %v1127
    %1384 = vst [vmem:[%s1342 + $0x148] sm:$0x3] %v1323
    %1385 = vst [vmem:[%s1342 + $0x150] sm:$0xff] %v1292
    %1386 = vst [vmem:[%s1342 + $0x158] sm:$0xff] %v1130
    %1387 = vst [vmem:[%s1342 + $0x160] sm:$0x3] %v1324
    %1388 = vst [vmem:[%s1342 + $0x168] sm:$0xff] %v1293
    %1389 = vst [vmem:[%s1342 + $0x170] sm:$0xff] %v1133
    %1390 = vst [vmem:[%s1342 + $0x178] sm:$0x3] %v1325
    %1391 = vst [vmem:[%s1342 + $0x1b0] sm:$0xff] %v1294
    %1392 = vst [vmem:[%s1342 + $0x1b8] sm:$0xff] %v1136
    %1393 = vst [vmem:[%s1342 + $0x1c0] sm:$0x3] %v1326
    %1394 = vst [vmem:[%s1342 + $0x1c8] sm:$0xff] %v1295
    %1395 = vst [vmem:[%s1342 + $0x1d0] sm:$0xff] %v1139
    %1396 = vst [vmem:[%s1342 + $0x1d8] sm:$0x3] %v1327
    %1397 = vst [vmem:[%s1342 + $0x1e0] sm:$0xff] %v1296
    %1398 = vst [vmem:[%s1342 + $0x1e8] sm:$0xff] %v1142
    %1399 = vst [vmem:[%s1342 + $0x1f0] sm:$0x3] %v1328
    %1400 = vst [vmem:[%s1342 + $0x1f8] sm:$0xff] %v1297
    %1401 = vst [vmem:[%s1342 + $0x200] sm:$0xff] %v1145
    %1402 = vst [vmem:[%s1342 + $0x208] sm:$0x3] %v1329
    %1403 = vst [vmem:[%s1342 + $0x210] sm:$0xff] %v1298
    %1404 = vst [vmem:[%s1342 + $0x218] sm:$0xff] %v1148
    %1405 = vst [vmem:[%s1342 + $0x220] sm:$0x3] %v1330
    %1406 = vst [vmem:[%s1342 + $0x228] sm:$0xff] %v1299
    %1407 = vst [vmem:[%s1342 + $0x230] sm:$0xff] %v1151
    %1408 = vst [vmem:[%s1342 + $0x238] sm:$0x3] %v1331
    %1409 = vst [vmem:[%s1342 + $0x240] sm:$0xff] %v1300
    %1410 = vst [vmem:[%s1342 + $0x248] sm:$0xff] %v1154
    %1411 = vst [vmem:[%s1342 + $0x250] sm:$0x3] %v1332
    %1412 = vst [vmem:[%s1342 + $0x258] sm:$0xff] %v1301
    %1413 = vst [vmem:[%s1342 + $0x260] sm:$0xff] %v1157
    %1414 = vst [vmem:[%s1342 + $0x268] sm:$0x3] %v1333
    %1415 = vst [vmem:[%s1342 + $0x270] sm:$0xff] %v1302
    %1416 = vst [vmem:[%s1342 + $0x278] sm:$0xff] %v1160
    %1417 = vst [vmem:[%s1342 + $0x280] sm:$0x3] %v1334
    %1418 = vst [vmem:[%s1342 + $0x288] sm:$0xff] %v1303
    %1419 = vst [vmem:[%s1342 + $0x290] sm:$0xff] %v1163
    %1420 = vst [vmem:[%s1342 + $0x298] sm:$0x3] %v1335
    %1421 = vst [vmem:[%s1342 + $0x2a0] sm:$0xff] %v1304
    %1422 = vst [vmem:[%s1342 + $0x2a8] sm:$0xff] %v1166
    %1423 = vst [vmem:[%s1342 + $0x2b0] sm:$0x3] %v1336
    %1424 = vst [vmem:[%s1342 + $0x2b8] sm:$0xff] %v1305
    %1425 = vst [vmem:[%s1342 + $0x2c0] sm:$0xff] %v1169
    %1426 = vst [vmem:[%s1342 + $0x2c8] sm:$0x3] %v1337
    %1427 = vst [vmem:[%s1342 + $0x2d0] sm:$0xff] %v1306
    %1428 = vst [vmem:[%s1342 + $0x2d8] sm:$0xff] %v1172
    %1429 = vst [vmem:[%s1342 + $0x2e0] sm:$0x3] %v1338
    %1430 = vst [vmem:[%s1342 + $0x2e8] sm:$0xff] %v1307
    %1431 = vst [vmem:[%s1342 + $0x2f0] sm:$0xff] %v1175
    %1432 = vst [vmem:[%s1342 + $0x2f8] sm:$0x3] %v1339
    %1433 = vst [vmem:[%s1342 + $0x300] sm:$0xff] %v1308
    %1434 = vst [vmem:[%s1342 + $0x308] sm:$0xff] %v1178
    %1435 = vst [vmem:[%s1342 + $0x310] sm:$0x3] %v1340
    %1436 = vst [vmem:[%s1342 + $0x318] sm:$0xff] %v1309
    %1437 = vst [vmem:[%s1342 + $0x320] sm:$0xff] %v1181
    %1438 = vst [vmem:[%s1342 + $0x328] sm:$0x3] %v1341
    %v1439 = vld [vmem:[#allocation2] sm:$0xff]
    %v1440 = vld [vmem:[#allocation2 + $0x8] sm:$0xff]
    %v1441 = vld [vmem:[#allocation2 + $0x10] sm:$0x3]
    %v1442 = vld [vmem:[#allocation2 + $0x18] sm:$0xff]
    %v1443 = vld [vmem:[#allocation2 + $0x20] sm:$0xff]
    %v1444 = vld [vmem:[#allocation2 + $0x28] sm:$0x3]
    %v1445 = vld [vmem:[#allocation2 + $0x30] sm:$0xff]
    %v1446 = vld [vmem:[#allocation2 + $0x38] sm:$0xff]
    %v1447 = vld [vmem:[#allocation2 + $0x40] sm:$0x3]
    %v1448 = vld [vmem:[#allocation2 + $0x48] sm:$0xff]
    %v1449 = vld [vmem:[#allocation2 + $0x50] sm:$0xff]
    %v1450 = vld [vmem:[#allocation2 + $0x58] sm:$0x3]
    %v1451 = vld [vmem:[#allocation2 + $0x60] sm:$0xff]
    %v1452 = vld [vmem:[#allocation2 + $0x68] sm:$0xff]
    %v1453 = vld [vmem:[#allocation2 + $0x70] sm:$0x3]
    %v1454 = vld [vmem:[#allocation2 + $0x78] sm:$0xff]
    %v1455 = vld [vmem:[#allocation2 + $0x80] sm:$0xff]
    %v1456 = vld [vmem:[#allocation2 + $0x88] sm:$0x3]
    %v1457 = vld [vmem:[#allocation2 + $0x90] sm:$0xff]
    %v1458 = vld [vmem:[#allocation2 + $0x98] sm:$0xff]
    %v1459 = vld [vmem:[#allocation2 + $0xa0] sm:$0x3]
    %v1460 = vld [vmem:[#allocation2 + $0xa8] sm:$0xff]
    %v1461 = vld [vmem:[#allocation2 + $0xb0] sm:$0xff]
    %v1462 = vld [vmem:[#allocation2 + $0xb8] sm:$0x3]
    %v1463 = vld [vmem:[#allocation2 + $0xc0] sm:$0xff]
    %v1464 = vld [vmem:[#allocation2 + $0xc8] sm:$0xff]
    %v1465 = vld [vmem:[#allocation2 + $0xd0] sm:$0x3]
    %v1466 = vld [vmem:[#allocation2 + $0xd8] sm:$0xff]
    %v1467 = vld [vmem:[#allocation2 + $0xe0] sm:$0xff]
    %v1468 = vld [vmem:[#allocation2 + $0xe8] sm:$0x3]
    %v1469 = vld [vmem:[#allocation2 + $0xf0] sm:$0xff]
    %v1470 = vld [vmem:[#allocation2 + $0xf8] sm:$0xff]
    %v1471 = vld [vmem:[#allocation2 + $0x100] sm:$0x3]
    %v1472 = vld [vmem:[#allocation2 + $0x108] sm:$0xff]
    %v1473 = vld [vmem:[#allocation2 + $0x110] sm:$0xff]
    %v1474 = vld [vmem:[#allocation2 + $0x118] sm:$0x3]
    %v1475 = vld [vmem:[#allocation2 + $0x120] sm:$0xff]
    %v1476 = vld [vmem:[#allocation2 + $0x128] sm:$0xff]
    %v1477 = vld [vmem:[#allocation2 + $0x130] sm:$0x3]
    %v1478 = vld [vmem:[#allocation2 + $0x138] sm:$0xff]
    %v1479 = vld [vmem:[#allocation2 + $0x140] sm:$0xff]
    %v1480 = vld [vmem:[#allocation2 + $0x148] sm:$0x3]
    %v1481 = vld [vmem:[#allocation2 + $0x150] sm:$0xff]
    %v1482 = vld [vmem:[#allocation2 + $0x158] sm:$0xff]
    %v1483 = vld [vmem:[#allocation2 + $0x160] sm:$0x3]
    %v1484 = vld [vmem:[#allocation2 + $0x168] sm:$0xff]
    %v1485 = vld [vmem:[#allocation2 + $0x170] sm:$0xff]
    %v1486 = vld [vmem:[#allocation2 + $0x178] sm:$0x3]
    %v1487 = vld [vmem:[#allocation2 + $0x1b0] sm:$0xff]
    %v1488 = vld [vmem:[#allocation2 + $0x1b8] sm:$0xff]
    %v1489 = vld [vmem:[#allocation2 + $0x1c0] sm:$0x3]
    %v1490 = vld [vmem:[#allocation2 + $0x1c8] sm:$0xff]
    %v1491 = vld [vmem:[#allocation2 + $0x1d0] sm:$0xff]
    %v1492 = vld [vmem:[#allocation2 + $0x1d8] sm:$0x3]
    %v1493 = vld [vmem:[#allocation2 + $0x1e0] sm:$0xff]
    %v1494 = vld [vmem:[#allocation2 + $0x1e8] sm:$0xff]
    %v1495 = vld [vmem:[#allocation2 + $0x1f0] sm:$0x3]
    %v1496 = vld [vmem:[#allocation2 + $0x1f8] sm:$0xff]
    %v1497 = vld [vmem:[#allocation2 + $0x200] sm:$0xff]
    %v1498 = vld [vmem:[#allocation2 + $0x208] sm:$0x3]
    %v1499 = vld [vmem:[#allocation2 + $0x210] sm:$0xff]
    %v1500 = vld [vmem:[#allocation2 + $0x218] sm:$0xff]
    %v1501 = vld [vmem:[#allocation2 + $0x220] sm:$0x3]
    %v1502 = vld [vmem:[#allocation2 + $0x228] sm:$0xff]
    %v1503 = vld [vmem:[#allocation2 + $0x230] sm:$0xff]
    %v1504 = vld [vmem:[#allocation2 + $0x238] sm:$0x3]
    %v1505 = vld [vmem:[#allocation2 + $0x240] sm:$0xff]
    %v1506 = vld [vmem:[#allocation2 + $0x248] sm:$0xff]
    %v1507 = vld [vmem:[#allocation2 + $0x250] sm:$0x3]
    %v1508 = vld [vmem:[#allocation2 + $0x258] sm:$0xff]
    %v1509 = vld [vmem:[#allocation2 + $0x260] sm:$0xff]
    %v1510 = vld [vmem:[#allocation2 + $0x268] sm:$0x3]
    %v1511 = vld [vmem:[#allocation2 + $0x270] sm:$0xff]
    %v1512 = vld [vmem:[#allocation2 + $0x278] sm:$0xff]
    %v1513 = vld [vmem:[#allocation2 + $0x280] sm:$0x3]
    %v1514 = vld [vmem:[#allocation2 + $0x288] sm:$0xff]
    %v1515 = vld [vmem:[#allocation2 + $0x290] sm:$0xff]
    %v1516 = vld [vmem:[#allocation2 + $0x298] sm:$0x3]
    %v1517 = vld [vmem:[#allocation2 + $0x2a0] sm:$0xff]
    %v1518 = vld [vmem:[#allocation2 + $0x2a8] sm:$0xff]
    %v1519 = vld [vmem:[#allocation2 + $0x2b0] sm:$0x3]
    %v1520 = vld [vmem:[#allocation2 + $0x2b8] sm:$0xff]
    %v1521 = vld [vmem:[#allocation2 + $0x2c0] sm:$0xff]
    %v1522 = vld [vmem:[#allocation2 + $0x2c8] sm:$0x3]
    %v1523 = vld [vmem:[#allocation2 + $0x2d0] sm:$0xff]
    %v1524 = vld [vmem:[#allocation2 + $0x2d8] sm:$0xff]
    %v1525 = vld [vmem:[#allocation2 + $0x2e0] sm:$0x3]
    %v1526 = vld [vmem:[#allocation2 + $0x2e8] sm:$0xff]
    %v1527 = vld [vmem:[#allocation2 + $0x2f0] sm:$0xff]
    %v1528 = vld [vmem:[#allocation2 + $0x2f8] sm:$0x3]
    %v1529 = vld [vmem:[#allocation2 + $0x300] sm:$0xff]
    %v1530 = vld [vmem:[#allocation2 + $0x308] sm:$0xff]
    %v1531 = vld [vmem:[#allocation2 + $0x310] sm:$0x3]
    %v1532 = vld [vmem:[#allocation2 + $0x318] sm:$0xff]
    %v1533 = vld [vmem:[#allocation2 + $0x320] sm:$0xff]
    %v1534 = vld [vmem:[#allocation2 + $0x328] sm:$0x3]
    %vm1631 = vcmask 1046528
    %v1632 = vrot.slane %v1439, 1
    %v1633 = vrot.slane %v1440, 1
    %v1634 = vsel %vm1631, %v1632, %v1633
    %v1635 = vrot.slane %v1441, 1
    %v1636 = vsel %vm1631, %v1633, %v1635
    %v1637 = vrot.slane %v1442, 1
    %v1638 = vrot.slane %v1443, 1
    %v1639 = vsel %vm1631, %v1637, %v1638
    %v1640 = vrot.slane %v1444, 1
    %v1641 = vsel %vm1631, %v1638, %v1640
    %v1642 = vrot.slane %v1445, 1
    %v1643 = vrot.slane %v1446, 1
    %v1644 = vsel %vm1631, %v1642, %v1643
    %v1645 = vrot.slane %v1447, 1
    %v1646 = vsel %vm1631, %v1643, %v1645
    %v1647 = vrot.slane %v1448, 1
    %v1648 = vrot.slane %v1449, 1
    %v1649 = vsel %vm1631, %v1647, %v1648
    %v1650 = vrot.slane %v1450, 1
    %v1651 = vsel %vm1631, %v1648, %v1650
    %v1652 = vrot.slane %v1451, 1
    %v1653 = vrot.slane %v1452, 1
    %v1654 = vsel %vm1631, %v1652, %v1653
    %v1655 = vrot.slane %v1453, 1
    %v1656 = vsel %vm1631, %v1653, %v1655
    %v1657 = vrot.slane %v1454, 1
    %v1658 = vrot.slane %v1455, 1
    %v1659 = vsel %vm1631, %v1657, %v1658
    %v1660 = vrot.slane %v1456, 1
    %v1661 = vsel %vm1631, %v1658, %v1660
    %v1662 = vrot.slane %v1457, 1
    %v1663 = vrot.slane %v1458, 1
    %v1664 = vsel %vm1631, %v1662, %v1663
    %v1665 = vrot.slane %v1459, 1
    %v1666 = vsel %vm1631, %v1663, %v1665
    %v1667 = vrot.slane %v1460, 1
    %v1668 = vrot.slane %v1461, 1
    %v1669 = vsel %vm1631, %v1667, %v1668
    %v1670 = vrot.slane %v1462, 1
    %v1671 = vsel %vm1631, %v1668, %v1670
    %v1672 = vrot.slane %v1463, 1
    %v1673 = vrot.slane %v1464, 1
    %v1674 = vsel %vm1631, %v1672, %v1673
    %v1675 = vrot.slane %v1465, 1
    %v1676 = vsel %vm1631, %v1673, %v1675
    %v1677 = vrot.slane %v1466, 1
    %v1678 = vrot.slane %v1467, 1
    %v1679 = vsel %vm1631, %v1677, %v1678
    %v1680 = vrot.slane %v1468, 1
    %v1681 = vsel %vm1631, %v1678, %v1680
    %v1682 = vrot.slane %v1469, 1
    %v1683 = vrot.slane %v1470, 1
    %v1684 = vsel %vm1631, %v1682, %v1683
    %v1685 = vrot.slane %v1471, 1
    %v1686 = vsel %vm1631, %v1683, %v1685
    %v1687 = vrot.slane %v1472, 1
    %v1688 = vrot.slane %v1473, 1
    %v1689 = vsel %vm1631, %v1687, %v1688
    %v1690 = vrot.slane %v1474, 1
    %v1691 = vsel %vm1631, %v1688, %v1690
    %v1692 = vrot.slane %v1475, 1
    %v1693 = vrot.slane %v1476, 1
    %v1694 = vsel %vm1631, %v1692, %v1693
    %v1695 = vrot.slane %v1477, 1
    %v1696 = vsel %vm1631, %v1693, %v1695
    %v1697 = vrot.slane %v1478, 1
    %v1698 = vrot.slane %v1479, 1
    %v1699 = vsel %vm1631, %v1697, %v1698
    %v1700 = vrot.slane %v1480, 1
    %v1701 = vsel %vm1631, %v1698, %v1700
    %v1702 = vrot.slane %v1481, 1
    %v1703 = vrot.slane %v1482, 1
    %v1704 = vsel %vm1631, %v1702, %v1703
    %v1705 = vrot.slane %v1483, 1
    %v1706 = vsel %vm1631, %v1703, %v1705
    %v1707 = vrot.slane %v1484, 1
    %v1708 = vrot.slane %v1485, 1
    %v1709 = vsel %vm1631, %v1707, %v1708
    %v1710 = vrot.slane %v1486, 1
    %v1711 = vsel %vm1631, %v1708, %v1710
    %v1712 = vrot.slane %v1487, 1
    %v1713 = vrot.slane %v1488, 1
    %v1714 = vsel %vm1631, %v1712, %v1713
    %v1715 = vrot.slane %v1489, 1
    %v1716 = vsel %vm1631, %v1713, %v1715
    %v1717 = vrot.slane %v1490, 1
    %v1718 = vrot.slane %v1491, 1
    %v1719 = vsel %vm1631, %v1717, %v1718
    %v1720 = vrot.slane %v1492, 1
    %v1721 = vsel %vm1631, %v1718, %v1720
    %v1722 = vrot.slane %v1493, 1
    %v1723 = vrot.slane %v1494, 1
    %v1724 = vsel %vm1631, %v1722, %v1723
    %v1725 = vrot.slane %v1495, 1
    %v1726 = vsel %vm1631, %v1723, %v1725
    %v1727 = vrot.slane %v1496, 1
    %v1728 = vrot.slane %v1497, 1
    %v1729 = vsel %vm1631, %v1727, %v1728
    %v1730 = vrot.slane %v1498, 1
    %v1731 = vsel %vm1631, %v1728, %v1730
    %v1732 = vrot.slane %v1499, 1
    %v1733 = vrot.slane %v1500, 1
    %v1734 = vsel %vm1631, %v1732, %v1733
    %v1735 = vrot.slane %v1501, 1
    %v1736 = vsel %vm1631, %v1733, %v1735
    %v1737 = vrot.slane %v1502, 1
    %v1738 = vrot.slane %v1503, 1
    %v1739 = vsel %vm1631, %v1737, %v1738
    %v1740 = vrot.slane %v1504, 1
    %v1741 = vsel %vm1631, %v1738, %v1740
    %v1742 = vrot.slane %v1505, 1
    %v1743 = vrot.slane %v1506, 1
    %v1744 = vsel %vm1631, %v1742, %v1743
    %v1745 = vrot.slane %v1507, 1
    %v1746 = vsel %vm1631, %v1743, %v1745
    %v1747 = vrot.slane %v1508, 1
    %v1748 = vrot.slane %v1509, 1
    %v1749 = vsel %vm1631, %v1747, %v1748
    %v1750 = vrot.slane %v1510, 1
    %v1751 = vsel %vm1631, %v1748, %v1750
    %v1752 = vrot.slane %v1511, 1
    %v1753 = vrot.slane %v1512, 1
    %v1754 = vsel %vm1631, %v1752, %v1753
    %v1755 = vrot.slane %v1513, 1
    %v1756 = vsel %vm1631, %v1753, %v1755
    %v1757 = vrot.slane %v1514, 1
    %v1758 = vrot.slane %v1515, 1
    %v1759 = vsel %vm1631, %v1757, %v1758
    %v1760 = vrot.slane %v1516, 1
    %v1761 = vsel %vm1631, %v1758, %v1760
    %v1762 = vrot.slane %v1517, 1
    %v1763 = vrot.slane %v1518, 1
    %v1764 = vsel %vm1631, %v1762, %v1763
    %v1765 = vrot.slane %v1519, 1
    %v1766 = vsel %vm1631, %v1763, %v1765
    %v1767 = vrot.slane %v1520, 1
    %v1768 = vrot.slane %v1521, 1
    %v1769 = vsel %vm1631, %v1767, %v1768
    %v1770 = vrot.slane %v1522, 1
    %v1771 = vsel %vm1631, %v1768, %v1770
    %v1772 = vrot.slane %v1523, 1
    %v1773 = vrot.slane %v1524, 1
    %v1774 = vsel %vm1631, %v1772, %v1773
    %v1775 = vrot.slane %v1525, 1
    %v1776 = vsel %vm1631, %v1773, %v1775
    %v1777 = vrot.slane %v1526, 1
    %v1778 = vrot.slane %v1527, 1
    %v1779 = vsel %vm1631, %v1777, %v1778
    %v1780 = vrot.slane %v1528, 1
    %v1781 = vsel %vm1631, %v1778, %v1780
    %v1782 = vrot.slane %v1529, 1
    %v1783 = vrot.slane %v1530, 1
    %v1784 = vsel %vm1631, %v1782, %v1783
    %v1785 = vrot.slane %v1531, 1
    %v1786 = vsel %vm1631, %v1783, %v1785
    %v1787 = vrot.slane %v1532, 1
    %v1788 = vrot.slane %v1533, 1
    %v1789 = vsel %vm1631, %v1787, %v1788
    %v1790 = vrot.slane %v1534, 1
    %v1791 = vsel %vm1631, %v1788, %v1790
    %vm1856 = vcmask 1045504
    %v1857 = vrot.slane %v1439, 2
    %v1858 = vrot.slane %v1440, 2
    %v1859 = vsel %vm1856, %v1857, %v1858
    %v1860 = vrot.slane %v1441, 2
    %v1861 = vsel %vm1856, %v1858, %v1860
    %v1862 = vrot.slane %v1442, 2
    %v1863 = vrot.slane %v1443, 2
    %v1864 = vsel %vm1856, %v1862, %v1863
    %v1865 = vrot.slane %v1444, 2
    %v1866 = vsel %vm1856, %v1863, %v1865
    %v1867 = vrot.slane %v1445, 2
    %v1868 = vrot.slane %v1446, 2
    %v1869 = vsel %vm1856, %v1867, %v1868
    %v1870 = vrot.slane %v1447, 2
    %v1871 = vsel %vm1856, %v1868, %v1870
    %v1872 = vrot.slane %v1448, 2
    %v1873 = vrot.slane %v1449, 2
    %v1874 = vsel %vm1856, %v1872, %v1873
    %v1875 = vrot.slane %v1450, 2
    %v1876 = vsel %vm1856, %v1873, %v1875
    %v1877 = vrot.slane %v1451, 2
    %v1878 = vrot.slane %v1452, 2
    %v1879 = vsel %vm1856, %v1877, %v1878
    %v1880 = vrot.slane %v1453, 2
    %v1881 = vsel %vm1856, %v1878, %v1880
    %v1882 = vrot.slane %v1454, 2
    %v1883 = vrot.slane %v1455, 2
    %v1884 = vsel %vm1856, %v1882, %v1883
    %v1885 = vrot.slane %v1456, 2
    %v1886 = vsel %vm1856, %v1883, %v1885
    %v1887 = vrot.slane %v1457, 2
    %v1888 = vrot.slane %v1458, 2
    %v1889 = vsel %vm1856, %v1887, %v1888
    %v1890 = vrot.slane %v1459, 2
    %v1891 = vsel %vm1856, %v1888, %v1890
    %v1892 = vrot.slane %v1460, 2
    %v1893 = vrot.slane %v1461, 2
    %v1894 = vsel %vm1856, %v1892, %v1893
    %v1895 = vrot.slane %v1462, 2
    %v1896 = vsel %vm1856, %v1893, %v1895
    %v1897 = vrot.slane %v1463, 2
    %v1898 = vrot.slane %v1464, 2
    %v1899 = vsel %vm1856, %v1897, %v1898
    %v1900 = vrot.slane %v1465, 2
    %v1901 = vsel %vm1856, %v1898, %v1900
    %v1902 = vrot.slane %v1466, 2
    %v1903 = vrot.slane %v1467, 2
    %v1904 = vsel %vm1856, %v1902, %v1903
    %v1905 = vrot.slane %v1468, 2
    %v1906 = vsel %vm1856, %v1903, %v1905
    %v1907 = vrot.slane %v1469, 2
    %v1908 = vrot.slane %v1470, 2
    %v1909 = vsel %vm1856, %v1907, %v1908
    %v1910 = vrot.slane %v1471, 2
    %v1911 = vsel %vm1856, %v1908, %v1910
    %v1912 = vrot.slane %v1472, 2
    %v1913 = vrot.slane %v1473, 2
    %v1914 = vsel %vm1856, %v1912, %v1913
    %v1915 = vrot.slane %v1474, 2
    %v1916 = vsel %vm1856, %v1913, %v1915
    %v1917 = vrot.slane %v1475, 2
    %v1918 = vrot.slane %v1476, 2
    %v1919 = vsel %vm1856, %v1917, %v1918
    %v1920 = vrot.slane %v1477, 2
    %v1921 = vsel %vm1856, %v1918, %v1920
    %v1922 = vrot.slane %v1478, 2
    %v1923 = vrot.slane %v1479, 2
    %v1924 = vsel %vm1856, %v1922, %v1923
    %v1925 = vrot.slane %v1480, 2
    %v1926 = vsel %vm1856, %v1923, %v1925
    %v1927 = vrot.slane %v1481, 2
    %v1928 = vrot.slane %v1482, 2
    %v1929 = vsel %vm1856, %v1927, %v1928
    %v1930 = vrot.slane %v1483, 2
    %v1931 = vsel %vm1856, %v1928, %v1930
    %v1932 = vrot.slane %v1484, 2
    %v1933 = vrot.slane %v1485, 2
    %v1934 = vsel %vm1856, %v1932, %v1933
    %v1935 = vrot.slane %v1486, 2
    %v1936 = vsel %vm1856, %v1933, %v1935
    %v1937 = vrot.slane %v1487, 2
    %v1938 = vrot.slane %v1488, 2
    %v1939 = vsel %vm1856, %v1937, %v1938
    %v1940 = vrot.slane %v1489, 2
    %v1941 = vsel %vm1856, %v1938, %v1940
    %v1942 = vrot.slane %v1490, 2
    %v1943 = vrot.slane %v1491, 2
    %v1944 = vsel %vm1856, %v1942, %v1943
    %v1945 = vrot.slane %v1492, 2
    %v1946 = vsel %vm1856, %v1943, %v1945
    %v1947 = vrot.slane %v1493, 2
    %v1948 = vrot.slane %v1494, 2
    %v1949 = vsel %vm1856, %v1947, %v1948
    %v1950 = vrot.slane %v1495, 2
    %v1951 = vsel %vm1856, %v1948, %v1950
    %v1952 = vrot.slane %v1496, 2
    %v1953 = vrot.slane %v1497, 2
    %v1954 = vsel %vm1856, %v1952, %v1953
    %v1955 = vrot.slane %v1498, 2
    %v1956 = vsel %vm1856, %v1953, %v1955
    %v1957 = vrot.slane %v1499, 2
    %v1958 = vrot.slane %v1500, 2
    %v1959 = vsel %vm1856, %v1957, %v1958
    %v1960 = vrot.slane %v1501, 2
    %v1961 = vsel %vm1856, %v1958, %v1960
    %v1962 = vrot.slane %v1502, 2
    %v1963 = vrot.slane %v1503, 2
    %v1964 = vsel %vm1856, %v1962, %v1963
    %v1965 = vrot.slane %v1504, 2
    %v1966 = vsel %vm1856, %v1963, %v1965
    %v1967 = vrot.slane %v1505, 2
    %v1968 = vrot.slane %v1506, 2
    %v1969 = vsel %vm1856, %v1967, %v1968
    %v1970 = vrot.slane %v1507, 2
    %v1971 = vsel %vm1856, %v1968, %v1970
    %v1972 = vrot.slane %v1508, 2
    %v1973 = vrot.slane %v1509, 2
    %v1974 = vsel %vm1856, %v1972, %v1973
    %v1975 = vrot.slane %v1510, 2
    %v1976 = vsel %vm1856, %v1973, %v1975
    %v1977 = vrot.slane %v1511, 2
    %v1978 = vrot.slane %v1512, 2
    %v1979 = vsel %vm1856, %v1977, %v1978
    %v1980 = vrot.slane %v1513, 2
    %v1981 = vsel %vm1856, %v1978, %v1980
    %v1982 = vrot.slane %v1514, 2
    %v1983 = vrot.slane %v1515, 2
    %v1984 = vsel %vm1856, %v1982, %v1983
    %v1985 = vrot.slane %v1516, 2
    %v1986 = vsel %vm1856, %v1983, %v1985
    %v1987 = vrot.slane %v1517, 2
    %v1988 = vrot.slane %v1518, 2
    %v1989 = vsel %vm1856, %v1987, %v1988
    %v1990 = vrot.slane %v1519, 2
    %v1991 = vsel %vm1856, %v1988, %v1990
    %v1992 = vrot.slane %v1520, 2
    %v1993 = vrot.slane %v1521, 2
    %v1994 = vsel %vm1856, %v1992, %v1993
    %v1995 = vrot.slane %v1522, 2
    %v1996 = vsel %vm1856, %v1993, %v1995
    %v1997 = vrot.slane %v1523, 2
    %v1998 = vrot.slane %v1524, 2
    %v1999 = vsel %vm1856, %v1997, %v1998
    %v2000 = vrot.slane %v1525, 2
    %v2001 = vsel %vm1856, %v1998, %v2000
    %v2002 = vrot.slane %v1526, 2
    %v2003 = vrot.slane %v1527, 2
    %v2004 = vsel %vm1856, %v2002, %v2003
    %v2005 = vrot.slane %v1528, 2
    %v2006 = vsel %vm1856, %v2003, %v2005
    %v2007 = vrot.slane %v1529, 2
    %v2008 = vrot.slane %v1530, 2
    %v2009 = vsel %vm1856, %v2007, %v2008
    %v2010 = vrot.slane %v1531, 2
    %v2011 = vsel %vm1856, %v2008, %v2010
    %v2012 = vrot.slane %v1532, 2
    %v2013 = vrot.slane %v1533, 2
    %v2014 = vsel %vm1856, %v2012, %v2013
    %v2015 = vrot.slane %v1534, 2
    %v2016 = vsel %vm1856, %v2013, %v2015
    %v2081 = vld [vmem:[#allocation8] sm:$0xff]
    %v2082 = vld [vmem:[#allocation8 + $0x8] sm:$0xff]
    %v2083 = vld [vmem:[#allocation8 + $0x10] sm:$0xff]
    %v2084 = vld [vmem:[#allocation8 + $0x18] sm:$0xff]
    %v2085 = vld [vmem:[#allocation8 + $0x20] sm:$0xff]
    %v2086 = vld [vmem:[#allocation8 + $0x28] sm:$0xff]
    %v2087 = vld [vmem:[#allocation8 + $0x30] sm:$0xff]
    %v2088 = vld [vmem:[#allocation8 + $0x38] sm:$0xff]
    %v2089 = vld [vmem:[#allocation8 + $0x40] sm:$0xff]
    %v2090 = vld [vmem:[#allocation8 + $0x48] sm:$0xff]
    %v2091 = vld [vmem:[#allocation8 + $0x50] sm:$0xff]
    %v2092 = vld [vmem:[#allocation8 + $0x58] sm:$0xff]
    %v2093 = vld [vmem:[#allocation8 + $0x60] sm:$0xff]
    %v2094 = vld [vmem:[#allocation8 + $0x68] sm:$0xff]
    %v2095 = vld [vmem:[#allocation8 + $0x70] sm:$0xff]
    %v2096 = vld [vmem:[#allocation8 + $0x78] sm:$0xff]
    %v2097 = vld [vmem:[#allocation8 + $0x80] sm:$0xff]
    %v2098 = vld [vmem:[#allocation8 + $0x88] sm:$0xff]
    %v2099 = vld [vmem:[#allocation8 + $0x90] sm:$0xff]
    %v2100 = vld [vmem:[#allocation8 + $0x98] sm:$0xff]
    %v2101 = vld [vmem:[#allocation8 + $0xa0] sm:$0xff]
    %v2102 = vld [vmem:[#allocation8 + $0xa8] sm:$0xff]
    %v2103 = vld [vmem:[#allocation8 + $0xb0] sm:$0xff]
    %v2104 = vld [vmem:[#allocation8 + $0xb8] sm:$0xff]
    %v2105 = vld [vmem:[#allocation8 + $0xc0] sm:$0xff]
    %v2106 = vld [vmem:[#allocation8 + $0xc8] sm:$0xff]
    %v2107 = vld [vmem:[#allocation8 + $0xd0] sm:$0xff]
    %v2108 = vld [vmem:[#allocation8 + $0xd8] sm:$0xff]
    %v2109 = vld [vmem:[#allocation8 + $0xe0] sm:$0xff]
    %v2110 = vld [vmem:[#allocation8 + $0xe8] sm:$0xff]
    %v2111 = vld [vmem:[#allocation8 + $0xf0] sm:$0xff]
    %v2112 = vld [vmem:[#allocation8 + $0xf8] sm:$0xff]
    %v2113 = vld [vmem:[#allocation8 + $0x100] sm:$0xff]
    %v2114 = vld [vmem:[#allocation8 + $0x108] sm:$0xff]
    %v2115 = vld [vmem:[#allocation8 + $0x110] sm:$0xff]
    %v2116 = vld [vmem:[#allocation8 + $0x118] sm:$0xff]
    %v2117 = vld [vmem:[#allocation8 + $0x120] sm:$0xff]
    %v2118 = vld [vmem:[#allocation8 + $0x128] sm:$0xff]
    %v2119 = vld [vmem:[#allocation8 + $0x130] sm:$0xff]
    %v2120 = vld [vmem:[#allocation8 + $0x138] sm:$0xff]
    %v2121 = vld [vmem:[#allocation8 + $0x140] sm:$0xff]
    %v2122 = vld [vmem:[#allocation8 + $0x148] sm:$0xff]
    %v2123 = vld [vmem:[#allocation8 + $0x150] sm:$0xff]
    %v2124 = vld [vmem:[#allocation8 + $0x158] sm:$0xff]
    %v2125 = vld [vmem:[#allocation8 + $0x160] sm:$0xff]
    %v2126 = vld [vmem:[#allocation8 + $0x168] sm:$0xff]
    %v2127 = vld [vmem:[#allocation8 + $0x170] sm:$0xff]
    %v2128 = vld [vmem:[#allocation8 + $0x178] sm:$0xff]
    %v2129 = vld [vmem:[%s1342] sm:$0xff]
    %v2130 = vld [vmem:[%s1342 + $0x8] sm:$0xff]
    %v2131 = vld [vmem:[%s1342 + $0x10] sm:$0x3]
    %v2132 = vld [vmem:[%s1342 + $0x18] sm:$0xff]
    %v2133 = vld [vmem:[%s1342 + $0x20] sm:$0xff]
    %v2134 = vld [vmem:[%s1342 + $0x28] sm:$0x3]
    %v2135 = vld [vmem:[%s1342 + $0x30] sm:$0xff]
    %v2136 = vld [vmem:[%s1342 + $0x38] sm:$0xff]
    %v2137 = vld [vmem:[%s1342 + $0x40] sm:$0x3]
    %v2138 = vld [vmem:[%s1342 + $0x48] sm:$0xff]
    %v2139 = vld [vmem:[%s1342 + $0x50] sm:$0xff]
    %v2140 = vld [vmem:[%s1342 + $0x58] sm:$0x3]
    %v2141 = vld [vmem:[%s1342 + $0x60] sm:$0xff]
    %v2142 = vld [vmem:[%s1342 + $0x68] sm:$0xff]
    %v2143 = vld [vmem:[%s1342 + $0x70] sm:$0x3]
    %v2144 = vld [vmem:[%s1342 + $0x78] sm:$0xff]
    %v2145 = vld [vmem:[%s1342 + $0x80] sm:$0xff]
    %v2146 = vld [vmem:[%s1342 + $0x88] sm:$0x3]
    %v2147 = vld [vmem:[%s1342 + $0x90] sm:$0xff]
    %v2148 = vld [vmem:[%s1342 + $0x98] sm:$0xff]
    %v2149 = vld [vmem:[%s1342 + $0xa0] sm:$0x3]
    %v2150 = vld [vmem:[%s1342 + $0xa8] sm:$0xff]
    %v2151 = vld [vmem:[%s1342 + $0xb0] sm:$0xff]
    %v2152 = vld [vmem:[%s1342 + $0xb8] sm:$0x3]
    %v2153 = vld [vmem:[%s1342 + $0xc0] sm:$0xff]
    %v2154 = vld [vmem:[%s1342 + $0xc8] sm:$0xff]
    %v2155 = vld [vmem:[%s1342 + $0xd0] sm:$0x3]
    %v2156 = vld [vmem:[%s1342 + $0xd8] sm:$0xff]
    %v2157 = vld [vmem:[%s1342 + $0xe0] sm:$0xff]
    %v2158 = vld [vmem:[%s1342 + $0xe8] sm:$0x3]
    %v2159 = vld [vmem:[%s1342 + $0xf0] sm:$0xff]
    %v2160 = vld [vmem:[%s1342 + $0xf8] sm:$0xff]
    %v2161 = vld [vmem:[%s1342 + $0x100] sm:$0x3]
    %v2162 = vld [vmem:[%s1342 + $0x108] sm:$0xff]
    %v2163 = vld [vmem:[%s1342 + $0x110] sm:$0xff]
    %v2164 = vld [vmem:[%s1342 + $0x118] sm:$0x3]
    %v2165 = vld [vmem:[%s1342 + $0x120] sm:$0xff]
    %v2166 = vld [vmem:[%s1342 + $0x128] sm:$0xff]
    %v2167 = vld [vmem:[%s1342 + $0x130] sm:$0x3]
    %v2168 = vld [vmem:[%s1342 + $0x138] sm:$0xff]
    %v2169 = vld [vmem:[%s1342 + $0x140] sm:$0xff]
    %v2170 = vld [vmem:[%s1342 + $0x148] sm:$0x3]
    %v2171 = vld [vmem:[%s1342 + $0x150] sm:$0xff]
    %v2172 = vld [vmem:[%s1342 + $0x158] sm:$0xff]
    %v2173 = vld [vmem:[%s1342 + $0x160] sm:$0x3]
    %v2174 = vld [vmem:[%s1342 + $0x168] sm:$0xff]
    %v2175 = vld [vmem:[%s1342 + $0x170] sm:$0xff]
    %v2176 = vld [vmem:[%s1342 + $0x178] sm:$0x3]
    %v2177 = vld [vmem:[%s1342 + $0x1b0] sm:$0xff]
    %v2178 = vld [vmem:[%s1342 + $0x1b8] sm:$0xff]
    %v2179 = vld [vmem:[%s1342 + $0x1c0] sm:$0x3]
    %v2180 = vld [vmem:[%s1342 + $0x1c8] sm:$0xff]
    %v2181 = vld [vmem:[%s1342 + $0x1d0] sm:$0xff]
    %v2182 = vld [vmem:[%s1342 + $0x1d8] sm:$0x3]
    %v2183 = vld [vmem:[%s1342 + $0x1e0] sm:$0xff]
    %v2184 = vld [vmem:[%s1342 + $0x1e8] sm:$0xff]
    %v2185 = vld [vmem:[%s1342 + $0x1f0] sm:$0x3]
    %v2186 = vld [vmem:[%s1342 + $0x1f8] sm:$0xff]
    %v2187 = vld [vmem:[%s1342 + $0x200] sm:$0xff]
    %v2188 = vld [vmem:[%s1342 + $0x208] sm:$0x3]
    %v2189 = vld [vmem:[%s1342 + $0x210] sm:$0xff]
    %v2190 = vld [vmem:[%s1342 + $0x218] sm:$0xff]
    %v2191 = vld [vmem:[%s1342 + $0x220] sm:$0x3]
    %v2192 = vld [vmem:[%s1342 + $0x228] sm:$0xff]
    %v2193 = vld [vmem:[%s1342 + $0x230] sm:$0xff]
    %v2194 = vld [vmem:[%s1342 + $0x238] sm:$0x3]
    %v2195 = vld [vmem:[%s1342 + $0x240] sm:$0xff]
    %v2196 = vld [vmem:[%s1342 + $0x248] sm:$0xff]
    %v2197 = vld [vmem:[%s1342 + $0x250] sm:$0x3]
    %v2198 = vld [vmem:[%s1342 + $0x258] sm:$0xff]
    %v2199 = vld [vmem:[%s1342 + $0x260] sm:$0xff]
    %v2200 = vld [vmem:[%s1342 + $0x268] sm:$0x3]
    %v2201 = vld [vmem:[%s1342 + $0x270] sm:$0xff]
    %v2202 = vld [vmem:[%s1342 + $0x278] sm:$0xff]
    %v2203 = vld [vmem:[%s1342 + $0x280] sm:$0x3]
    %v2204 = vld [vmem:[%s1342 + $0x288] sm:$0xff]
    %v2205 = vld [vmem:[%s1342 + $0x290] sm:$0xff]
    %v2206 = vld [vmem:[%s1342 + $0x298] sm:$0x3]
    %v2207 = vld [vmem:[%s1342 + $0x2a0] sm:$0xff]
    %v2208 = vld [vmem:[%s1342 + $0x2a8] sm:$0xff]
    %v2209 = vld [vmem:[%s1342 + $0x2b0] sm:$0x3]
    %v2210 = vld [vmem:[%s1342 + $0x2b8] sm:$0xff]
    %v2211 = vld [vmem:[%s1342 + $0x2c0] sm:$0xff]
    %v2212 = vld [vmem:[%s1342 + $0x2c8] sm:$0x3]
    %v2213 = vld [vmem:[%s1342 + $0x2d0] sm:$0xff]
    %v2214 = vld [vmem:[%s1342 + $0x2d8] sm:$0xff]
    %v2215 = vld [vmem:[%s1342 + $0x2e0] sm:$0x3]
    %v2216 = vld [vmem:[%s1342 + $0x2e8] sm:$0xff]
    %v2217 = vld [vmem:[%s1342 + $0x2f0] sm:$0xff]
    %v2218 = vld [vmem:[%s1342 + $0x2f8] sm:$0x3]
    %v2219 = vld [vmem:[%s1342 + $0x300] sm:$0xff]
    %v2220 = vld [vmem:[%s1342 + $0x308] sm:$0xff]
    %v2221 = vld [vmem:[%s1342 + $0x310] sm:$0x3]
    %v2222 = vld [vmem:[%s1342 + $0x318] sm:$0xff]
    %v2223 = vld [vmem:[%s1342 + $0x320] sm:$0xff]
    %v2224 = vld [vmem:[%s1342 + $0x328] sm:$0x3]
    %v2321 = vrot.slane %v2129, 1
    %v2322 = vrot.slane %v2130, 1
    %v2323 = vsel %vm1631, %v2321, %v2322
    %v2324 = vrot.slane %v2131, 1
    %v2325 = vsel %vm1631, %v2322, %v2324
    %v2326 = vrot.slane %v2132, 1
    %v2327 = vrot.slane %v2133, 1
    %v2328 = vsel %vm1631, %v2326, %v2327
    %v2329 = vrot.slane %v2134, 1
    %v2330 = vsel %vm1631, %v2327, %v2329
    %v2331 = vrot.slane %v2135, 1
    %v2332 = vrot.slane %v2136, 1
    %v2333 = vsel %vm1631, %v2331, %v2332
    %v2334 = vrot.slane %v2137, 1
    %v2335 = vsel %vm1631, %v2332, %v2334
    %v2336 = vrot.slane %v2138, 1
    %v2337 = vrot.slane %v2139, 1
    %v2338 = vsel %vm1631, %v2336, %v2337
    %v2339 = vrot.slane %v2140, 1
    %v2340 = vsel %vm1631, %v2337, %v2339
    %v2341 = vrot.slane %v2141, 1
    %v2342 = vrot.slane %v2142, 1
    %v2343 = vsel %vm1631, %v2341, %v2342
    %v2344 = vrot.slane %v2143, 1
    %v2345 = vsel %vm1631, %v2342, %v2344
    %v2346 = vrot.slane %v2144, 1
    %v2347 = vrot.slane %v2145, 1
    %v2348 = vsel %vm1631, %v2346, %v2347
    %v2349 = vrot.slane %v2146, 1
    %v2350 = vsel %vm1631, %v2347, %v2349
    %v2351 = vrot.slane %v2147, 1
    %v2352 = vrot.slane %v2148, 1
    %v2353 = vsel %vm1631, %v2351, %v2352
    %v2354 = vrot.slane %v2149, 1
    %v2355 = vsel %vm1631, %v2352, %v2354
    %v2356 = vrot.slane %v2150, 1
    %v2357 = vrot.slane %v2151, 1
    %v2358 = vsel %vm1631, %v2356, %v2357
    %v2359 = vrot.slane %v2152, 1
    %v2360 = vsel %vm1631, %v2357, %v2359
    %v2361 = vrot.slane %v2153, 1
    %v2362 = vrot.slane %v2154, 1
    %v2363 = vsel %vm1631, %v2361, %v2362
    %v2364 = vrot.slane %v2155, 1
    %v2365 = vsel %vm1631, %v2362, %v2364
    %v2366 = vrot.slane %v2156, 1
    %v2367 = vrot.slane %v2157, 1
    %v2368 = vsel %vm1631, %v2366, %v2367
    %v2369 = vrot.slane %v2158, 1
    %v2370 = vsel %vm1631, %v2367, %v2369
    %v2371 = vrot.slane %v2159, 1
    %v2372 = vrot.slane %v2160, 1
    %v2373 = vsel %vm1631, %v2371, %v2372
    %v2374 = vrot.slane %v2161, 1
    %v2375 = vsel %vm1631, %v2372, %v2374
    %v2376 = vrot.slane %v2162, 1
    %v2377 = vrot.slane %v2163, 1
    %v2378 = vsel %vm1631, %v2376, %v2377
    %v2379 = vrot.slane %v2164, 1
    %v2380 = vsel %vm1631, %v2377, %v2379
    %v2381 = vrot.slane %v2165, 1
    %v2382 = vrot.slane %v2166, 1
    %v2383 = vsel %vm1631, %v2381, %v2382
    %v2384 = vrot.slane %v2167, 1
    %v2385 = vsel %vm1631, %v2382, %v2384
    %v2386 = vrot.slane %v2168, 1
    %v2387 = vrot.slane %v2169, 1
    %v2388 = vsel %vm1631, %v2386, %v2387
    %v2389 = vrot.slane %v2170, 1
    %v2390 = vsel %vm1631, %v2387, %v2389
    %v2391 = vrot.slane %v2171, 1
    %v2392 = vrot.slane %v2172, 1
    %v2393 = vsel %vm1631, %v2391, %v2392
    %v2394 = vrot.slane %v2173, 1
    %v2395 = vsel %vm1631, %v2392, %v2394
    %v2396 = vrot.slane %v2174, 1
    %v2397 = vrot.slane %v2175, 1
    %v2398 = vsel %vm1631, %v2396, %v2397
    %v2399 = vrot.slane %v2176, 1
    %v2400 = vsel %vm1631, %v2397, %v2399
    %v2401 = vrot.slane %v2177, 1
    %v2402 = vrot.slane %v2178, 1
    %v2403 = vsel %vm1631, %v2401, %v2402
    %v2404 = vrot.slane %v2179, 1
    %v2405 = vsel %vm1631, %v2402, %v2404
    %v2406 = vrot.slane %v2180, 1
    %v2407 = vrot.slane %v2181, 1
    %v2408 = vsel %vm1631, %v2406, %v2407
    %v2409 = vrot.slane %v2182, 1
    %v2410 = vsel %vm1631, %v2407, %v2409
    %v2411 = vrot.slane %v2183, 1
    %v2412 = vrot.slane %v2184, 1
    %v2413 = vsel %vm1631, %v2411, %v2412
    %v2414 = vrot.slane %v2185, 1
    %v2415 = vsel %vm1631, %v2412, %v2414
    %v2416 = vrot.slane %v2186, 1
    %v2417 = vrot.slane %v2187, 1
    %v2418 = vsel %vm1631, %v2416, %v2417
    %v2419 = vrot.slane %v2188, 1
    %v2420 = vsel %vm1631, %v2417, %v2419
    %v2421 = vrot.slane %v2189, 1
    %v2422 = vrot.slane %v2190, 1
    %v2423 = vsel %vm1631, %v2421, %v2422
    %v2424 = vrot.slane %v2191, 1
    %v2425 = vsel %vm1631, %v2422, %v2424
    %v2426 = vrot.slane %v2192, 1
    %v2427 = vrot.slane %v2193, 1
    %v2428 = vsel %vm1631, %v2426, %v2427
    %v2429 = vrot.slane %v2194, 1
    %v2430 = vsel %vm1631, %v2427, %v2429
    %v2431 = vrot.slane %v2195, 1
    %v2432 = vrot.slane %v2196, 1
    %v2433 = vsel %vm1631, %v2431, %v2432
    %v2434 = vrot.slane %v2197, 1
    %v2435 = vsel %vm1631, %v2432, %v2434
    %v2436 = vrot.slane %v2198, 1
    %v2437 = vrot.slane %v2199, 1
    %v2438 = vsel %vm1631, %v2436, %v2437
    %v2439 = vrot.slane %v2200, 1
    %v2440 = vsel %vm1631, %v2437, %v2439
    %v2441 = vrot.slane %v2201, 1
    %v2442 = vrot.slane %v2202, 1
    %v2443 = vsel %vm1631, %v2441, %v2442
    %v2444 = vrot.slane %v2203, 1
    %v2445 = vsel %vm1631, %v2442, %v2444
    %v2446 = vrot.slane %v2204, 1
    %v2447 = vrot.slane %v2205, 1
    %v2448 = vsel %vm1631, %v2446, %v2447
    %v2449 = vrot.slane %v2206, 1
    %v2450 = vsel %vm1631, %v2447, %v2449
    %v2451 = vrot.slane %v2207, 1
    %v2452 = vrot.slane %v2208, 1
    %v2453 = vsel %vm1631, %v2451, %v2452
    %v2454 = vrot.slane %v2209, 1
    %v2455 = vsel %vm1631, %v2452, %v2454
    %v2456 = vrot.slane %v2210, 1
    %v2457 = vrot.slane %v2211, 1
    %v2458 = vsel %vm1631, %v2456, %v2457
    %v2459 = vrot.slane %v2212, 1
    %v2460 = vsel %vm1631, %v2457, %v2459
    %v2461 = vrot.slane %v2213, 1
    %v2462 = vrot.slane %v2214, 1
    %v2463 = vsel %vm1631, %v2461, %v2462
    %v2464 = vrot.slane %v2215, 1
    %v2465 = vsel %vm1631, %v2462, %v2464
    %v2466 = vrot.slane %v2216, 1
    %v2467 = vrot.slane %v2217, 1
    %v2468 = vsel %vm1631, %v2466, %v2467
    %v2469 = vrot.slane %v2218, 1
    %v2470 = vsel %vm1631, %v2467, %v2469
    %v2471 = vrot.slane %v2219, 1
    %v2472 = vrot.slane %v2220, 1
    %v2473 = vsel %vm1631, %v2471, %v2472
    %v2474 = vrot.slane %v2221, 1
    %v2475 = vsel %vm1631, %v2472, %v2474
    %v2476 = vrot.slane %v2222, 1
    %v2477 = vrot.slane %v2223, 1
    %v2478 = vsel %vm1631, %v2476, %v2477
    %v2479 = vrot.slane %v2224, 1
    %v2480 = vsel %vm1631, %v2477, %v2479
    %v2545 = vrot.slane %v2129, 2
    %v2546 = vrot.slane %v2130, 2
    %v2547 = vsel %vm1856, %v2545, %v2546
    %v2548 = vrot.slane %v2131, 2
    %v2549 = vsel %vm1856, %v2546, %v2548
    %v2550 = vrot.slane %v2132, 2
    %v2551 = vrot.slane %v2133, 2
    %v2552 = vsel %vm1856, %v2550, %v2551
    %v2553 = vrot.slane %v2134, 2
    %v2554 = vsel %vm1856, %v2551, %v2553
    %v2555 = vrot.slane %v2135, 2
    %v2556 = vrot.slane %v2136, 2
    %v2557 = vsel %vm1856, %v2555, %v2556
    %v2558 = vrot.slane %v2137, 2
    %v2559 = vsel %vm1856, %v2556, %v2558
    %v2560 = vrot.slane %v2138, 2
    %v2561 = vrot.slane %v2139, 2
    %v2562 = vsel %vm1856, %v2560, %v2561
    %v2563 = vrot.slane %v2140, 2
    %v2564 = vsel %vm1856, %v2561, %v2563
    %v2565 = vrot.slane %v2141, 2
    %v2566 = vrot.slane %v2142, 2
    %v2567 = vsel %vm1856, %v2565, %v2566
    %v2568 = vrot.slane %v2143, 2
    %v2569 = vsel %vm1856, %v2566, %v2568
    %v2570 = vrot.slane %v2144, 2
    %v2571 = vrot.slane %v2145, 2
    %v2572 = vsel %vm1856, %v2570, %v2571
    %v2573 = vrot.slane %v2146, 2
    %v2574 = vsel %vm1856, %v2571, %v2573
    %v2575 = vrot.slane %v2147, 2
    %v2576 = vrot.slane %v2148, 2
    %v2577 = vsel %vm1856, %v2575, %v2576
    %v2578 = vrot.slane %v2149, 2
    %v2579 = vsel %vm1856, %v2576, %v2578
    %v2580 = vrot.slane %v2150, 2
    %v2581 = vrot.slane %v2151, 2
    %v2582 = vsel %vm1856, %v2580, %v2581
    %v2583 = vrot.slane %v2152, 2
    %v2584 = vsel %vm1856, %v2581, %v2583
    %v2585 = vrot.slane %v2153, 2
    %v2586 = vrot.slane %v2154, 2
    %v2587 = vsel %vm1856, %v2585, %v2586
    %v2588 = vrot.slane %v2155, 2
    %v2589 = vsel %vm1856, %v2586, %v2588
    %v2590 = vrot.slane %v2156, 2
    %v2591 = vrot.slane %v2157, 2
    %v2592 = vsel %vm1856, %v2590, %v2591
    %v2593 = vrot.slane %v2158, 2
    %v2594 = vsel %vm1856, %v2591, %v2593
    %v2595 = vrot.slane %v2159, 2
    %v2596 = vrot.slane %v2160, 2
    %v2597 = vsel %vm1856, %v2595, %v2596
    %v2598 = vrot.slane %v2161, 2
    %v2599 = vsel %vm1856, %v2596, %v2598
    %v2600 = vrot.slane %v2162, 2
    %v2601 = vrot.slane %v2163, 2
    %v2602 = vsel %vm1856, %v2600, %v2601
    %v2603 = vrot.slane %v2164, 2
    %v2604 = vsel %vm1856, %v2601, %v2603
    %v2605 = vrot.slane %v2165, 2
    %v2606 = vrot.slane %v2166, 2
    %v2607 = vsel %vm1856, %v2605, %v2606
    %v2608 = vrot.slane %v2167, 2
    %v2609 = vsel %vm1856, %v2606, %v2608
    %v2610 = vrot.slane %v2168, 2
    %v2611 = vrot.slane %v2169, 2
    %v2612 = vsel %vm1856, %v2610, %v2611
    %v2613 = vrot.slane %v2170, 2
    %v2614 = vsel %vm1856, %v2611, %v2613
    %v2615 = vrot.slane %v2171, 2
    %v2616 = vrot.slane %v2172, 2
    %v2617 = vsel %vm1856, %v2615, %v2616
    %v2618 = vrot.slane %v2173, 2
    %v2619 = vsel %vm1856, %v2616, %v2618
    %v2620 = vrot.slane %v2174, 2
    %v2621 = vrot.slane %v2175, 2
    %v2622 = vsel %vm1856, %v2620, %v2621
    %v2623 = vrot.slane %v2176, 2
    %v2624 = vsel %vm1856, %v2621, %v2623
    %v2625 = vrot.slane %v2177, 2
    %v2626 = vrot.slane %v2178, 2
    %v2627 = vsel %vm1856, %v2625, %v2626
    %v2628 = vrot.slane %v2179, 2
    %v2629 = vsel %vm1856, %v2626, %v2628
    %v2630 = vrot.slane %v2180, 2
    %v2631 = vrot.slane %v2181, 2
    %v2632 = vsel %vm1856, %v2630, %v2631
    %v2633 = vrot.slane %v2182, 2
    %v2634 = vsel %vm1856, %v2631, %v2633
    %v2635 = vrot.slane %v2183, 2
    %v2636 = vrot.slane %v2184, 2
    %v2637 = vsel %vm1856, %v2635, %v2636
    %v2638 = vrot.slane %v2185, 2
    %v2639 = vsel %vm1856, %v2636, %v2638
    %v2640 = vrot.slane %v2186, 2
    %v2641 = vrot.slane %v2187, 2
    %v2642 = vsel %vm1856, %v2640, %v2641
    %v2643 = vrot.slane %v2188, 2
    %v2644 = vsel %vm1856, %v2641, %v2643
    %v2645 = vrot.slane %v2189, 2
    %v2646 = vrot.slane %v2190, 2
    %v2647 = vsel %vm1856, %v2645, %v2646
    %v2648 = vrot.slane %v2191, 2
    %v2649 = vsel %vm1856, %v2646, %v2648
    %v2650 = vrot.slane %v2192, 2
    %v2651 = vrot.slane %v2193, 2
    %v2652 = vsel %vm1856, %v2650, %v2651
    %v2653 = vrot.slane %v2194, 2
    %v2654 = vsel %vm1856, %v2651, %v2653
    %v2655 = vrot.slane %v2195, 2
    %v2656 = vrot.slane %v2196, 2
    %v2657 = vsel %vm1856, %v2655, %v2656
    %v2658 = vrot.slane %v2197, 2
    %v2659 = vsel %vm1856, %v2656, %v2658
    %v2660 = vrot.slane %v2198, 2
    %v2661 = vrot.slane %v2199, 2
    %v2662 = vsel %vm1856, %v2660, %v2661
    %v2663 = vrot.slane %v2200, 2
    %v2664 = vsel %vm1856, %v2661, %v2663
    %v2665 = vrot.slane %v2201, 2
    %v2666 = vrot.slane %v2202, 2
    %v2667 = vsel %vm1856, %v2665, %v2666
    %v2668 = vrot.slane %v2203, 2
    %v2669 = vsel %vm1856, %v2666, %v2668
    %v2670 = vrot.slane %v2204, 2
    %v2671 = vrot.slane %v2205, 2
    %v2672 = vsel %vm1856, %v2670, %v2671
    %v2673 = vrot.slane %v2206, 2
    %v2674 = vsel %vm1856, %v2671, %v2673
    %v2675 = vrot.slane %v2207, 2
    %v2676 = vrot.slane %v2208, 2
    %v2677 = vsel %vm1856, %v2675, %v2676
    %v2678 = vrot.slane %v2209, 2
    %v2679 = vsel %vm1856, %v2676, %v2678
    %v2680 = vrot.slane %v2210, 2
    %v2681 = vrot.slane %v2211, 2
    %v2682 = vsel %vm1856, %v2680, %v2681
    %v2683 = vrot.slane %v2212, 2
    %v2684 = vsel %vm1856, %v2681, %v2683
    %v2685 = vrot.slane %v2213, 2
    %v2686 = vrot.slane %v2214, 2
    %v2687 = vsel %vm1856, %v2685, %v2686
    %v2688 = vrot.slane %v2215, 2
    %v2689 = vsel %vm1856, %v2686, %v2688
    %v2690 = vrot.slane %v2216, 2
    %v2691 = vrot.slane %v2217, 2
    %v2692 = vsel %vm1856, %v2690, %v2691
    %v2693 = vrot.slane %v2218, 2
    %v2694 = vsel %vm1856, %v2691, %v2693
    %v2695 = vrot.slane %v2219, 2
    %v2696 = vrot.slane %v2220, 2
    %v2697 = vsel %vm1856, %v2695, %v2696
    %v2698 = vrot.slane %v2221, 2
    %v2699 = vsel %vm1856, %v2696, %v2698
    %v2700 = vrot.slane %v2222, 2
    %v2701 = vrot.slane %v2223, 2
    %v2702 = vsel %vm1856, %v2700, %v2701
    %v2703 = vrot.slane %v2224, 2
    %v2704 = vsel %vm1856, %v2701, %v2703
    %v2769 = vld [vmem:[#allocation8 + $0x180] sm:$0xff]
    %v2770 = vld [vmem:[#allocation8 + $0x188] sm:$0xff]
    %v2771 = vld [vmem:[#allocation8 + $0x190] sm:$0xff]
    %v2772 = vld [vmem:[#allocation8 + $0x198] sm:$0xff]
    %v2773 = vld [vmem:[#allocation8 + $0x1a0] sm:$0xff]
    %v2774 = vld [vmem:[#allocation8 + $0x1a8] sm:$0xff]
    %v2775 = vld [vmem:[#allocation8 + $0x1b0] sm:$0xff]
    %v2776 = vld [vmem:[#allocation8 + $0x1b8] sm:$0xff]
    %v2777 = vld [vmem:[#allocation8 + $0x1c0] sm:$0xff]
    %v2778 = vld [vmem:[#allocation8 + $0x1c8] sm:$0xff]
    %v2779 = vld [vmem:[#allocation8 + $0x1d0] sm:$0xff]
    %v2780 = vld [vmem:[#allocation8 + $0x1d8] sm:$0xff]
    %v2781 = vld [vmem:[#allocation8 + $0x1e0] sm:$0xff]
    %v2782 = vld [vmem:[#allocation8 + $0x1e8] sm:$0xff]
    %v2783 = vld [vmem:[#allocation8 + $0x1f0] sm:$0xff]
    %v2784 = vld [vmem:[#allocation8 + $0x1f8] sm:$0xff]
    %v2785 = vld [vmem:[#allocation8 + $0x200] sm:$0xff]
    %v2786 = vld [vmem:[#allocation8 + $0x208] sm:$0xff]
    %v2787 = vld [vmem:[#allocation8 + $0x210] sm:$0xff]
    %v2788 = vld [vmem:[#allocation8 + $0x218] sm:$0xff]
    %v2789 = vld [vmem:[#allocation8 + $0x220] sm:$0xff]
    %v2790 = vld [vmem:[#allocation8 + $0x228] sm:$0xff]
    %v2791 = vld [vmem:[#allocation8 + $0x230] sm:$0xff]
    %v2792 = vld [vmem:[#allocation8 + $0x238] sm:$0xff]
    %v2793 = vld [vmem:[#allocation8 + $0x240] sm:$0xff]
    %v2794 = vld [vmem:[#allocation8 + $0x248] sm:$0xff]
    %v2795 = vld [vmem:[#allocation8 + $0x250] sm:$0xff]
    %v2796 = vld [vmem:[#allocation8 + $0x258] sm:$0xff]
    %v2797 = vld [vmem:[#allocation8 + $0x260] sm:$0xff]
    %v2798 = vld [vmem:[#allocation8 + $0x268] sm:$0xff]
    %v2799 = vld [vmem:[#allocation8 + $0x270] sm:$0xff]
    %v2800 = vld [vmem:[#allocation8 + $0x278] sm:$0xff]
    %v2801 = vld [vmem:[#allocation8 + $0x280] sm:$0xff]
    %v2802 = vld [vmem:[#allocation8 + $0x288] sm:$0xff]
    %v2803 = vld [vmem:[#allocation8 + $0x290] sm:$0xff]
    %v2804 = vld [vmem:[#allocation8 + $0x298] sm:$0xff]
    %v2805 = vld [vmem:[#allocation8 + $0x2a0] sm:$0xff]
    %v2806 = vld [vmem:[#allocation8 + $0x2a8] sm:$0xff]
    %v2807 = vld [vmem:[#allocation8 + $0x2b0] sm:$0xff]
    %v2808 = vld [vmem:[#allocation8 + $0x2b8] sm:$0xff]
    %v2809 = vld [vmem:[#allocation8 + $0x2c0] sm:$0xff]
    %v2810 = vld [vmem:[#allocation8 + $0x2c8] sm:$0xff]
    %v2811 = vld [vmem:[#allocation8 + $0x2d0] sm:$0xff]
    %v2812 = vld [vmem:[#allocation8 + $0x2d8] sm:$0xff]
    %v2813 = vld [vmem:[#allocation8 + $0x2e0] sm:$0xff]
    %v2814 = vld [vmem:[#allocation8 + $0x2e8] sm:$0xff]
    %v2815 = vld [vmem:[#allocation8 + $0x2f0] sm:$0xff]
    %v2816 = vld [vmem:[#allocation8 + $0x2f8] sm:$0xff]
    %2817 = vmatprep.subr.mxu0 0.0
    %2818 = vmatpush1.msra.mxu0 %v2784
    %2819 = vmatprep.subr.mxu0 0.0
    %2820 = vmatpush1.msra.mxu0 %v2783
    %2821 = vmatprep.subr.mxu0 0.0
    %2822 = vmatpush1.msra.mxu0 %v2782
    %2823 = vmatprep.subr.mxu0 0.0
    %2824 = vmatpush1.msra.mxu0 %v2781
    %2825 = vmatprep.subr.mxu0 0.0
    %2826 = vmatpush1.msra.mxu0 %v2780
    %2827 = vmatprep.subr.mxu0 0.0
    %2828 = vmatpush1.msra.mxu0 %v2779
    %2829 = vmatprep.subr.mxu0 0.0
    %2830 = vmatpush1.msra.mxu0 %v2778
    %2831 = vmatprep.subr.mxu0 0.0
    %2832 = vmatpush1.msra.mxu0 %v2777
    %2833 = vmatprep.subr.mxu0 0.0
    %2834 = vmatpush1.msra.mxu0 %v2776
    %2835 = vmatprep.subr.mxu0 0.0
    %2836 = vmatpush1.msra.mxu0 %v2775
    %2837 = vmatprep.subr.mxu0 0.0
    %2838 = vmatpush1.msra.mxu0 %v2774
    %2839 = vmatprep.subr.mxu0 0.0
    %2840 = vmatpush1.msra.mxu0 %v2773
    %2841 = vmatprep.subr.mxu0 0.0
    %2842 = vmatpush1.msra.mxu0 %v2772
    %2843 = vmatprep.subr.mxu0 0.0
    %2844 = vmatpush1.msra.mxu0 %v2771
    %2845 = vmatprep.subr.mxu0 0.0
    %2846 = vmatpush1.msra.mxu0 %v2770
    %2847 = vmatprep.subr.mxu0 0.0
    %2848 = vmatpush1.msra.mxu0 %v2769
    %2849 = vmatprep.subr.mxu0 0.0
    %2850 = vmatpush2.msra.mxu0 %v2800
    %2851 = vmatprep.subr.mxu0 0.0
    %2852 = vmatpush2.msra.mxu0 %v2799
    %2853 = vmatprep.subr.mxu0 0.0
    %2854 = vmatpush2.msra.mxu0 %v2798
    %2855 = vmatprep.subr.mxu0 0.0
    %2856 = vmatpush2.msra.mxu0 %v2797
    %2857 = vmatprep.subr.mxu0 0.0
    %2858 = vmatpush2.msra.mxu0 %v2796
    %2859 = vmatprep.subr.mxu0 0.0
    %2860 = vmatpush2.msra.mxu0 %v2795
    %2861 = vmatprep.subr.mxu0 0.0
    %2862 = vmatpush2.msra.mxu0 %v2794
    %2863 = vmatprep.subr.mxu0 0.0
    %2864 = vmatpush2.msra.mxu0 %v2793
    %2865 = vmatprep.subr.mxu0 0.0
    %2866 = vmatpush2.msra.mxu0 %v2792
    %2867 = vmatprep.subr.mxu0 0.0
    %2868 = vmatpush2.msra.mxu0 %v2791
    %2869 = vmatprep.subr.mxu0 0.0
    %2870 = vmatpush2.msra.mxu0 %v2790
    %2871 = vmatprep.subr.mxu0 0.0
    %2872 = vmatpush2.msra.mxu0 %v2789
    %2873 = vmatprep.subr.mxu0 0.0
    %2874 = vmatpush2.msra.mxu0 %v2788
    %2875 = vmatprep.subr.mxu0 0.0
    %2876 = vmatpush2.msra.mxu0 %v2787
    %2877 = vmatprep.subr.mxu0 0.0
    %2878 = vmatpush2.msra.mxu0 %v2786
    %2879 = vmatprep.subr.mxu0 0.0
    %2880 = vmatpush2.msra.mxu0 %v2785
    %2881 = vmatprep.mubr.f32.mxu0 %v2323
    %2882 = vmatmul.mubr.f32.gmra.mxu0 %v2129
    %v2883 = vpop.f32.mrf.mxu0
    %v2884 = vadd.f32 0.0, %v2883
    %v2885 = vpop.f32.mrf.mxu0
    %2886 = vmatprep.mubr.f32.mxu0 %v2325
    %2887 = vmatmul.mubr.f32.gmra.mxu0 %v2130
    %v2888 = vpop.f32.mrf.mxu0
    %v2889 = vadd.f32 0.0, %v2888
    %v2890 = vpop.f32.mrf.mxu0
    %2891 = vmatprep.mubr.f32.mxu0 %v2328
    %2892 = vmatmul.mubr.f32.gmra.mxu0 %v2132
    %v2893 = vpop.f32.mrf.mxu0
    %v2894 = vadd.f32 0.0, %v2893
    %v2895 = vpop.f32.mrf.mxu0
    %2896 = vmatprep.mubr.f32.mxu0 %v2330
    %2897 = vmatmul.mubr.f32.gmra.mxu0 %v2133
    %v2898 = vpop.f32.mrf.mxu0
    %v2899 = vadd.f32 0.0, %v2898
    %v2900 = vpop.f32.mrf.mxu0
    %2901 = vmatprep.mubr.f32.mxu0 %v2333
    %2902 = vmatmul.mubr.f32.gmra.mxu0 %v2135
    %v2903 = vpop.f32.mrf.mxu0
    %v2904 = vadd.f32 0.0, %v2903
    %v2905 = vpop.f32.mrf.mxu0
    %2906 = vmatprep.mubr.f32.mxu0 %v2335
    %2907 = vmatmul.mubr.f32.gmra.mxu0 %v2136
    %v2908 = vpop.f32.mrf.mxu0
    %v2909 = vadd.f32 0.0, %v2908
    %v2910 = vpop.f32.mrf.mxu0
    %2911 = vmatprep.mubr.f32.mxu0 %v2338
    %2912 = vmatmul.mubr.f32.gmra.mxu0 %v2138
    %v2913 = vpop.f32.mrf.mxu0
    %v2914 = vadd.f32 0.0, %v2913
    %v2915 = vpop.f32.mrf.mxu0
    %2916 = vmatprep.mubr.f32.mxu0 %v2340
    %2917 = vmatmul.mubr.f32.gmra.mxu0 %v2139
    %v2918 = vpop.f32.mrf.mxu0
    %v2919 = vadd.f32 0.0, %v2918
    %v2920 = vpop.f32.mrf.mxu0
    %2921 = vmatprep.mubr.f32.mxu0 %v2343
    %2922 = vmatmul.mubr.f32.gmra.mxu0 %v2141
    %v2923 = vpop.f32.mrf.mxu0
    %v2924 = vadd.f32 0.0, %v2923
    %v2925 = vpop.f32.mrf.mxu0
    %2926 = vmatprep.mubr.f32.mxu0 %v2345
    %2927 = vmatmul.mubr.f32.gmra.mxu0 %v2142
    %v2928 = vpop.f32.mrf.mxu0
    %v2929 = vadd.f32 0.0, %v2928
    %v2930 = vpop.f32.mrf.mxu0
    %2931 = vmatprep.mubr.f32.mxu0 %v2348
    %2932 = vmatmul.mubr.f32.gmra.mxu0 %v2144
    %v2933 = vpop.f32.mrf.mxu0
    %v2934 = vadd.f32 0.0, %v2933
    %v2935 = vpop.f32.mrf.mxu0
    %2936 = vmatprep.mubr.f32.mxu0 %v2350
    %2937 = vmatmul.mubr.f32.gmra.mxu0 %v2145
    %v2938 = vpop.f32.mrf.mxu0
    %v2939 = vadd.f32 0.0, %v2938
    %v2940 = vpop.f32.mrf.mxu0
    %2941 = vmatprep.mubr.f32.mxu0 %v2353
    %2942 = vmatmul.mubr.f32.gmra.mxu0 %v2147
    %v2943 = vpop.f32.mrf.mxu0
    %v2944 = vadd.f32 0.0, %v2943
    %v2945 = vpop.f32.mrf.mxu0
    %2946 = vmatprep.mubr.f32.mxu0 %v2355
    %2947 = vmatmul.mubr.f32.gmra.mxu0 %v2148
    %v2948 = vpop.f32.mrf.mxu0
    %v2949 = vadd.f32 0.0, %v2948
    %v2950 = vpop.f32.mrf.mxu0
    %2951 = vmatprep.mubr.f32.mxu0 %v2358
    %2952 = vmatmul.mubr.f32.gmra.mxu0 %v2150
    %v2953 = vpop.f32.mrf.mxu0
    %v2954 = vadd.f32 0.0, %v2953
    %v2955 = vpop.f32.mrf.mxu0
    %2956 = vmatprep.mubr.f32.mxu0 %v2360
    %2957 = vmatmul.mubr.f32.gmra.mxu0 %v2151
    %v2958 = vpop.f32.mrf.mxu0
    %v2959 = vadd.f32 0.0, %v2958
    %v2960 = vpop.f32.mrf.mxu0
    %2961 = vmatprep.mubr.f32.mxu0 %v2363
    %2962 = vmatmul.mubr.f32.gmra.mxu0 %v2153
    %v2963 = vpop.f32.mrf.mxu0
    %v2964 = vadd.f32 0.0, %v2963
    %v2965 = vpop.f32.mrf.mxu0
    %2966 = vmatprep.mubr.f32.mxu0 %v2365
    %2967 = vmatmul.mubr.f32.gmra.mxu0 %v2154
    %v2968 = vpop.f32.mrf.mxu0
    %v2969 = vadd.f32 0.0, %v2968
    %v2970 = vpop.f32.mrf.mxu0
    %2971 = vmatprep.mubr.f32.mxu0 %v2368
    %2972 = vmatmul.mubr.f32.gmra.mxu0 %v2156
    %v2973 = vpop.f32.mrf.mxu0
    %v2974 = vadd.f32 0.0, %v2973
    %v2975 = vpop.f32.mrf.mxu0
    %2976 = vmatprep.mubr.f32.mxu0 %v2370
    %2977 = vmatmul.mubr.f32.gmra.mxu0 %v2157
    %v2978 = vpop.f32.mrf.mxu0
    %v2979 = vadd.f32 0.0, %v2978
    %v2980 = vpop.f32.mrf.mxu0
    %2981 = vmatprep.mubr.f32.mxu0 %v2373
    %2982 = vmatmul.mubr.f32.gmra.mxu0 %v2159
    %v2983 = vpop.f32.mrf.mxu0
    %v2984 = vadd.f32 0.0, %v2983
    %v2985 = vpop.f32.mrf.mxu0
    %2986 = vmatprep.mubr.f32.mxu0 %v2375
    %2987 = vmatmul.mubr.f32.gmra.mxu0 %v2160
    %v2988 = vpop.f32.mrf.mxu0
    %v2989 = vadd.f32 0.0, %v2988
    %v2990 = vpop.f32.mrf.mxu0
    %2991 = vmatprep.mubr.f32.mxu0 %v2378
    %2992 = vmatmul.mubr.f32.gmra.mxu0 %v2162
    %v2993 = vpop.f32.mrf.mxu0
    %v2994 = vadd.f32 0.0, %v2993
    %v2995 = vpop.f32.mrf.mxu0
    %2996 = vmatprep.mubr.f32.mxu0 %v2380
    %2997 = vmatmul.mubr.f32.gmra.mxu0 %v2163
    %v2998 = vpop.f32.mrf.mxu0
    %v2999 = vadd.f32 0.0, %v2998
    %v3000 = vpop.f32.mrf.mxu0
    %3001 = vmatprep.mubr.f32.mxu0 %v2383
    %3002 = vmatmul.mubr.f32.gmra.mxu0 %v2165
    %v3003 = vpop.f32.mrf.mxu0
    %v3004 = vadd.f32 0.0, %v3003
    %v3005 = vpop.f32.mrf.mxu0
    %3006 = vmatprep.mubr.f32.mxu0 %v2385
    %3007 = vmatmul.mubr.f32.gmra.mxu0 %v2166
    %v3008 = vpop.f32.mrf.mxu0
    %v3009 = vadd.f32 0.0, %v3008
    %v3010 = vpop.f32.mrf.mxu0
    %3011 = vmatprep.mubr.f32.mxu0 %v2388
    %3012 = vmatmul.mubr.f32.gmra.mxu0 %v2168
    %v3013 = vpop.f32.mrf.mxu0
    %v3014 = vadd.f32 0.0, %v3013
    %v3015 = vpop.f32.mrf.mxu0
    %3016 = vmatprep.mubr.f32.mxu0 %v2390
    %3017 = vmatmul.mubr.f32.gmra.mxu0 %v2169
    %v3018 = vpop.f32.mrf.mxu0
    %v3019 = vadd.f32 0.0, %v3018
    %v3020 = vpop.f32.mrf.mxu0
    %3021 = vmatprep.mubr.f32.mxu0 %v2393
    %3022 = vmatmul.mubr.f32.gmra.mxu0 %v2171
    %v3023 = vpop.f32.mrf.mxu0
    %v3024 = vadd.f32 0.0, %v3023
    %v3025 = vpop.f32.mrf.mxu0
    %3026 = vmatprep.mubr.f32.mxu0 %v2395
    %3027 = vmatmul.mubr.f32.gmra.mxu0 %v2172
    %v3028 = vpop.f32.mrf.mxu0
    %v3029 = vadd.f32 0.0, %v3028
    %v3030 = vpop.f32.mrf.mxu0
    %3031 = vmatprep.mubr.f32.mxu0 %v2398
    %3032 = vmatmul.mubr.f32.gmra.mxu0 %v2174
    %v3033 = vpop.f32.mrf.mxu0
    %v3034 = vadd.f32 0.0, %v3033
    %v3035 = vpop.f32.mrf.mxu0
    %3036 = vmatprep.mubr.f32.mxu0 %v2400
    %3037 = vmatmul.mubr.f32.gmra.mxu0 %v2175
    %v3038 = vpop.f32.mrf.mxu0
    %v3039 = vadd.f32 0.0, %v3038
    %v3040 = vpop.f32.mrf.mxu0
    %3041 = vmatprep.mubr.f32.mxu0 %v2403
    %3042 = vmatmul.mubr.f32.gmra.mxu0 %v2177
    %v3043 = vpop.f32.mrf.mxu0
    %v3044 = vadd.f32 0.0, %v3043
    %v3045 = vpop.f32.mrf.mxu0
    %3046 = vmatprep.mubr.f32.mxu0 %v2405
    %3047 = vmatmul.mubr.f32.gmra.mxu0 %v2178
    %v3048 = vpop.f32.mrf.mxu0
    %v3049 = vadd.f32 0.0, %v3048
    %v3050 = vpop.f32.mrf.mxu0
    %3051 = vmatprep.mubr.f32.mxu0 %v2408
    %3052 = vmatmul.mubr.f32.gmra.mxu0 %v2180
    %v3053 = vpop.f32.mrf.mxu0
    %v3054 = vadd.f32 0.0, %v3053
    %v3055 = vpop.f32.mrf.mxu0
    %3056 = vmatprep.mubr.f32.mxu0 %v2410
    %3057 = vmatmul.mubr.f32.gmra.mxu0 %v2181
    %v3058 = vpop.f32.mrf.mxu0
    %v3059 = vadd.f32 0.0, %v3058
    %v3060 = vpop.f32.mrf.mxu0
    %3061 = vmatprep.mubr.f32.mxu0 %v2413
    %3062 = vmatmul.mubr.f32.gmra.mxu0 %v2183
    %v3063 = vpop.f32.mrf.mxu0
    %v3064 = vadd.f32 0.0, %v3063
    %v3065 = vpop.f32.mrf.mxu0
    %3066 = vmatprep.mubr.f32.mxu0 %v2415
    %3067 = vmatmul.mubr.f32.gmra.mxu0 %v2184
    %v3068 = vpop.f32.mrf.mxu0
    %v3069 = vadd.f32 0.0, %v3068
    %v3070 = vpop.f32.mrf.mxu0
    %3071 = vmatprep.mubr.f32.mxu0 %v2418
    %3072 = vmatmul.mubr.f32.gmra.mxu0 %v2186
    %v3073 = vpop.f32.mrf.mxu0
    %v3074 = vadd.f32 0.0, %v3073
    %v3075 = vpop.f32.mrf.mxu0
    %3076 = vmatprep.mubr.f32.mxu0 %v2420
    %3077 = vmatmul.mubr.f32.gmra.mxu0 %v2187
    %v3078 = vpop.f32.mrf.mxu0
    %v3079 = vadd.f32 0.0, %v3078
    %v3080 = vpop.f32.mrf.mxu0
    %3081 = vmatprep.mubr.f32.mxu0 %v2423
    %3082 = vmatmul.mubr.f32.gmra.mxu0 %v2189
    %v3083 = vpop.f32.mrf.mxu0
    %v3084 = vadd.f32 0.0, %v3083
    %v3085 = vpop.f32.mrf.mxu0
    %3086 = vmatprep.mubr.f32.mxu0 %v2425
    %3087 = vmatmul.mubr.f32.gmra.mxu0 %v2190
    %v3088 = vpop.f32.mrf.mxu0
    %v3089 = vadd.f32 0.0, %v3088
    %v3090 = vpop.f32.mrf.mxu0
    %3091 = vmatprep.mubr.f32.mxu0 %v2428
    %3092 = vmatmul.mubr.f32.gmra.mxu0 %v2192
    %v3093 = vpop.f32.mrf.mxu0
    %v3094 = vadd.f32 0.0, %v3093
    %v3095 = vpop.f32.mrf.mxu0
    %3096 = vmatprep.mubr.f32.mxu0 %v2430
    %3097 = vmatmul.mubr.f32.gmra.mxu0 %v2193
    %v3098 = vpop.f32.mrf.mxu0
    %v3099 = vadd.f32 0.0, %v3098
    %v3100 = vpop.f32.mrf.mxu0
    %3101 = vmatprep.mubr.f32.mxu0 %v2433
    %3102 = vmatmul.mubr.f32.gmra.mxu0 %v2195
    %v3103 = vpop.f32.mrf.mxu0
    %v3104 = vadd.f32 0.0, %v3103
    %v3105 = vpop.f32.mrf.mxu0
    %3106 = vmatprep.mubr.f32.mxu0 %v2435
    %3107 = vmatmul.mubr.f32.gmra.mxu0 %v2196
    %v3108 = vpop.f32.mrf.mxu0
    %v3109 = vadd.f32 0.0, %v3108
    %v3110 = vpop.f32.mrf.mxu0
    %3111 = vmatprep.mubr.f32.mxu0 %v2438
    %3112 = vmatmul.mubr.f32.gmra.mxu0 %v2198
    %v3113 = vpop.f32.mrf.mxu0
    %v3114 = vadd.f32 0.0, %v3113
    %v3115 = vpop.f32.mrf.mxu0
    %3116 = vmatprep.mubr.f32.mxu0 %v2440
    %3117 = vmatmul.mubr.f32.gmra.mxu0 %v2199
    %v3118 = vpop.f32.mrf.mxu0
    %v3119 = vadd.f32 0.0, %v3118
    %v3120 = vpop.f32.mrf.mxu0
    %3121 = vmatprep.mubr.f32.mxu0 %v2443
    %3122 = vmatmul.mubr.f32.gmra.mxu0 %v2201
    %v3123 = vpop.f32.mrf.mxu0
    %v3124 = vadd.f32 0.0, %v3123
    %v3125 = vpop.f32.mrf.mxu0
    %3126 = vmatprep.mubr.f32.mxu0 %v2445
    %3127 = vmatmul.mubr.f32.gmra.mxu0 %v2202
    %v3128 = vpop.f32.mrf.mxu0
    %v3129 = vadd.f32 0.0, %v3128
    %v3130 = vpop.f32.mrf.mxu0
    %3131 = vmatprep.mubr.f32.mxu0 %v2448
    %3132 = vmatmul.mubr.f32.gmra.mxu0 %v2204
    %v3133 = vpop.f32.mrf.mxu0
    %v3134 = vadd.f32 0.0, %v3133
    %v3135 = vpop.f32.mrf.mxu0
    %3136 = vmatprep.mubr.f32.mxu0 %v2450
    %3137 = vmatmul.mubr.f32.gmra.mxu0 %v2205
    %v3138 = vpop.f32.mrf.mxu0
    %v3139 = vadd.f32 0.0, %v3138
    %v3140 = vpop.f32.mrf.mxu0
    %3141 = vmatprep.mubr.f32.mxu0 %v2453
    %3142 = vmatmul.mubr.f32.gmra.mxu0 %v2207
    %v3143 = vpop.f32.mrf.mxu0
    %v3144 = vadd.f32 0.0, %v3143
    %v3145 = vpop.f32.mrf.mxu0
    %3146 = vmatprep.mubr.f32.mxu0 %v2455
    %3147 = vmatmul.mubr.f32.gmra.mxu0 %v2208
    %v3148 = vpop.f32.mrf.mxu0
    %v3149 = vadd.f32 0.0, %v3148
    %v3150 = vpop.f32.mrf.mxu0
    %3151 = vmatprep.mubr.f32.mxu0 %v2458
    %3152 = vmatmul.mubr.f32.gmra.mxu0 %v2210
    %v3153 = vpop.f32.mrf.mxu0
    %v3154 = vadd.f32 0.0, %v3153
    %v3155 = vpop.f32.mrf.mxu0
    %3156 = vmatprep.mubr.f32.mxu0 %v2460
    %3157 = vmatmul.mubr.f32.gmra.mxu0 %v2211
    %v3158 = vpop.f32.mrf.mxu0
    %v3159 = vadd.f32 0.0, %v3158
    %v3160 = vpop.f32.mrf.mxu0
    %3161 = vmatprep.mubr.f32.mxu0 %v2463
    %3162 = vmatmul.mubr.f32.gmra.mxu0 %v2213
    %v3163 = vpop.f32.mrf.mxu0
    %v3164 = vadd.f32 0.0, %v3163
    %v3165 = vpop.f32.mrf.mxu0
    %3166 = vmatprep.mubr.f32.mxu0 %v2465
    %3167 = vmatmul.mubr.f32.gmra.mxu0 %v2214
    %v3168 = vpop.f32.mrf.mxu0
    %v3169 = vadd.f32 0.0, %v3168
    %v3170 = vpop.f32.mrf.mxu0
    %3171 = vmatprep.mubr.f32.mxu0 %v2468
    %3172 = vmatmul.mubr.f32.gmra.mxu0 %v2216
    %v3173 = vpop.f32.mrf.mxu0
    %v3174 = vadd.f32 0.0, %v3173
    %v3175 = vpop.f32.mrf.mxu0
    %3176 = vmatprep.mubr.f32.mxu0 %v2470
    %3177 = vmatmul.mubr.f32.gmra.mxu0 %v2217
    %v3178 = vpop.f32.mrf.mxu0
    %v3179 = vadd.f32 0.0, %v3178
    %v3180 = vpop.f32.mrf.mxu0
    %3181 = vmatprep.mubr.f32.mxu0 %v2473
    %3182 = vmatmul.mubr.f32.gmra.mxu0 %v2219
    %v3183 = vpop.f32.mrf.mxu0
    %v3184 = vadd.f32 0.0, %v3183
    %v3185 = vpop.f32.mrf.mxu0
    %3186 = vmatprep.mubr.f32.mxu0 %v2475
    %3187 = vmatmul.mubr.f32.gmra.mxu0 %v2220
    %v3188 = vpop.f32.mrf.mxu0
    %v3189 = vadd.f32 0.0, %v3188
    %v3190 = vpop.f32.mrf.mxu0
    %3191 = vmatprep.mubr.f32.mxu0 %v2478
    %3192 = vmatmul.mubr.f32.gmra.mxu0 %v2222
    %v3193 = vpop.f32.mrf.mxu0
    %v3194 = vadd.f32 0.0, %v3193
    %v3195 = vpop.f32.mrf.mxu0
    %3196 = vmatprep.mubr.f32.mxu0 %v2480
    %3197 = vmatmul.mubr.f32.gmra.mxu0 %v2223
    %v3198 = vpop.f32.mrf.mxu0
    %v3199 = vadd.f32 0.0, %v3198
    %v3200 = vpop.f32.mrf.mxu0
    %3201 = vdwg.mxu0
    %3202 = vmatprep.subr.mxu0 0.0
    %3203 = vmatpush1.msra.mxu0 %v2816
    %3204 = vmatprep.subr.mxu0 0.0
    %3205 = vmatpush1.msra.mxu0 %v2815
    %3206 = vmatprep.subr.mxu0 0.0
    %3207 = vmatpush1.msra.mxu0 %v2814
    %3208 = vmatprep.subr.mxu0 0.0
    %3209 = vmatpush1.msra.mxu0 %v2813
    %3210 = vmatprep.subr.mxu0 0.0
    %3211 = vmatpush1.msra.mxu0 %v2812
    %3212 = vmatprep.subr.mxu0 0.0
    %3213 = vmatpush1.msra.mxu0 %v2811
    %3214 = vmatprep.subr.mxu0 0.0
    %3215 = vmatpush1.msra.mxu0 %v2810
    %3216 = vmatprep.subr.mxu0 0.0
    %3217 = vmatpush1.msra.mxu0 %v2809
    %3218 = vmatprep.subr.mxu0 0.0
    %3219 = vmatpush1.msra.mxu0 %v2808
    %3220 = vmatprep.subr.mxu0 0.0
    %3221 = vmatpush1.msra.mxu0 %v2807
    %3222 = vmatprep.subr.mxu0 0.0
    %3223 = vmatpush1.msra.mxu0 %v2806
    %3224 = vmatprep.subr.mxu0 0.0
    %3225 = vmatpush1.msra.mxu0 %v2805
    %3226 = vmatprep.subr.mxu0 0.0
    %3227 = vmatpush1.msra.mxu0 %v2804
    %3228 = vmatprep.subr.mxu0 0.0
    %3229 = vmatpush1.msra.mxu0 %v2803
    %3230 = vmatprep.subr.mxu0 0.0
    %3231 = vmatpush1.msra.mxu0 %v2802
    %3232 = vmatprep.subr.mxu0 0.0
    %3233 = vmatpush1.msra.mxu0 %v2801
    %3234 = vmatprep.subr.mxu0 0.0
    %3235 = vmatpush2.msra.mxu0 0.0
    %3236 = vmatprep.subr.mxu0 0.0
    %3237 = vmatpush2.msra.mxu0 0.0
    %3238 = vmatprep.subr.mxu0 0.0
    %3239 = vmatpush2.msra.mxu0 0.0
    %3240 = vmatprep.subr.mxu0 0.0
    %3241 = vmatpush2.msra.mxu0 0.0
    %3242 = vmatprep.subr.mxu0 0.0
    %3243 = vmatpush2.msra.mxu0 0.0
    %3244 = vmatprep.subr.mxu0 0.0
    %3245 = vmatpush2.msra.mxu0 0.0
    %3246 = vmatprep.subr.mxu0 0.0
    %3247 = vmatpush2.msra.mxu0 0.0
    %3248 = vmatprep.subr.mxu0 0.0
    %3249 = vmatpush2.msra.mxu0 0.0
    %3250 = vmatprep.subr.mxu0 0.0
    %3251 = vmatpush2.msra.mxu0 0.0
    %3252 = vmatprep.subr.mxu0 0.0
    %3253 = vmatpush2.msra.mxu0 0.0
    %3254 = vmatprep.subr.mxu0 0.0
    %3255 = vmatpush2.msra.mxu0 0.0
    %3256 = vmatprep.subr.mxu0 0.0
    %3257 = vmatpush2.msra.mxu0 0.0
    %3258 = vmatprep.subr.mxu0 0.0
    %3259 = vmatpush2.msra.mxu0 0.0
    %3260 = vmatprep.subr.mxu0 0.0
    %3261 = vmatpush2.msra.mxu0 0.0
    %3262 = vmatprep.subr.mxu0 0.0
    %3263 = vmatpush2.msra.mxu0 0.0
    %3264 = vmatprep.subr.mxu0 0.0
    %3265 = vmatpush2.msra.mxu0 0.0
    %3266 = vmatprep.mubr.f32.mxu0 0.0
    %3267 = vmatmul.mubr.f32.gmra.mxu0 %v2547
    %v3268 = vpop.f32.mrf.mxu0
    %v3269 = vadd.f32 %v2884, %v3268
    %v3270 = vpop.f32.mrf.mxu0
    %3271 = vmatprep.mubr.f32.mxu0 0.0
    %3272 = vmatmul.mubr.f32.gmra.mxu0 %v2549
    %v3273 = vpop.f32.mrf.mxu0
    %v3274 = vadd.f32 %v2889, %v3273
    %v3275 = vpop.f32.mrf.mxu0
    %3276 = vmatprep.mubr.f32.mxu0 0.0
    %3277 = vmatmul.mubr.f32.gmra.mxu0 %v2552
    %v3278 = vpop.f32.mrf.mxu0
    %v3279 = vadd.f32 %v2894, %v3278
    %v3280 = vpop.f32.mrf.mxu0
    %3281 = vmatprep.mubr.f32.mxu0 0.0
    %3282 = vmatmul.mubr.f32.gmra.mxu0 %v2554
    %v3283 = vpop.f32.mrf.mxu0
    %v3284 = vadd.f32 %v2899, %v3283
    %v3285 = vpop.f32.mrf.mxu0
    %3286 = vmatprep.mubr.f32.mxu0 0.0
    %3287 = vmatmul.mubr.f32.gmra.mxu0 %v2557
    %v3288 = vpop.f32.mrf.mxu0
    %v3289 = vadd.f32 %v2904, %v3288
    %v3290 = vpop.f32.mrf.mxu0
    %3291 = vmatprep.mubr.f32.mxu0 0.0
    %3292 = vmatmul.mubr.f32.gmra.mxu0 %v2559
    %v3293 = vpop.f32.mrf.mxu0
    %v3294 = vadd.f32 %v2909, %v3293
    %v3295 = vpop.f32.mrf.mxu0
    %3296 = vmatprep.mubr.f32.mxu0 0.0
    %3297 = vmatmul.mubr.f32.gmra.mxu0 %v2562
    %v3298 = vpop.f32.mrf.mxu0
    %v3299 = vadd.f32 %v2914, %v3298
    %v3300 = vpop.f32.mrf.mxu0
    %3301 = vmatprep.mubr.f32.mxu0 0.0
    %3302 = vmatmul.mubr.f32.gmra.mxu0 %v2564
    %v3303 = vpop.f32.mrf.mxu0
    %v3304 = vadd.f32 %v2919, %v3303
    %v3305 = vpop.f32.mrf.mxu0
    %3306 = vmatprep.mubr.f32.mxu0 0.0
    %3307 = vmatmul.mubr.f32.gmra.mxu0 %v2567
    %v3308 = vpop.f32.mrf.mxu0
    %v3309 = vadd.f32 %v2924, %v3308
    %v3310 = vpop.f32.mrf.mxu0
    %3311 = vmatprep.mubr.f32.mxu0 0.0
    %3312 = vmatmul.mubr.f32.gmra.mxu0 %v2569
    %v3313 = vpop.f32.mrf.mxu0
    %v3314 = vadd.f32 %v2929, %v3313
    %v3315 = vpop.f32.mrf.mxu0
    %3316 = vmatprep.mubr.f32.mxu0 0.0
    %3317 = vmatmul.mubr.f32.gmra.mxu0 %v2572
    %v3318 = vpop.f32.mrf.mxu0
    %v3319 = vadd.f32 %v2934, %v3318
    %v3320 = vpop.f32.mrf.mxu0
    %3321 = vmatprep.mubr.f32.mxu0 0.0
    %3322 = vmatmul.mubr.f32.gmra.mxu0 %v2574
    %v3323 = vpop.f32.mrf.mxu0
    %v3324 = vadd.f32 %v2939, %v3323
    %v3325 = vpop.f32.mrf.mxu0
    %3326 = vmatprep.mubr.f32.mxu0 0.0
    %3327 = vmatmul.mubr.f32.gmra.mxu0 %v2577
    %v3328 = vpop.f32.mrf.mxu0
    %v3329 = vadd.f32 %v2944, %v3328
    %v3330 = vpop.f32.mrf.mxu0
    %3331 = vmatprep.mubr.f32.mxu0 0.0
    %3332 = vmatmul.mubr.f32.gmra.mxu0 %v2579
    %v3333 = vpop.f32.mrf.mxu0
    %v3334 = vadd.f32 %v2949, %v3333
    %v3335 = vpop.f32.mrf.mxu0
    %3336 = vmatprep.mubr.f32.mxu0 0.0
    %3337 = vmatmul.mubr.f32.gmra.mxu0 %v2582
    %v3338 = vpop.f32.mrf.mxu0
    %v3339 = vadd.f32 %v2954, %v3338
    %v3340 = vpop.f32.mrf.mxu0
    %3341 = vmatprep.mubr.f32.mxu0 0.0
    %3342 = vmatmul.mubr.f32.gmra.mxu0 %v2584
    %v3343 = vpop.f32.mrf.mxu0
    %v3344 = vadd.f32 %v2959, %v3343
    %v3345 = vpop.f32.mrf.mxu0
    %3346 = vmatprep.mubr.f32.mxu0 0.0
    %3347 = vmatmul.mubr.f32.gmra.mxu0 %v2587
    %v3348 = vpop.f32.mrf.mxu0
    %v3349 = vadd.f32 %v2964, %v3348
    %v3350 = vpop.f32.mrf.mxu0
    %3351 = vmatprep.mubr.f32.mxu0 0.0
    %3352 = vmatmul.mubr.f32.gmra.mxu0 %v2589
    %v3353 = vpop.f32.mrf.mxu0
    %v3354 = vadd.f32 %v2969, %v3353
    %v3355 = vpop.f32.mrf.mxu0
    %3356 = vmatprep.mubr.f32.mxu0 0.0
    %3357 = vmatmul.mubr.f32.gmra.mxu0 %v2592
    %v3358 = vpop.f32.mrf.mxu0
    %v3359 = vadd.f32 %v2974, %v3358
    %v3360 = vpop.f32.mrf.mxu0
    %3361 = vmatprep.mubr.f32.mxu0 0.0
    %3362 = vmatmul.mubr.f32.gmra.mxu0 %v2594
    %v3363 = vpop.f32.mrf.mxu0
    %v3364 = vadd.f32 %v2979, %v3363
    %v3365 = vpop.f32.mrf.mxu0
    %3366 = vmatprep.mubr.f32.mxu0 0.0
    %3367 = vmatmul.mubr.f32.gmra.mxu0 %v2597
    %v3368 = vpop.f32.mrf.mxu0
    %v3369 = vadd.f32 %v2984, %v3368
    %v3370 = vpop.f32.mrf.mxu0
    %3371 = vmatprep.mubr.f32.mxu0 0.0
    %3372 = vmatmul.mubr.f32.gmra.mxu0 %v2599
    %v3373 = vpop.f32.mrf.mxu0
    %v3374 = vadd.f32 %v2989, %v3373
    %v3375 = vpop.f32.mrf.mxu0
    %3376 = vmatprep.mubr.f32.mxu0 0.0
    %3377 = vmatmul.mubr.f32.gmra.mxu0 %v2602
    %v3378 = vpop.f32.mrf.mxu0
    %v3379 = vadd.f32 %v2994, %v3378
    %v3380 = vpop.f32.mrf.mxu0
    %3381 = vmatprep.mubr.f32.mxu0 0.0
    %3382 = vmatmul.mubr.f32.gmra.mxu0 %v2604
    %v3383 = vpop.f32.mrf.mxu0
    %v3384 = vadd.f32 %v2999, %v3383
    %v3385 = vpop.f32.mrf.mxu0
    %3386 = vmatprep.mubr.f32.mxu0 0.0
    %3387 = vmatmul.mubr.f32.gmra.mxu0 %v2607
    %v3388 = vpop.f32.mrf.mxu0
    %v3389 = vadd.f32 %v3004, %v3388
    %v3390 = vpop.f32.mrf.mxu0
    %3391 = vmatprep.mubr.f32.mxu0 0.0
    %3392 = vmatmul.mubr.f32.gmra.mxu0 %v2609
    %v3393 = vpop.f32.mrf.mxu0
    %v3394 = vadd.f32 %v3009, %v3393
    %v3395 = vpop.f32.mrf.mxu0
    %3396 = vmatprep.mubr.f32.mxu0 0.0
    %3397 = vmatmul.mubr.f32.gmra.mxu0 %v2612
    %v3398 = vpop.f32.mrf.mxu0
    %v3399 = vadd.f32 %v3014, %v3398
    %v3400 = vpop.f32.mrf.mxu0
    %3401 = vmatprep.mubr.f32.mxu0 0.0
    %3402 = vmatmul.mubr.f32.gmra.mxu0 %v2614
    %v3403 = vpop.f32.mrf.mxu0
    %v3404 = vadd.f32 %v3019, %v3403
    %v3405 = vpop.f32.mrf.mxu0
    %3406 = vmatprep.mubr.f32.mxu0 0.0
    %3407 = vmatmul.mubr.f32.gmra.mxu0 %v2617
    %v3408 = vpop.f32.mrf.mxu0
    %v3409 = vadd.f32 %v3024, %v3408
    %v3410 = vpop.f32.mrf.mxu0
    %3411 = vmatprep.mubr.f32.mxu0 0.0
    %3412 = vmatmul.mubr.f32.gmra.mxu0 %v2619
    %v3413 = vpop.f32.mrf.mxu0
    %v3414 = vadd.f32 %v3029, %v3413
    %v3415 = vpop.f32.mrf.mxu0
    %3416 = vmatprep.mubr.f32.mxu0 0.0
    %3417 = vmatmul.mubr.f32.gmra.mxu0 %v2622
    %v3418 = vpop.f32.mrf.mxu0
    %v3419 = vadd.f32 %v3034, %v3418
    %v3420 = vpop.f32.mrf.mxu0
    %3421 = vmatprep.mubr.f32.mxu0 0.0
    %3422 = vmatmul.mubr.f32.gmra.mxu0 %v2624
    %v3423 = vpop.f32.mrf.mxu0
    %v3424 = vadd.f32 %v3039, %v3423
    %v3425 = vpop.f32.mrf.mxu0
    %3426 = vmatprep.mubr.f32.mxu0 0.0
    %3427 = vmatmul.mubr.f32.gmra.mxu0 %v2627
    %v3428 = vpop.f32.mrf.mxu0
    %v3429 = vadd.f32 %v3044, %v3428
    %v3430 = vpop.f32.mrf.mxu0
    %3431 = vmatprep.mubr.f32.mxu0 0.0
    %3432 = vmatmul.mubr.f32.gmra.mxu0 %v2629
    %v3433 = vpop.f32.mrf.mxu0
    %v3434 = vadd.f32 %v3049, %v3433
    %v3435 = vpop.f32.mrf.mxu0
    %3436 = vmatprep.mubr.f32.mxu0 0.0
    %3437 = vmatmul.mubr.f32.gmra.mxu0 %v2632
    %v3438 = vpop.f32.mrf.mxu0
    %v3439 = vadd.f32 %v3054, %v3438
    %v3440 = vpop.f32.mrf.mxu0
    %3441 = vmatprep.mubr.f32.mxu0 0.0
    %3442 = vmatmul.mubr.f32.gmra.mxu0 %v2634
    %v3443 = vpop.f32.mrf.mxu0
    %v3444 = vadd.f32 %v3059, %v3443
    %v3445 = vpop.f32.mrf.mxu0
    %3446 = vmatprep.mubr.f32.mxu0 0.0
    %3447 = vmatmul.mubr.f32.gmra.mxu0 %v2637
    %v3448 = vpop.f32.mrf.mxu0
    %v3449 = vadd.f32 %v3064, %v3448
    %v3450 = vpop.f32.mrf.mxu0
    %3451 = vmatprep.mubr.f32.mxu0 0.0
    %3452 = vmatmul.mubr.f32.gmra.mxu0 %v2639
    %v3453 = vpop.f32.mrf.mxu0
    %v3454 = vadd.f32 %v3069, %v3453
    %v3455 = vpop.f32.mrf.mxu0
    %3456 = vmatprep.mubr.f32.mxu0 0.0
    %3457 = vmatmul.mubr.f32.gmra.mxu0 %v2642
    %v3458 = vpop.f32.mrf.mxu0
    %v3459 = vadd.f32 %v3074, %v3458
    %v3460 = vpop.f32.mrf.mxu0
    %3461 = vmatprep.mubr.f32.mxu0 0.0
    %3462 = vmatmul.mubr.f32.gmra.mxu0 %v2644
    %v3463 = vpop.f32.mrf.mxu0
    %v3464 = vadd.f32 %v3079, %v3463
    %v3465 = vpop.f32.mrf.mxu0
    %3466 = vmatprep.mubr.f32.mxu0 0.0
    %3467 = vmatmul.mubr.f32.gmra.mxu0 %v2647
    %v3468 = vpop.f32.mrf.mxu0
    %v3469 = vadd.f32 %v3084, %v3468
    %v3470 = vpop.f32.mrf.mxu0
    %3471 = vmatprep.mubr.f32.mxu0 0.0
    %3472 = vmatmul.mubr.f32.gmra.mxu0 %v2649
    %v3473 = vpop.f32.mrf.mxu0
    %v3474 = vadd.f32 %v3089, %v3473
    %v3475 = vpop.f32.mrf.mxu0
    %3476 = vmatprep.mubr.f32.mxu0 0.0
    %3477 = vmatmul.mubr.f32.gmra.mxu0 %v2652
    %v3478 = vpop.f32.mrf.mxu0
    %v3479 = vadd.f32 %v3094, %v3478
    %v3480 = vpop.f32.mrf.mxu0
    %3481 = vmatprep.mubr.f32.mxu0 0.0
    %3482 = vmatmul.mubr.f32.gmra.mxu0 %v2654
    %v3483 = vpop.f32.mrf.mxu0
    %v3484 = vadd.f32 %v3099, %v3483
    %v3485 = vpop.f32.mrf.mxu0
    %3486 = vmatprep.mubr.f32.mxu0 0.0
    %3487 = vmatmul.mubr.f32.gmra.mxu0 %v2657
    %v3488 = vpop.f32.mrf.mxu0
    %v3489 = vadd.f32 %v3104, %v3488
    %v3490 = vpop.f32.mrf.mxu0
    %3491 = vmatprep.mubr.f32.mxu0 0.0
    %3492 = vmatmul.mubr.f32.gmra.mxu0 %v2659
    %v3493 = vpop.f32.mrf.mxu0
    %v3494 = vadd.f32 %v3109, %v3493
    %v3495 = vpop.f32.mrf.mxu0
    %3496 = vmatprep.mubr.f32.mxu0 0.0
    %3497 = vmatmul.mubr.f32.gmra.mxu0 %v2662
    %v3498 = vpop.f32.mrf.mxu0
    %v3499 = vadd.f32 %v3114, %v3498
    %v3500 = vpop.f32.mrf.mxu0
    %3501 = vmatprep.mubr.f32.mxu0 0.0
    %3502 = vmatmul.mubr.f32.gmra.mxu0 %v2664
    %v3503 = vpop.f32.mrf.mxu0
    %v3504 = vadd.f32 %v3119, %v3503
    %v3505 = vpop.f32.mrf.mxu0
    %3506 = vmatprep.mubr.f32.mxu0 0.0
    %3507 = vmatmul.mubr.f32.gmra.mxu0 %v2667
    %v3508 = vpop.f32.mrf.mxu0
    %v3509 = vadd.f32 %v3124, %v3508
    %v3510 = vpop.f32.mrf.mxu0
    %3511 = vmatprep.mubr.f32.mxu0 0.0
    %3512 = vmatmul.mubr.f32.gmra.mxu0 %v2669
    %v3513 = vpop.f32.mrf.mxu0
    %v3514 = vadd.f32 %v3129, %v3513
    %v3515 = vpop.f32.mrf.mxu0
    %3516 = vmatprep.mubr.f32.mxu0 0.0
    %3517 = vmatmul.mubr.f32.gmra.mxu0 %v2672
    %v3518 = vpop.f32.mrf.mxu0
    %v3519 = vadd.f32 %v3134, %v3518
    %v3520 = vpop.f32.mrf.mxu0
    %3521 = vmatprep.mubr.f32.mxu0 0.0
    %3522 = vmatmul.mubr.f32.gmra.mxu0 %v2674
    %v3523 = vpop.f32.mrf.mxu0
    %v3524 = vadd.f32 %v3139, %v3523
    %v3525 = vpop.f32.mrf.mxu0
    %3526 = vmatprep.mubr.f32.mxu0 0.0
    %3527 = vmatmul.mubr.f32.gmra.mxu0 %v2677
    %v3528 = vpop.f32.mrf.mxu0
    %v3529 = vadd.f32 %v3144, %v3528
    %v3530 = vpop.f32.mrf.mxu0
    %3531 = vmatprep.mubr.f32.mxu0 0.0
    %3532 = vmatmul.mubr.f32.gmra.mxu0 %v2679
    %v3533 = vpop.f32.mrf.mxu0
    %v3534 = vadd.f32 %v3149, %v3533
    %v3535 = vpop.f32.mrf.mxu0
    %3536 = vmatprep.mubr.f32.mxu0 0.0
    %3537 = vmatmul.mubr.f32.gmra.mxu0 %v2682
    %v3538 = vpop.f32.mrf.mxu0
    %v3539 = vadd.f32 %v3154, %v3538
    %v3540 = vpop.f32.mrf.mxu0
    %3541 = vmatprep.mubr.f32.mxu0 0.0
    %3542 = vmatmul.mubr.f32.gmra.mxu0 %v2684
    %v3543 = vpop.f32.mrf.mxu0
    %v3544 = vadd.f32 %v3159, %v3543
    %v3545 = vpop.f32.mrf.mxu0
    %3546 = vmatprep.mubr.f32.mxu0 0.0
    %3547 = vmatmul.mubr.f32.gmra.mxu0 %v2687
    %v3548 = vpop.f32.mrf.mxu0
    %v3549 = vadd.f32 %v3164, %v3548
    %v3550 = vpop.f32.mrf.mxu0
    %3551 = vmatprep.mubr.f32.mxu0 0.0
    %3552 = vmatmul.mubr.f32.gmra.mxu0 %v2689
    %v3553 = vpop.f32.mrf.mxu0
    %v3554 = vadd.f32 %v3169, %v3553
    %v3555 = vpop.f32.mrf.mxu0
    %3556 = vmatprep.mubr.f32.mxu0 0.0
    %3557 = vmatmul.mubr.f32.gmra.mxu0 %v2692
    %v3558 = vpop.f32.mrf.mxu0
    %v3559 = vadd.f32 %v3174, %v3558
    %v3560 = vpop.f32.mrf.mxu0
    %3561 = vmatprep.mubr.f32.mxu0 0.0
    %3562 = vmatmul.mubr.f32.gmra.mxu0 %v2694
    %v3563 = vpop.f32.mrf.mxu0
    %v3564 = vadd.f32 %v3179, %v3563
    %v3565 = vpop.f32.mrf.mxu0
    %3566 = vmatprep.mubr.f32.mxu0 0.0
    %3567 = vmatmul.mubr.f32.gmra.mxu0 %v2697
    %v3568 = vpop.f32.mrf.mxu0
    %v3569 = vadd.f32 %v3184, %v3568
    %v3570 = vpop.f32.mrf.mxu0
    %3571 = vmatprep.mubr.f32.mxu0 0.0
    %3572 = vmatmul.mubr.f32.gmra.mxu0 %v2699
    %v3573 = vpop.f32.mrf.mxu0
    %v3574 = vadd.f32 %v3189, %v3573
    %v3575 = vpop.f32.mrf.mxu0
    %3576 = vmatprep.mubr.f32.mxu0 0.0
    %3577 = vmatmul.mubr.f32.gmra.mxu0 %v2702
    %v3578 = vpop.f32.mrf.mxu0
    %v3579 = vadd.f32 %v3194, %v3578
    %v3580 = vpop.f32.mrf.mxu0
    %3581 = vmatprep.mubr.f32.mxu0 0.0
    %3582 = vmatmul.mubr.f32.gmra.mxu0 %v2704
    %v3583 = vpop.f32.mrf.mxu0
    %v3584 = vadd.f32 %v3199, %v3583
    %v3585 = vpop.f32.mrf.mxu0
    %3586 = vdwg.mxu0
    %3587 = vmatprep.subr.mxu0 0.0
    %3588 = vmatpush1.msra.mxu0 %v2096
    %3589 = vmatprep.subr.mxu0 0.0
    %3590 = vmatpush1.msra.mxu0 %v2095
    %3591 = vmatprep.subr.mxu0 0.0
    %3592 = vmatpush1.msra.mxu0 %v2094
    %3593 = vmatprep.subr.mxu0 0.0
    %3594 = vmatpush1.msra.mxu0 %v2093
    %3595 = vmatprep.subr.mxu0 0.0
    %3596 = vmatpush1.msra.mxu0 %v2092
    %3597 = vmatprep.subr.mxu0 0.0
    %3598 = vmatpush1.msra.mxu0 %v2091
    %3599 = vmatprep.subr.mxu0 0.0
    %3600 = vmatpush1.msra.mxu0 %v2090
    %3601 = vmatprep.subr.mxu0 0.0
    %3602 = vmatpush1.msra.mxu0 %v2089
    %3603 = vmatprep.subr.mxu0 0.0
    %3604 = vmatpush1.msra.mxu0 %v2088
    %3605 = vmatprep.subr.mxu0 0.0
    %3606 = vmatpush1.msra.mxu0 %v2087
    %3607 = vmatprep.subr.mxu0 0.0
    %3608 = vmatpush1.msra.mxu0 %v2086
    %3609 = vmatprep.subr.mxu0 0.0
    %3610 = vmatpush1.msra.mxu0 %v2085
    %3611 = vmatprep.subr.mxu0 0.0
    %3612 = vmatpush1.msra.mxu0 %v2084
    %3613 = vmatprep.subr.mxu0 0.0
    %3614 = vmatpush1.msra.mxu0 %v2083
    %3615 = vmatprep.subr.mxu0 0.0
    %3616 = vmatpush1.msra.mxu0 %v2082
    %3617 = vmatprep.subr.mxu0 0.0
    %3618 = vmatpush1.msra.mxu0 %v2081
    %3619 = vmatprep.subr.mxu0 0.0
    %3620 = vmatpush2.msra.mxu0 %v2112
    %3621 = vmatprep.subr.mxu0 0.0
    %3622 = vmatpush2.msra.mxu0 %v2111
    %3623 = vmatprep.subr.mxu0 0.0
    %3624 = vmatpush2.msra.mxu0 %v2110
    %3625 = vmatprep.subr.mxu0 0.0
    %3626 = vmatpush2.msra.mxu0 %v2109
    %3627 = vmatprep.subr.mxu0 0.0
    %3628 = vmatpush2.msra.mxu0 %v2108
    %3629 = vmatprep.subr.mxu0 0.0
    %3630 = vmatpush2.msra.mxu0 %v2107
    %3631 = vmatprep.subr.mxu0 0.0
    %3632 = vmatpush2.msra.mxu0 %v2106
    %3633 = vmatprep.subr.mxu0 0.0
    %3634 = vmatpush2.msra.mxu0 %v2105
    %3635 = vmatprep.subr.mxu0 0.0
    %3636 = vmatpush2.msra.mxu0 %v2104
    %3637 = vmatprep.subr.mxu0 0.0
    %3638 = vmatpush2.msra.mxu0 %v2103
    %3639 = vmatprep.subr.mxu0 0.0
    %3640 = vmatpush2.msra.mxu0 %v2102
    %3641 = vmatprep.subr.mxu0 0.0
    %3642 = vmatpush2.msra.mxu0 %v2101
    %3643 = vmatprep.subr.mxu0 0.0
    %3644 = vmatpush2.msra.mxu0 %v2100
    %3645 = vmatprep.subr.mxu0 0.0
    %3646 = vmatpush2.msra.mxu0 %v2099
    %3647 = vmatprep.subr.mxu0 0.0
    %3648 = vmatpush2.msra.mxu0 %v2098
    %3649 = vmatprep.subr.mxu0 0.0
    %3650 = vmatpush2.msra.mxu0 %v2097
    %3651 = vmatprep.mubr.f32.mxu0 %v1634
    %3652 = vmatmul.mubr.f32.gmra.mxu0 %v1439
    %v3653 = vpop.f32.mrf.mxu0
    %v3654 = vadd.f32 %v3269, %v3653
    %v3655 = vpop.f32.mrf.mxu0
    %3656 = vmatprep.mubr.f32.mxu0 %v1636
    %3657 = vmatmul.mubr.f32.gmra.mxu0 %v1440
    %v3658 = vpop.f32.mrf.mxu0
    %v3659 = vadd.f32 %v3274, %v3658
    %v3660 = vpop.f32.mrf.mxu0
    %3661 = vmatprep.mubr.f32.mxu0 %v1639
    %3662 = vmatmul.mubr.f32.gmra.mxu0 %v1442
    %v3663 = vpop.f32.mrf.mxu0
    %v3664 = vadd.f32 %v3279, %v3663
    %v3665 = vpop.f32.mrf.mxu0
    %3666 = vmatprep.mubr.f32.mxu0 %v1641
    %3667 = vmatmul.mubr.f32.gmra.mxu0 %v1443
    %v3668 = vpop.f32.mrf.mxu0
    %v3669 = vadd.f32 %v3284, %v3668
    %v3670 = vpop.f32.mrf.mxu0
    %3671 = vmatprep.mubr.f32.mxu0 %v1644
    %3672 = vmatmul.mubr.f32.gmra.mxu0 %v1445
    %v3673 = vpop.f32.mrf.mxu0
    %v3674 = vadd.f32 %v3289, %v3673
    %v3675 = vpop.f32.mrf.mxu0
    %3676 = vmatprep.mubr.f32.mxu0 %v1646
    %3677 = vmatmul.mubr.f32.gmra.mxu0 %v1446
    %v3678 = vpop.f32.mrf.mxu0
    %v3679 = vadd.f32 %v3294, %v3678
    %v3680 = vpop.f32.mrf.mxu0
    %3681 = vmatprep.mubr.f32.mxu0 %v1649
    %3682 = vmatmul.mubr.f32.gmra.mxu0 %v1448
    %v3683 = vpop.f32.mrf.mxu0
    %v3684 = vadd.f32 %v3299, %v3683
    %v3685 = vpop.f32.mrf.mxu0
    %3686 = vmatprep.mubr.f32.mxu0 %v1651
    %3687 = vmatmul.mubr.f32.gmra.mxu0 %v1449
    %v3688 = vpop.f32.mrf.mxu0
    %v3689 = vadd.f32 %v3304, %v3688
    %v3690 = vpop.f32.mrf.mxu0
    %3691 = vmatprep.mubr.f32.mxu0 %v1654
    %3692 = vmatmul.mubr.f32.gmra.mxu0 %v1451
    %v3693 = vpop.f32.mrf.mxu0
    %v3694 = vadd.f32 %v3309, %v3693
    %v3695 = vpop.f32.mrf.mxu0
    %3696 = vmatprep.mubr.f32.mxu0 %v1656
    %3697 = vmatmul.mubr.f32.gmra.mxu0 %v1452
    %v3698 = vpop.f32.mrf.mxu0
    %v3699 = vadd.f32 %v3314, %v3698
    %v3700 = vpop.f32.mrf.mxu0
    %3701 = vmatprep.mubr.f32.mxu0 %v1659
    %3702 = vmatmul.mubr.f32.gmra.mxu0 %v1454
    %v3703 = vpop.f32.mrf.mxu0
    %v3704 = vadd.f32 %v3319, %v3703
    %v3705 = vpop.f32.mrf.mxu0
    %3706 = vmatprep.mubr.f32.mxu0 %v1661
    %3707 = vmatmul.mubr.f32.gmra.mxu0 %v1455
    %v3708 = vpop.f32.mrf.mxu0
    %v3709 = vadd.f32 %v3324, %v3708
    %v3710 = vpop.f32.mrf.mxu0
    %3711 = vmatprep.mubr.f32.mxu0 %v1664
    %3712 = vmatmul.mubr.f32.gmra.mxu0 %v1457
    %v3713 = vpop.f32.mrf.mxu0
    %v3714 = vadd.f32 %v3329, %v3713
    %v3715 = vpop.f32.mrf.mxu0
    %3716 = vmatprep.mubr.f32.mxu0 %v1666
    %3717 = vmatmul.mubr.f32.gmra.mxu0 %v1458
    %v3718 = vpop.f32.mrf.mxu0
    %v3719 = vadd.f32 %v3334, %v3718
    %v3720 = vpop.f32.mrf.mxu0
    %3721 = vmatprep.mubr.f32.mxu0 %v1669
    %3722 = vmatmul.mubr.f32.gmra.mxu0 %v1460
    %v3723 = vpop.f32.mrf.mxu0
    %v3724 = vadd.f32 %v3339, %v3723
    %v3725 = vpop.f32.mrf.mxu0
    %3726 = vmatprep.mubr.f32.mxu0 %v1671
    %3727 = vmatmul.mubr.f32.gmra.mxu0 %v1461
    %v3728 = vpop.f32.mrf.mxu0
    %v3729 = vadd.f32 %v3344, %v3728
    %v3730 = vpop.f32.mrf.mxu0
    %3731 = vmatprep.mubr.f32.mxu0 %v1674
    %3732 = vmatmul.mubr.f32.gmra.mxu0 %v1463
    %v3733 = vpop.f32.mrf.mxu0
    %v3734 = vadd.f32 %v3349, %v3733
    %v3735 = vpop.f32.mrf.mxu0
    %3736 = vmatprep.mubr.f32.mxu0 %v1676
    %3737 = vmatmul.mubr.f32.gmra.mxu0 %v1464
    %v3738 = vpop.f32.mrf.mxu0
    %v3739 = vadd.f32 %v3354, %v3738
    %v3740 = vpop.f32.mrf.mxu0
    %3741 = vmatprep.mubr.f32.mxu0 %v1679
    %3742 = vmatmul.mubr.f32.gmra.mxu0 %v1466
    %v3743 = vpop.f32.mrf.mxu0
    %v3744 = vadd.f32 %v3359, %v3743
    %v3745 = vpop.f32.mrf.mxu0
    %3746 = vmatprep.mubr.f32.mxu0 %v1681
    %3747 = vmatmul.mubr.f32.gmra.mxu0 %v1467
    %v3748 = vpop.f32.mrf.mxu0
    %v3749 = vadd.f32 %v3364, %v3748
    %v3750 = vpop.f32.mrf.mxu0
    %3751 = vmatprep.mubr.f32.mxu0 %v1684
    %3752 = vmatmul.mubr.f32.gmra.mxu0 %v1469
    %v3753 = vpop.f32.mrf.mxu0
    %v3754 = vadd.f32 %v3369, %v3753
    %v3755 = vpop.f32.mrf.mxu0
    %3756 = vmatprep.mubr.f32.mxu0 %v1686
    %3757 = vmatmul.mubr.f32.gmra.mxu0 %v1470
    %v3758 = vpop.f32.mrf.mxu0
    %v3759 = vadd.f32 %v3374, %v3758
    %v3760 = vpop.f32.mrf.mxu0
    %3761 = vmatprep.mubr.f32.mxu0 %v1689
    %3762 = vmatmul.mubr.f32.gmra.mxu0 %v1472
    %v3763 = vpop.f32.mrf.mxu0
    %v3764 = vadd.f32 %v3379, %v3763
    %v3765 = vpop.f32.mrf.mxu0
    %3766 = vmatprep.mubr.f32.mxu0 %v1691
    %3767 = vmatmul.mubr.f32.gmra.mxu0 %v1473
    %v3768 = vpop.f32.mrf.mxu0
    %v3769 = vadd.f32 %v3384, %v3768
    %v3770 = vpop.f32.mrf.mxu0
    %3771 = vmatprep.mubr.f32.mxu0 %v1694
    %3772 = vmatmul.mubr.f32.gmra.mxu0 %v1475
    %v3773 = vpop.f32.mrf.mxu0
    %v3774 = vadd.f32 %v3389, %v3773
    %v3775 = vpop.f32.mrf.mxu0
    %3776 = vmatprep.mubr.f32.mxu0 %v1696
    %3777 = vmatmul.mubr.f32.gmra.mxu0 %v1476
    %v3778 = vpop.f32.mrf.mxu0
    %v3779 = vadd.f32 %v3394, %v3778
    %v3780 = vpop.f32.mrf.mxu0
    %3781 = vmatprep.mubr.f32.mxu0 %v1699
    %3782 = vmatmul.mubr.f32.gmra.mxu0 %v1478
    %v3783 = vpop.f32.mrf.mxu0
    %v3784 = vadd.f32 %v3399, %v3783
    %v3785 = vpop.f32.mrf.mxu0
    %3786 = vmatprep.mubr.f32.mxu0 %v1701
    %3787 = vmatmul.mubr.f32.gmra.mxu0 %v1479
    %v3788 = vpop.f32.mrf.mxu0
    %v3789 = vadd.f32 %v3404, %v3788
    %v3790 = vpop.f32.mrf.mxu0
    %3791 = vmatprep.mubr.f32.mxu0 %v1704
    %3792 = vmatmul.mubr.f32.gmra.mxu0 %v1481
    %v3793 = vpop.f32.mrf.mxu0
    %v3794 = vadd.f32 %v3409, %v3793
    %v3795 = vpop.f32.mrf.mxu0
    %3796 = vmatprep.mubr.f32.mxu0 %v1706
    %3797 = vmatmul.mubr.f32.gmra.mxu0 %v1482
    %v3798 = vpop.f32.mrf.mxu0
    %v3799 = vadd.f32 %v3414, %v3798
    %v3800 = vpop.f32.mrf.mxu0
    %3801 = vmatprep.mubr.f32.mxu0 %v1709
    %3802 = vmatmul.mubr.f32.gmra.mxu0 %v1484
    %v3803 = vpop.f32.mrf.mxu0
    %v3804 = vadd.f32 %v3419, %v3803
    %v3805 = vpop.f32.mrf.mxu0
    %3806 = vmatprep.mubr.f32.mxu0 %v1711
    %3807 = vmatmul.mubr.f32.gmra.mxu0 %v1485
    %v3808 = vpop.f32.mrf.mxu0
    %v3809 = vadd.f32 %v3424, %v3808
    %v3810 = vpop.f32.mrf.mxu0
    %3811 = vmatprep.mubr.f32.mxu0 %v1714
    %3812 = vmatmul.mubr.f32.gmra.mxu0 %v1487
    %v3813 = vpop.f32.mrf.mxu0
    %v3814 = vadd.f32 %v3429, %v3813
    %v3815 = vpop.f32.mrf.mxu0
    %3816 = vmatprep.mubr.f32.mxu0 %v1716
    %3817 = vmatmul.mubr.f32.gmra.mxu0 %v1488
    %v3818 = vpop.f32.mrf.mxu0
    %v3819 = vadd.f32 %v3434, %v3818
    %v3820 = vpop.f32.mrf.mxu0
    %3821 = vmatprep.mubr.f32.mxu0 %v1719
    %3822 = vmatmul.mubr.f32.gmra.mxu0 %v1490
    %v3823 = vpop.f32.mrf.mxu0
    %v3824 = vadd.f32 %v3439, %v3823
    %v3825 = vpop.f32.mrf.mxu0
    %3826 = vmatprep.mubr.f32.mxu0 %v1721
    %3827 = vmatmul.mubr.f32.gmra.mxu0 %v1491
    %v3828 = vpop.f32.mrf.mxu0
    %v3829 = vadd.f32 %v3444, %v3828
    %v3830 = vpop.f32.mrf.mxu0
    %3831 = vmatprep.mubr.f32.mxu0 %v1724
    %3832 = vmatmul.mubr.f32.gmra.mxu0 %v1493
    %v3833 = vpop.f32.mrf.mxu0
    %v3834 = vadd.f32 %v3449, %v3833
    %v3835 = vpop.f32.mrf.mxu0
    %3836 = vmatprep.mubr.f32.mxu0 %v1726
    %3837 = vmatmul.mubr.f32.gmra.mxu0 %v1494
    %v3838 = vpop.f32.mrf.mxu0
    %v3839 = vadd.f32 %v3454, %v3838
    %v3840 = vpop.f32.mrf.mxu0
    %3841 = vmatprep.mubr.f32.mxu0 %v1729
    %3842 = vmatmul.mubr.f32.gmra.mxu0 %v1496
    %v3843 = vpop.f32.mrf.mxu0
    %v3844 = vadd.f32 %v3459, %v3843
    %v3845 = vpop.f32.mrf.mxu0
    %3846 = vmatprep.mubr.f32.mxu0 %v1731
    %3847 = vmatmul.mubr.f32.gmra.mxu0 %v1497
    %v3848 = vpop.f32.mrf.mxu0
    %v3849 = vadd.f32 %v3464, %v3848
    %v3850 = vpop.f32.mrf.mxu0
    %3851 = vmatprep.mubr.f32.mxu0 %v1734
    %3852 = vmatmul.mubr.f32.gmra.mxu0 %v1499
    %v3853 = vpop.f32.mrf.mxu0
    %v3854 = vadd.f32 %v3469, %v3853
    %v3855 = vpop.f32.mrf.mxu0
    %3856 = vmatprep.mubr.f32.mxu0 %v1736
    %3857 = vmatmul.mubr.f32.gmra.mxu0 %v1500
    %v3858 = vpop.f32.mrf.mxu0
    %v3859 = vadd.f32 %v3474, %v3858
    %v3860 = vpop.f32.mrf.mxu0
    %3861 = vmatprep.mubr.f32.mxu0 %v1739
    %3862 = vmatmul.mubr.f32.gmra.mxu0 %v1502
    %v3863 = vpop.f32.mrf.mxu0
    %v3864 = vadd.f32 %v3479, %v3863
    %v3865 = vpop.f32.mrf.mxu0
    %3866 = vmatprep.mubr.f32.mxu0 %v1741
    %3867 = vmatmul.mubr.f32.gmra.mxu0 %v1503
    %v3868 = vpop.f32.mrf.mxu0
    %v3869 = vadd.f32 %v3484, %v3868
    %v3870 = vpop.f32.mrf.mxu0
    %3871 = vmatprep.mubr.f32.mxu0 %v1744
    %3872 = vmatmul.mubr.f32.gmra.mxu0 %v1505
    %v3873 = vpop.f32.mrf.mxu0
    %v3874 = vadd.f32 %v3489, %v3873
    %v3875 = vpop.f32.mrf.mxu0
    %3876 = vmatprep.mubr.f32.mxu0 %v1746
    %3877 = vmatmul.mubr.f32.gmra.mxu0 %v1506
    %v3878 = vpop.f32.mrf.mxu0
    %v3879 = vadd.f32 %v3494, %v3878
    %v3880 = vpop.f32.mrf.mxu0
    %3881 = vmatprep.mubr.f32.mxu0 %v1749
    %3882 = vmatmul.mubr.f32.gmra.mxu0 %v1508
    %v3883 = vpop.f32.mrf.mxu0
    %v3884 = vadd.f32 %v3499, %v3883
    %v3885 = vpop.f32.mrf.mxu0
    %3886 = vmatprep.mubr.f32.mxu0 %v1751
    %3887 = vmatmul.mubr.f32.gmra.mxu0 %v1509
    %v3888 = vpop.f32.mrf.mxu0
    %v3889 = vadd.f32 %v3504, %v3888
    %v3890 = vpop.f32.mrf.mxu0
    %3891 = vmatprep.mubr.f32.mxu0 %v1754
    %3892 = vmatmul.mubr.f32.gmra.mxu0 %v1511
    %v3893 = vpop.f32.mrf.mxu0
    %v3894 = vadd.f32 %v3509, %v3893
    %v3895 = vpop.f32.mrf.mxu0
    %3896 = vmatprep.mubr.f32.mxu0 %v1756
    %3897 = vmatmul.mubr.f32.gmra.mxu0 %v1512
    %v3898 = vpop.f32.mrf.mxu0
    %v3899 = vadd.f32 %v3514, %v3898
    %v3900 = vpop.f32.mrf.mxu0
    %3901 = vmatprep.mubr.f32.mxu0 %v1759
    %3902 = vmatmul.mubr.f32.gmra.mxu0 %v1514
    %v3903 = vpop.f32.mrf.mxu0
    %v3904 = vadd.f32 %v3519, %v3903
    %v3905 = vpop.f32.mrf.mxu0
    %3906 = vmatprep.mubr.f32.mxu0 %v1761
    %3907 = vmatmul.mubr.f32.gmra.mxu0 %v1515
    %v3908 = vpop.f32.mrf.mxu0
    %v3909 = vadd.f32 %v3524, %v3908
    %v3910 = vpop.f32.mrf.mxu0
    %3911 = vmatprep.mubr.f32.mxu0 %v1764
    %3912 = vmatmul.mubr.f32.gmra.mxu0 %v1517
    %v3913 = vpop.f32.mrf.mxu0
    %v3914 = vadd.f32 %v3529, %v3913
    %v3915 = vpop.f32.mrf.mxu0
    %3916 = vmatprep.mubr.f32.mxu0 %v1766
    %3917 = vmatmul.mubr.f32.gmra.mxu0 %v1518
    %v3918 = vpop.f32.mrf.mxu0
    %v3919 = vadd.f32 %v3534, %v3918
    %v3920 = vpop.f32.mrf.mxu0
    %3921 = vmatprep.mubr.f32.mxu0 %v1769
    %3922 = vmatmul.mubr.f32.gmra.mxu0 %v1520
    %v3923 = vpop.f32.mrf.mxu0
    %v3924 = vadd.f32 %v3539, %v3923
    %v3925 = vpop.f32.mrf.mxu0
    %3926 = vmatprep.mubr.f32.mxu0 %v1771
    %3927 = vmatmul.mubr.f32.gmra.mxu0 %v1521
    %v3928 = vpop.f32.mrf.mxu0
    %v3929 = vadd.f32 %v3544, %v3928
    %v3930 = vpop.f32.mrf.mxu0
    %3931 = vmatprep.mubr.f32.mxu0 %v1774
    %3932 = vmatmul.mubr.f32.gmra.mxu0 %v1523
    %v3933 = vpop.f32.mrf.mxu0
    %v3934 = vadd.f32 %v3549, %v3933
    %v3935 = vpop.f32.mrf.mxu0
    %3936 = vmatprep.mubr.f32.mxu0 %v1776
    %3937 = vmatmul.mubr.f32.gmra.mxu0 %v1524
    %v3938 = vpop.f32.mrf.mxu0
    %v3939 = vadd.f32 %v3554, %v3938
    %v3940 = vpop.f32.mrf.mxu0
    %3941 = vmatprep.mubr.f32.mxu0 %v1779
    %3942 = vmatmul.mubr.f32.gmra.mxu0 %v1526
    %v3943 = vpop.f32.mrf.mxu0
    %v3944 = vadd.f32 %v3559, %v3943
    %v3945 = vpop.f32.mrf.mxu0
    %3946 = vmatprep.mubr.f32.mxu0 %v1781
    %3947 = vmatmul.mubr.f32.gmra.mxu0 %v1527
    %v3948 = vpop.f32.mrf.mxu0
    %v3949 = vadd.f32 %v3564, %v3948
    %v3950 = vpop.f32.mrf.mxu0
    %3951 = vmatprep.mubr.f32.mxu0 %v1784
    %3952 = vmatmul.mubr.f32.gmra.mxu0 %v1529
    %v3953 = vpop.f32.mrf.mxu0
    %v3954 = vadd.f32 %v3569, %v3953
    %v3955 = vpop.f32.mrf.mxu0
    %3956 = vmatprep.mubr.f32.mxu0 %v1786
    %3957 = vmatmul.mubr.f32.gmra.mxu0 %v1530
    %v3958 = vpop.f32.mrf.mxu0
    %v3959 = vadd.f32 %v3574, %v3958
    %v3960 = vpop.f32.mrf.mxu0
    %3961 = vmatprep.mubr.f32.mxu0 %v1789
    %3962 = vmatmul.mubr.f32.gmra.mxu0 %v1532
    %v3963 = vpop.f32.mrf.mxu0
    %v3964 = vadd.f32 %v3579, %v3963
    %v3965 = vpop.f32.mrf.mxu0
    %3966 = vmatprep.mubr.f32.mxu0 %v1791
    %3967 = vmatmul.mubr.f32.gmra.mxu0 %v1533
    %v3968 = vpop.f32.mrf.mxu0
    %v3969 = vadd.f32 %v3584, %v3968
    %v3970 = vpop.f32.mrf.mxu0
    %3971 = vdwg.mxu0
    %3972 = vmatprep.subr.mxu0 0.0
    %3973 = vmatpush1.msra.mxu0 %v2128
    %3974 = vmatprep.subr.mxu0 0.0
    %3975 = vmatpush1.msra.mxu0 %v2127
    %3976 = vmatprep.subr.mxu0 0.0
    %3977 = vmatpush1.msra.mxu0 %v2126
    %3978 = vmatprep.subr.mxu0 0.0
    %3979 = vmatpush1.msra.mxu0 %v2125
    %3980 = vmatprep.subr.mxu0 0.0
    %3981 = vmatpush1.msra.mxu0 %v2124
    %3982 = vmatprep.subr.mxu0 0.0
    %3983 = vmatpush1.msra.mxu0 %v2123
    %3984 = vmatprep.subr.mxu0 0.0
    %3985 = vmatpush1.msra.mxu0 %v2122
    %3986 = vmatprep.subr.mxu0 0.0
    %3987 = vmatpush1.msra.mxu0 %v2121
    %3988 = vmatprep.subr.mxu0 0.0
    %3989 = vmatpush1.msra.mxu0 %v2120
    %3990 = vmatprep.subr.mxu0 0.0
    %3991 = vmatpush1.msra.mxu0 %v2119
    %3992 = vmatprep.subr.mxu0 0.0
    %3993 = vmatpush1.msra.mxu0 %v2118
    %3994 = vmatprep.subr.mxu0 0.0
    %3995 = vmatpush1.msra.mxu0 %v2117
    %3996 = vmatprep.subr.mxu0 0.0
    %3997 = vmatpush1.msra.mxu0 %v2116
    %3998 = vmatprep.subr.mxu0 0.0
    %3999 = vmatpush1.msra.mxu0 %v2115
    %4000 = vmatprep.subr.mxu0 0.0
    %4001 = vmatpush1.msra.mxu0 %v2114
    %4002 = vmatprep.subr.mxu0 0.0
    %4003 = vmatpush1.msra.mxu0 %v2113
    %4004 = vmatprep.subr.mxu0 0.0
    %4005 = vmatpush2.msra.mxu0 0.0
    %4006 = vmatprep.subr.mxu0 0.0
    %4007 = vmatpush2.msra.mxu0 0.0
    %4008 = vmatprep.subr.mxu0 0.0
    %4009 = vmatpush2.msra.mxu0 0.0
    %4010 = vmatprep.subr.mxu0 0.0
    %4011 = vmatpush2.msra.mxu0 0.0
    %4012 = vmatprep.subr.mxu0 0.0
    %4013 = vmatpush2.msra.mxu0 0.0
    %4014 = vmatprep.subr.mxu0 0.0
    %4015 = vmatpush2.msra.mxu0 0.0
    %4016 = vmatprep.subr.mxu0 0.0
    %4017 = vmatpush2.msra.mxu0 0.0
    %4018 = vmatprep.subr.mxu0 0.0
    %4019 = vmatpush2.msra.mxu0 0.0
    %4020 = vmatprep.subr.mxu0 0.0
    %4021 = vmatpush2.msra.mxu0 0.0
    %4022 = vmatprep.subr.mxu0 0.0
    %4023 = vmatpush2.msra.mxu0 0.0
    %4024 = vmatprep.subr.mxu0 0.0
    %4025 = vmatpush2.msra.mxu0 0.0
    %4026 = vmatprep.subr.mxu0 0.0
    %4027 = vmatpush2.msra.mxu0 0.0
    %4028 = vmatprep.subr.mxu0 0.0
    %4029 = vmatpush2.msra.mxu0 0.0
    %4030 = vmatprep.subr.mxu0 0.0
    %4031 = vmatpush2.msra.mxu0 0.0
    %4032 = vmatprep.subr.mxu0 0.0
    %4033 = vmatpush2.msra.mxu0 0.0
    %4034 = vmatprep.subr.mxu0 0.0
    %4035 = vmatpush2.msra.mxu0 0.0
    %4036 = vmatprep.mubr.f32.mxu0 0.0
    %4037 = vmatmul.mubr.f32.gmra.mxu0 %v1859
    %v4038 = vpop.f32.mrf.mxu0
    %v4039 = vadd.f32 %v3654, %v4038
    %v4040 = vpop.f32.mrf.mxu0
    %4041 = vmatprep.mubr.f32.mxu0 0.0
    %4042 = vmatmul.mubr.f32.gmra.mxu0 %v1861
    %v4043 = vpop.f32.mrf.mxu0
    %v4044 = vadd.f32 %v3659, %v4043
    %v4045 = vpop.f32.mrf.mxu0
    %4046 = vmatprep.mubr.f32.mxu0 0.0
    %4047 = vmatmul.mubr.f32.gmra.mxu0 %v1864
    %v4048 = vpop.f32.mrf.mxu0
    %v4049 = vadd.f32 %v3664, %v4048
    %v4050 = vpop.f32.mrf.mxu0
    %4051 = vmatprep.mubr.f32.mxu0 0.0
    %4052 = vmatmul.mubr.f32.gmra.mxu0 %v1866
    %v4053 = vpop.f32.mrf.mxu0
    %v4054 = vadd.f32 %v3669, %v4053
    %v4055 = vpop.f32.mrf.mxu0
    %4056 = vmatprep.mubr.f32.mxu0 0.0
    %4057 = vmatmul.mubr.f32.gmra.mxu0 %v1869
    %v4058 = vpop.f32.mrf.mxu0
    %v4059 = vadd.f32 %v3674, %v4058
    %v4060 = vpop.f32.mrf.mxu0
    %4061 = vmatprep.mubr.f32.mxu0 0.0
    %4062 = vmatmul.mubr.f32.gmra.mxu0 %v1871
    %v4063 = vpop.f32.mrf.mxu0
    %v4064 = vadd.f32 %v3679, %v4063
    %v4065 = vpop.f32.mrf.mxu0
    %4066 = vmatprep.mubr.f32.mxu0 0.0
    %4067 = vmatmul.mubr.f32.gmra.mxu0 %v1874
    %v4068 = vpop.f32.mrf.mxu0
    %v4069 = vadd.f32 %v3684, %v4068
    %v4070 = vpop.f32.mrf.mxu0
    %4071 = vmatprep.mubr.f32.mxu0 0.0
    %4072 = vmatmul.mubr.f32.gmra.mxu0 %v1876
    %v4073 = vpop.f32.mrf.mxu0
    %v4074 = vadd.f32 %v3689, %v4073
    %v4075 = vpop.f32.mrf.mxu0
    %4076 = vmatprep.mubr.f32.mxu0 0.0
    %4077 = vmatmul.mubr.f32.gmra.mxu0 %v1879
    %v4078 = vpop.f32.mrf.mxu0
    %v4079 = vadd.f32 %v3694, %v4078
    %v4080 = vpop.f32.mrf.mxu0
    %4081 = vmatprep.mubr.f32.mxu0 0.0
    %4082 = vmatmul.mubr.f32.gmra.mxu0 %v1881
    %v4083 = vpop.f32.mrf.mxu0
    %v4084 = vadd.f32 %v3699, %v4083
    %v4085 = vpop.f32.mrf.mxu0
    %4086 = vmatprep.mubr.f32.mxu0 0.0
    %4087 = vmatmul.mubr.f32.gmra.mxu0 %v1884
    %v4088 = vpop.f32.mrf.mxu0
    %v4089 = vadd.f32 %v3704, %v4088
    %v4090 = vpop.f32.mrf.mxu0
    %4091 = vmatprep.mubr.f32.mxu0 0.0
    %4092 = vmatmul.mubr.f32.gmra.mxu0 %v1886
    %v4093 = vpop.f32.mrf.mxu0
    %v4094 = vadd.f32 %v3709, %v4093
    %v4095 = vpop.f32.mrf.mxu0
    %4096 = vmatprep.mubr.f32.mxu0 0.0
    %4097 = vmatmul.mubr.f32.gmra.mxu0 %v1889
    %v4098 = vpop.f32.mrf.mxu0
    %v4099 = vadd.f32 %v3714, %v4098
    %v4100 = vpop.f32.mrf.mxu0
    %4101 = vmatprep.mubr.f32.mxu0 0.0
    %4102 = vmatmul.mubr.f32.gmra.mxu0 %v1891
    %v4103 = vpop.f32.mrf.mxu0
    %v4104 = vadd.f32 %v3719, %v4103
    %v4105 = vpop.f32.mrf.mxu0
    %4106 = vmatprep.mubr.f32.mxu0 0.0
    %4107 = vmatmul.mubr.f32.gmra.mxu0 %v1894
    %v4108 = vpop.f32.mrf.mxu0
    %v4109 = vadd.f32 %v3724, %v4108
    %v4110 = vpop.f32.mrf.mxu0
    %4111 = vmatprep.mubr.f32.mxu0 0.0
    %4112 = vmatmul.mubr.f32.gmra.mxu0 %v1896
    %v4113 = vpop.f32.mrf.mxu0
    %v4114 = vadd.f32 %v3729, %v4113
    %v4115 = vpop.f32.mrf.mxu0
    %4116 = vmatprep.mubr.f32.mxu0 0.0
    %4117 = vmatmul.mubr.f32.gmra.mxu0 %v1899
    %v4118 = vpop.f32.mrf.mxu0
    %v4119 = vadd.f32 %v3734, %v4118
    %v4120 = vpop.f32.mrf.mxu0
    %4121 = vmatprep.mubr.f32.mxu0 0.0
    %4122 = vmatmul.mubr.f32.gmra.mxu0 %v1901
    %v4123 = vpop.f32.mrf.mxu0
    %v4124 = vadd.f32 %v3739, %v4123
    %v4125 = vpop.f32.mrf.mxu0
    %4126 = vmatprep.mubr.f32.mxu0 0.0
    %4127 = vmatmul.mubr.f32.gmra.mxu0 %v1904
    %v4128 = vpop.f32.mrf.mxu0
    %v4129 = vadd.f32 %v3744, %v4128
    %v4130 = vpop.f32.mrf.mxu0
    %4131 = vmatprep.mubr.f32.mxu0 0.0
    %4132 = vmatmul.mubr.f32.gmra.mxu0 %v1906
    %v4133 = vpop.f32.mrf.mxu0
    %v4134 = vadd.f32 %v3749, %v4133
    %v4135 = vpop.f32.mrf.mxu0
    %4136 = vmatprep.mubr.f32.mxu0 0.0
    %4137 = vmatmul.mubr.f32.gmra.mxu0 %v1909
    %v4138 = vpop.f32.mrf.mxu0
    %v4139 = vadd.f32 %v3754, %v4138
    %v4140 = vpop.f32.mrf.mxu0
    %4141 = vmatprep.mubr.f32.mxu0 0.0
    %4142 = vmatmul.mubr.f32.gmra.mxu0 %v1911
    %v4143 = vpop.f32.mrf.mxu0
    %v4144 = vadd.f32 %v3759, %v4143
    %v4145 = vpop.f32.mrf.mxu0
    %4146 = vmatprep.mubr.f32.mxu0 0.0
    %4147 = vmatmul.mubr.f32.gmra.mxu0 %v1914
    %v4148 = vpop.f32.mrf.mxu0
    %v4149 = vadd.f32 %v3764, %v4148
    %v4150 = vpop.f32.mrf.mxu0
    %4151 = vmatprep.mubr.f32.mxu0 0.0
    %4152 = vmatmul.mubr.f32.gmra.mxu0 %v1916
    %v4153 = vpop.f32.mrf.mxu0
    %v4154 = vadd.f32 %v3769, %v4153
    %v4155 = vpop.f32.mrf.mxu0
    %4156 = vmatprep.mubr.f32.mxu0 0.0
    %4157 = vmatmul.mubr.f32.gmra.mxu0 %v1919
    %v4158 = vpop.f32.mrf.mxu0
    %v4159 = vadd.f32 %v3774, %v4158
    %v4160 = vpop.f32.mrf.mxu0
    %4161 = vmatprep.mubr.f32.mxu0 0.0
    %4162 = vmatmul.mubr.f32.gmra.mxu0 %v1921
    %v4163 = vpop.f32.mrf.mxu0
    %v4164 = vadd.f32 %v3779, %v4163
    %v4165 = vpop.f32.mrf.mxu0
    %4166 = vmatprep.mubr.f32.mxu0 0.0
    %4167 = vmatmul.mubr.f32.gmra.mxu0 %v1924
    %v4168 = vpop.f32.mrf.mxu0
    %v4169 = vadd.f32 %v3784, %v4168
    %v4170 = vpop.f32.mrf.mxu0
    %4171 = vmatprep.mubr.f32.mxu0 0.0
    %4172 = vmatmul.mubr.f32.gmra.mxu0 %v1926
    %v4173 = vpop.f32.mrf.mxu0
    %v4174 = vadd.f32 %v3789, %v4173
    %v4175 = vpop.f32.mrf.mxu0
    %4176 = vmatprep.mubr.f32.mxu0 0.0
    %4177 = vmatmul.mubr.f32.gmra.mxu0 %v1929
    %v4178 = vpop.f32.mrf.mxu0
    %v4179 = vadd.f32 %v3794, %v4178
    %v4180 = vpop.f32.mrf.mxu0
    %4181 = vmatprep.mubr.f32.mxu0 0.0
    %4182 = vmatmul.mubr.f32.gmra.mxu0 %v1931
    %v4183 = vpop.f32.mrf.mxu0
    %v4184 = vadd.f32 %v3799, %v4183
    %v4185 = vpop.f32.mrf.mxu0
    %4186 = vmatprep.mubr.f32.mxu0 0.0
    %4187 = vmatmul.mubr.f32.gmra.mxu0 %v1934
    %v4188 = vpop.f32.mrf.mxu0
    %v4189 = vadd.f32 %v3804, %v4188
    %v4190 = vpop.f32.mrf.mxu0
    %4191 = vmatprep.mubr.f32.mxu0 0.0
    %4192 = vmatmul.mubr.f32.gmra.mxu0 %v1936
    %v4193 = vpop.f32.mrf.mxu0
    %v4194 = vadd.f32 %v3809, %v4193
    %v4195 = vpop.f32.mrf.mxu0
    %4196 = vmatprep.mubr.f32.mxu0 0.0
    %4197 = vmatmul.mubr.f32.gmra.mxu0 %v1939
    %v4198 = vpop.f32.mrf.mxu0
    %v4199 = vadd.f32 %v3814, %v4198
    %v4200 = vpop.f32.mrf.mxu0
    %4201 = vmatprep.mubr.f32.mxu0 0.0
    %4202 = vmatmul.mubr.f32.gmra.mxu0 %v1941
    %v4203 = vpop.f32.mrf.mxu0
    %v4204 = vadd.f32 %v3819, %v4203
    %v4205 = vpop.f32.mrf.mxu0
    %4206 = vmatprep.mubr.f32.mxu0 0.0
    %4207 = vmatmul.mubr.f32.gmra.mxu0 %v1944
    %v4208 = vpop.f32.mrf.mxu0
    %v4209 = vadd.f32 %v3824, %v4208
    %v4210 = vpop.f32.mrf.mxu0
    %4211 = vmatprep.mubr.f32.mxu0 0.0
    %4212 = vmatmul.mubr.f32.gmra.mxu0 %v1946
    %v4213 = vpop.f32.mrf.mxu0
    %v4214 = vadd.f32 %v3829, %v4213
    %v4215 = vpop.f32.mrf.mxu0
    %4216 = vmatprep.mubr.f32.mxu0 0.0
    %4217 = vmatmul.mubr.f32.gmra.mxu0 %v1949
    %v4218 = vpop.f32.mrf.mxu0
    %v4219 = vadd.f32 %v3834, %v4218
    %v4220 = vpop.f32.mrf.mxu0
    %4221 = vmatprep.mubr.f32.mxu0 0.0
    %4222 = vmatmul.mubr.f32.gmra.mxu0 %v1951
    %v4223 = vpop.f32.mrf.mxu0
    %v4224 = vadd.f32 %v3839, %v4223
    %v4225 = vpop.f32.mrf.mxu0
    %4226 = vmatprep.mubr.f32.mxu0 0.0
    %4227 = vmatmul.mubr.f32.gmra.mxu0 %v1954
    %v4228 = vpop.f32.mrf.mxu0
    %v4229 = vadd.f32 %v3844, %v4228
    %v4230 = vpop.f32.mrf.mxu0
    %4231 = vmatprep.mubr.f32.mxu0 0.0
    %4232 = vmatmul.mubr.f32.gmra.mxu0 %v1956
    %v4233 = vpop.f32.mrf.mxu0
    %v4234 = vadd.f32 %v3849, %v4233
    %v4235 = vpop.f32.mrf.mxu0
    %4236 = vmatprep.mubr.f32.mxu0 0.0
    %4237 = vmatmul.mubr.f32.gmra.mxu0 %v1959
    %v4238 = vpop.f32.mrf.mxu0
    %v4239 = vadd.f32 %v3854, %v4238
    %v4240 = vpop.f32.mrf.mxu0
    %4241 = vmatprep.mubr.f32.mxu0 0.0
    %4242 = vmatmul.mubr.f32.gmra.mxu0 %v1961
    %v4243 = vpop.f32.mrf.mxu0
    %v4244 = vadd.f32 %v3859, %v4243
    %v4245 = vpop.f32.mrf.mxu0
    %4246 = vmatprep.mubr.f32.mxu0 0.0
    %4247 = vmatmul.mubr.f32.gmra.mxu0 %v1964
    %v4248 = vpop.f32.mrf.mxu0
    %v4249 = vadd.f32 %v3864, %v4248
    %v4250 = vpop.f32.mrf.mxu0
    %4251 = vmatprep.mubr.f32.mxu0 0.0
    %4252 = vmatmul.mubr.f32.gmra.mxu0 %v1966
    %v4253 = vpop.f32.mrf.mxu0
    %v4254 = vadd.f32 %v3869, %v4253
    %v4255 = vpop.f32.mrf.mxu0
    %4256 = vmatprep.mubr.f32.mxu0 0.0
    %4257 = vmatmul.mubr.f32.gmra.mxu0 %v1969
    %v4258 = vpop.f32.mrf.mxu0
    %v4259 = vadd.f32 %v3874, %v4258
    %v4260 = vpop.f32.mrf.mxu0
    %4261 = vmatprep.mubr.f32.mxu0 0.0
    %4262 = vmatmul.mubr.f32.gmra.mxu0 %v1971
    %v4263 = vpop.f32.mrf.mxu0
    %v4264 = vadd.f32 %v3879, %v4263
    %v4265 = vpop.f32.mrf.mxu0
    %4266 = vmatprep.mubr.f32.mxu0 0.0
    %4267 = vmatmul.mubr.f32.gmra.mxu0 %v1974
    %v4268 = vpop.f32.mrf.mxu0
    %v4269 = vadd.f32 %v3884, %v4268
    %v4270 = vpop.f32.mrf.mxu0
    %4271 = vmatprep.mubr.f32.mxu0 0.0
    %4272 = vmatmul.mubr.f32.gmra.mxu0 %v1976
    %v4273 = vpop.f32.mrf.mxu0
    %v4274 = vadd.f32 %v3889, %v4273
    %v4275 = vpop.f32.mrf.mxu0
    %4276 = vmatprep.mubr.f32.mxu0 0.0
    %4277 = vmatmul.mubr.f32.gmra.mxu0 %v1979
    %v4278 = vpop.f32.mrf.mxu0
    %v4279 = vadd.f32 %v3894, %v4278
    %v4280 = vpop.f32.mrf.mxu0
    %4281 = vmatprep.mubr.f32.mxu0 0.0
    %4282 = vmatmul.mubr.f32.gmra.mxu0 %v1981
    %v4283 = vpop.f32.mrf.mxu0
    %v4284 = vadd.f32 %v3899, %v4283
    %v4285 = vpop.f32.mrf.mxu0
    %4286 = vmatprep.mubr.f32.mxu0 0.0
    %4287 = vmatmul.mubr.f32.gmra.mxu0 %v1984
    %v4288 = vpop.f32.mrf.mxu0
    %v4289 = vadd.f32 %v3904, %v4288
    %v4290 = vpop.f32.mrf.mxu0
    %4291 = vmatprep.mubr.f32.mxu0 0.0
    %4292 = vmatmul.mubr.f32.gmra.mxu0 %v1986
    %v4293 = vpop.f32.mrf.mxu0
    %v4294 = vadd.f32 %v3909, %v4293
    %v4295 = vpop.f32.mrf.mxu0
    %4296 = vmatprep.mubr.f32.mxu0 0.0
    %4297 = vmatmul.mubr.f32.gmra.mxu0 %v1989
    %v4298 = vpop.f32.mrf.mxu0
    %v4299 = vadd.f32 %v3914, %v4298
    %v4300 = vpop.f32.mrf.mxu0
    %4301 = vmatprep.mubr.f32.mxu0 0.0
    %4302 = vmatmul.mubr.f32.gmra.mxu0 %v1991
    %v4303 = vpop.f32.mrf.mxu0
    %v4304 = vadd.f32 %v3919, %v4303
    %v4305 = vpop.f32.mrf.mxu0
    %4306 = vmatprep.mubr.f32.mxu0 0.0
    %4307 = vmatmul.mubr.f32.gmra.mxu0 %v1994
    %v4308 = vpop.f32.mrf.mxu0
    %v4309 = vadd.f32 %v3924, %v4308
    %v4310 = vpop.f32.mrf.mxu0
    %4311 = vmatprep.mubr.f32.mxu0 0.0
    %4312 = vmatmul.mubr.f32.gmra.mxu0 %v1996
    %v4313 = vpop.f32.mrf.mxu0
    %v4314 = vadd.f32 %v3929, %v4313
    %v4315 = vpop.f32.mrf.mxu0
    %4316 = vmatprep.mubr.f32.mxu0 0.0
    %4317 = vmatmul.mubr.f32.gmra.mxu0 %v1999
    %v4318 = vpop.f32.mrf.mxu0
    %v4319 = vadd.f32 %v3934, %v4318
    %v4320 = vpop.f32.mrf.mxu0
    %4321 = vmatprep.mubr.f32.mxu0 0.0
    %4322 = vmatmul.mubr.f32.gmra.mxu0 %v2001
    %v4323 = vpop.f32.mrf.mxu0
    %v4324 = vadd.f32 %v3939, %v4323
    %v4325 = vpop.f32.mrf.mxu0
    %4326 = vmatprep.mubr.f32.mxu0 0.0
    %4327 = vmatmul.mubr.f32.gmra.mxu0 %v2004
    %v4328 = vpop.f32.mrf.mxu0
    %v4329 = vadd.f32 %v3944, %v4328
    %v4330 = vpop.f32.mrf.mxu0
    %4331 = vmatprep.mubr.f32.mxu0 0.0
    %4332 = vmatmul.mubr.f32.gmra.mxu0 %v2006
    %v4333 = vpop.f32.mrf.mxu0
    %v4334 = vadd.f32 %v3949, %v4333
    %v4335 = vpop.f32.mrf.mxu0
    %4336 = vmatprep.mubr.f32.mxu0 0.0
    %4337 = vmatmul.mubr.f32.gmra.mxu0 %v2009
    %v4338 = vpop.f32.mrf.mxu0
    %v4339 = vadd.f32 %v3954, %v4338
    %v4340 = vpop.f32.mrf.mxu0
    %4341 = vmatprep.mubr.f32.mxu0 0.0
    %4342 = vmatmul.mubr.f32.gmra.mxu0 %v2011
    %v4343 = vpop.f32.mrf.mxu0
    %v4344 = vadd.f32 %v3959, %v4343
    %v4345 = vpop.f32.mrf.mxu0
    %4346 = vmatprep.mubr.f32.mxu0 0.0
    %4347 = vmatmul.mubr.f32.gmra.mxu0 %v2014
    %v4348 = vpop.f32.mrf.mxu0
    %v4349 = vadd.f32 %v3964, %v4348
    %v4350 = vpop.f32.mrf.mxu0
    %4351 = vmatprep.mubr.f32.mxu0 0.0
    %4352 = vmatmul.mubr.f32.gmra.mxu0 %v2016
    %v4353 = vpop.f32.mrf.mxu0
    %v4354 = vadd.f32 %v3969, %v4353
    %v4355 = vpop.f32.mrf.mxu0
    %4356 = vdwg.mxu0
    %s4357 = scalar_lea.vmem [#allocation2], 48
    %v4358 = vld [vmem:[%s4357] sm:$0xff]
    %v4359 = vld [vmem:[%s4357 + $0x8] sm:$0xff]
    %v4360 = vld [vmem:[%s4357 + $0x10] sm:$0x3]
    %v4361 = vld [vmem:[%s4357 + $0x18] sm:$0xff]
    %v4362 = vld [vmem:[%s4357 + $0x20] sm:$0xff]
    %v4363 = vld [vmem:[%s4357 + $0x28] sm:$0x3]
    %v4364 = vld [vmem:[%s4357 + $0x30] sm:$0xff]
    %v4365 = vld [vmem:[%s4357 + $0x38] sm:$0xff]
    %v4366 = vld [vmem:[%s4357 + $0x40] sm:$0x3]
    %v4367 = vld [vmem:[%s4357 + $0x48] sm:$0xff]
    %v4368 = vld [vmem:[%s4357 + $0x50] sm:$0xff]
    %v4369 = vld [vmem:[%s4357 + $0x58] sm:$0x3]
    %v4370 = vld [vmem:[%s4357 + $0x60] sm:$0xff]
    %v4371 = vld [vmem:[%s4357 + $0x68] sm:$0xff]
    %v4372 = vld [vmem:[%s4357 + $0x70] sm:$0x3]
    %v4373 = vld [vmem:[%s4357 + $0x78] sm:$0xff]
    %v4374 = vld [vmem:[%s4357 + $0x80] sm:$0xff]
    %v4375 = vld [vmem:[%s4357 + $0x88] sm:$0x3]
    %v4376 = vld [vmem:[%s4357 + $0x90] sm:$0xff]
    %v4377 = vld [vmem:[%s4357 + $0x98] sm:$0xff]
    %v4378 = vld [vmem:[%s4357 + $0xa0] sm:$0x3]
    %v4379 = vld [vmem:[%s4357 + $0xa8] sm:$0xff]
    %v4380 = vld [vmem:[%s4357 + $0xb0] sm:$0xff]
    %v4381 = vld [vmem:[%s4357 + $0xb8] sm:$0x3]
    %v4382 = vld [vmem:[%s4357 + $0xc0] sm:$0xff]
    %v4383 = vld [vmem:[%s4357 + $0xc8] sm:$0xff]
    %v4384 = vld [vmem:[%s4357 + $0xd0] sm:$0x3]
    %v4385 = vld [vmem:[%s4357 + $0xd8] sm:$0xff]
    %v4386 = vld [vmem:[%s4357 + $0xe0] sm:$0xff]
    %v4387 = vld [vmem:[%s4357 + $0xe8] sm:$0x3]
    %v4388 = vld [vmem:[%s4357 + $0xf0] sm:$0xff]
    %v4389 = vld [vmem:[%s4357 + $0xf8] sm:$0xff]
    %v4390 = vld [vmem:[%s4357 + $0x100] sm:$0x3]
    %v4391 = vld [vmem:[%s4357 + $0x108] sm:$0xff]
    %v4392 = vld [vmem:[%s4357 + $0x110] sm:$0xff]
    %v4393 = vld [vmem:[%s4357 + $0x118] sm:$0x3]
    %v4394 = vld [vmem:[%s4357 + $0x120] sm:$0xff]
    %v4395 = vld [vmem:[%s4357 + $0x128] sm:$0xff]
    %v4396 = vld [vmem:[%s4357 + $0x130] sm:$0x3]
    %v4397 = vld [vmem:[%s4357 + $0x138] sm:$0xff]
    %v4398 = vld [vmem:[%s4357 + $0x140] sm:$0xff]
    %v4399 = vld [vmem:[%s4357 + $0x148] sm:$0x3]
    %v4400 = vld [vmem:[%s4357 + $0x150] sm:$0xff]
    %v4401 = vld [vmem:[%s4357 + $0x158] sm:$0xff]
    %v4402 = vld [vmem:[%s4357 + $0x160] sm:$0x3]
    %v4403 = vld [vmem:[%s4357 + $0x168] sm:$0xff]
    %v4404 = vld [vmem:[%s4357 + $0x170] sm:$0xff]
    %v4405 = vld [vmem:[%s4357 + $0x178] sm:$0x3]
    %v4406 = vld [vmem:[%s4357 + $0x1b0] sm:$0xff]
    %v4407 = vld [vmem:[%s4357 + $0x1b8] sm:$0xff]
    %v4408 = vld [vmem:[%s4357 + $0x1c0] sm:$0x3]
    %v4409 = vld [vmem:[%s4357 + $0x1c8] sm:$0xff]
    %v4410 = vld [vmem:[%s4357 + $0x1d0] sm:$0xff]
    %v4411 = vld [vmem:[%s4357 + $0x1d8] sm:$0x3]
    %v4412 = vld [vmem:[%s4357 + $0x1e0] sm:$0xff]
    %v4413 = vld [vmem:[%s4357 + $0x1e8] sm:$0xff]
    %v4414 = vld [vmem:[%s4357 + $0x1f0] sm:$0x3]
    %v4415 = vld [vmem:[%s4357 + $0x1f8] sm:$0xff]
    %v4416 = vld [vmem:[%s4357 + $0x200] sm:$0xff]
    %v4417 = vld [vmem:[%s4357 + $0x208] sm:$0x3]
    %v4418 = vld [vmem:[%s4357 + $0x210] sm:$0xff]
    %v4419 = vld [vmem:[%s4357 + $0x218] sm:$0xff]
    %v4420 = vld [vmem:[%s4357 + $0x220] sm:$0x3]
    %v4421 = vld [vmem:[%s4357 + $0x228] sm:$0xff]
    %v4422 = vld [vmem:[%s4357 + $0x230] sm:$0xff]
    %v4423 = vld [vmem:[%s4357 + $0x238] sm:$0x3]
    %v4424 = vld [vmem:[%s4357 + $0x240] sm:$0xff]
    %v4425 = vld [vmem:[%s4357 + $0x248] sm:$0xff]
    %v4426 = vld [vmem:[%s4357 + $0x250] sm:$0x3]
    %v4427 = vld [vmem:[%s4357 + $0x258] sm:$0xff]
    %v4428 = vld [vmem:[%s4357 + $0x260] sm:$0xff]
    %v4429 = vld [vmem:[%s4357 + $0x268] sm:$0x3]
    %v4430 = vld [vmem:[%s4357 + $0x270] sm:$0xff]
    %v4431 = vld [vmem:[%s4357 + $0x278] sm:$0xff]
    %v4432 = vld [vmem:[%s4357 + $0x280] sm:$0x3]
    %v4433 = vld [vmem:[%s4357 + $0x288] sm:$0xff]
    %v4434 = vld [vmem:[%s4357 + $0x290] sm:$0xff]
    %v4435 = vld [vmem:[%s4357 + $0x298] sm:$0x3]
    %v4436 = vld [vmem:[%s4357 + $0x2a0] sm:$0xff]
    %v4437 = vld [vmem:[%s4357 + $0x2a8] sm:$0xff]
    %v4438 = vld [vmem:[%s4357 + $0x2b0] sm:$0x3]
    %v4439 = vld [vmem:[%s4357 + $0x2b8] sm:$0xff]
    %v4440 = vld [vmem:[%s4357 + $0x2c0] sm:$0xff]
    %v4441 = vld [vmem:[%s4357 + $0x2c8] sm:$0x3]
    %v4442 = vld [vmem:[%s4357 + $0x2d0] sm:$0xff]
    %v4443 = vld [vmem:[%s4357 + $0x2d8] sm:$0xff]
    %v4444 = vld [vmem:[%s4357 + $0x2e0] sm:$0x3]
    %v4445 = vld [vmem:[%s4357 + $0x2e8] sm:$0xff]
    %v4446 = vld [vmem:[%s4357 + $0x2f0] sm:$0xff]
    %v4447 = vld [vmem:[%s4357 + $0x2f8] sm:$0x3]
    %v4448 = vld [vmem:[%s4357 + $0x300] sm:$0xff]
    %v4449 = vld [vmem:[%s4357 + $0x308] sm:$0xff]
    %v4450 = vld [vmem:[%s4357 + $0x310] sm:$0x3]
    %v4451 = vld [vmem:[%s4357 + $0x318] sm:$0xff]
    %v4452 = vld [vmem:[%s4357 + $0x320] sm:$0xff]
    %v4453 = vld [vmem:[%s4357 + $0x328] sm:$0x3]
    %v4550 = vrot.slane %v4358, 1
    %v4551 = vrot.slane %v4359, 1
    %v4552 = vsel %vm1631, %v4550, %v4551
    %v4553 = vrot.slane %v4360, 1
    %v4554 = vsel %vm1631, %v4551, %v4553
    %v4555 = vrot.slane %v4361, 1
    %v4556 = vrot.slane %v4362, 1
    %v4557 = vsel %vm1631, %v4555, %v4556
    %v4558 = vrot.slane %v4363, 1
    %v4559 = vsel %vm1631, %v4556, %v4558
    %v4560 = vrot.slane %v4364, 1
    %v4561 = vrot.slane %v4365, 1
    %v4562 = vsel %vm1631, %v4560, %v4561
    %v4563 = vrot.slane %v4366, 1
    %v4564 = vsel %vm1631, %v4561, %v4563
    %v4565 = vrot.slane %v4367, 1
    %v4566 = vrot.slane %v4368, 1
    %v4567 = vsel %vm1631, %v4565, %v4566
    %v4568 = vrot.slane %v4369, 1
    %v4569 = vsel %vm1631, %v4566, %v4568
    %v4570 = vrot.slane %v4370, 1
    %v4571 = vrot.slane %v4371, 1
    %v4572 = vsel %vm1631, %v4570, %v4571
    %v4573 = vrot.slane %v4372, 1
    %v4574 = vsel %vm1631, %v4571, %v4573
    %v4575 = vrot.slane %v4373, 1
    %v4576 = vrot.slane %v4374, 1
    %v4577 = vsel %vm1631, %v4575, %v4576
    %v4578 = vrot.slane %v4375, 1
    %v4579 = vsel %vm1631, %v4576, %v4578
    %v4580 = vrot.slane %v4376, 1
    %v4581 = vrot.slane %v4377, 1
    %v4582 = vsel %vm1631, %v4580, %v4581
    %v4583 = vrot.slane %v4378, 1
    %v4584 = vsel %vm1631, %v4581, %v4583
    %v4585 = vrot.slane %v4379, 1
    %v4586 = vrot.slane %v4380, 1
    %v4587 = vsel %vm1631, %v4585, %v4586
    %v4588 = vrot.slane %v4381, 1
    %v4589 = vsel %vm1631, %v4586, %v4588
    %v4590 = vrot.slane %v4382, 1
    %v4591 = vrot.slane %v4383, 1
    %v4592 = vsel %vm1631, %v4590, %v4591
    %v4593 = vrot.slane %v4384, 1
    %v4594 = vsel %vm1631, %v4591, %v4593
    %v4595 = vrot.slane %v4385, 1
    %v4596 = vrot.slane %v4386, 1
    %v4597 = vsel %vm1631, %v4595, %v4596
    %v4598 = vrot.slane %v4387, 1
    %v4599 = vsel %vm1631, %v4596, %v4598
    %v4600 = vrot.slane %v4388, 1
    %v4601 = vrot.slane %v4389, 1
    %v4602 = vsel %vm1631, %v4600, %v4601
    %v4603 = vrot.slane %v4390, 1
    %v4604 = vsel %vm1631, %v4601, %v4603
    %v4605 = vrot.slane %v4391, 1
    %v4606 = vrot.slane %v4392, 1
    %v4607 = vsel %vm1631, %v4605, %v4606
    %v4608 = vrot.slane %v4393, 1
    %v4609 = vsel %vm1631, %v4606, %v4608
    %v4610 = vrot.slane %v4394, 1
    %v4611 = vrot.slane %v4395, 1
    %v4612 = vsel %vm1631, %v4610, %v4611
    %v4613 = vrot.slane %v4396, 1
    %v4614 = vsel %vm1631, %v4611, %v4613
    %v4615 = vrot.slane %v4397, 1
    %v4616 = vrot.slane %v4398, 1
    %v4617 = vsel %vm1631, %v4615, %v4616
    %v4618 = vrot.slane %v4399, 1
    %v4619 = vsel %vm1631, %v4616, %v4618
    %v4620 = vrot.slane %v4400, 1
    %v4621 = vrot.slane %v4401, 1
    %v4622 = vsel %vm1631, %v4620, %v4621
    %v4623 = vrot.slane %v4402, 1
    %v4624 = vsel %vm1631, %v4621, %v4623
    %v4625 = vrot.slane %v4403, 1
    %v4626 = vrot.slane %v4404, 1
    %v4627 = vsel %vm1631, %v4625, %v4626
    %v4628 = vrot.slane %v4405, 1
    %v4629 = vsel %vm1631, %v4626, %v4628
    %v4630 = vrot.slane %v4406, 1
    %v4631 = vrot.slane %v4407, 1
    %v4632 = vsel %vm1631, %v4630, %v4631
    %v4633 = vrot.slane %v4408, 1
    %v4634 = vsel %vm1631, %v4631, %v4633
    %v4635 = vrot.slane %v4409, 1
    %v4636 = vrot.slane %v4410, 1
    %v4637 = vsel %vm1631, %v4635, %v4636
    %v4638 = vrot.slane %v4411, 1
    %v4639 = vsel %vm1631, %v4636, %v4638
    %v4640 = vrot.slane %v4412, 1
    %v4641 = vrot.slane %v4413, 1
    %v4642 = vsel %vm1631, %v4640, %v4641
    %v4643 = vrot.slane %v4414, 1
    %v4644 = vsel %vm1631, %v4641, %v4643
    %v4645 = vrot.slane %v4415, 1
    %v4646 = vrot.slane %v4416, 1
    %v4647 = vsel %vm1631, %v4645, %v4646
    %v4648 = vrot.slane %v4417, 1
    %v4649 = vsel %vm1631, %v4646, %v4648
    %v4650 = vrot.slane %v4418, 1
    %v4651 = vrot.slane %v4419, 1
    %v4652 = vsel %vm1631, %v4650, %v4651
    %v4653 = vrot.slane %v4420, 1
    %v4654 = vsel %vm1631, %v4651, %v4653
    %v4655 = vrot.slane %v4421, 1
    %v4656 = vrot.slane %v4422, 1
    %v4657 = vsel %vm1631, %v4655, %v4656
    %v4658 = vrot.slane %v4423, 1
    %v4659 = vsel %vm1631, %v4656, %v4658
    %v4660 = vrot.slane %v4424, 1
    %v4661 = vrot.slane %v4425, 1
    %v4662 = vsel %vm1631, %v4660, %v4661
    %v4663 = vrot.slane %v4426, 1
    %v4664 = vsel %vm1631, %v4661, %v4663
    %v4665 = vrot.slane %v4427, 1
    %v4666 = vrot.slane %v4428, 1
    %v4667 = vsel %vm1631, %v4665, %v4666
    %v4668 = vrot.slane %v4429, 1
    %v4669 = vsel %vm1631, %v4666, %v4668
    %v4670 = vrot.slane %v4430, 1
    %v4671 = vrot.slane %v4431, 1
    %v4672 = vsel %vm1631, %v4670, %v4671
    %v4673 = vrot.slane %v4432, 1
    %v4674 = vsel %vm1631, %v4671, %v4673
    %v4675 = vrot.slane %v4433, 1
    %v4676 = vrot.slane %v4434, 1
    %v4677 = vsel %vm1631, %v4675, %v4676
    %v4678 = vrot.slane %v4435, 1
    %v4679 = vsel %vm1631, %v4676, %v4678
    %v4680 = vrot.slane %v4436, 1
    %v4681 = vrot.slane %v4437, 1
    %v4682 = vsel %vm1631, %v4680, %v4681
    %v4683 = vrot.slane %v4438, 1
    %v4684 = vsel %vm1631, %v4681, %v4683
    %v4685 = vrot.slane %v4439, 1
    %v4686 = vrot.slane %v4440, 1
    %v4687 = vsel %vm1631, %v4685, %v4686
    %v4688 = vrot.slane %v4441, 1
    %v4689 = vsel %vm1631, %v4686, %v4688
    %v4690 = vrot.slane %v4442, 1
    %v4691 = vrot.slane %v4443, 1
    %v4692 = vsel %vm1631, %v4690, %v4691
    %v4693 = vrot.slane %v4444, 1
    %v4694 = vsel %vm1631, %v4691, %v4693
    %v4695 = vrot.slane %v4445, 1
    %v4696 = vrot.slane %v4446, 1
    %v4697 = vsel %vm1631, %v4695, %v4696
    %v4698 = vrot.slane %v4447, 1
    %v4699 = vsel %vm1631, %v4696, %v4698
    %v4700 = vrot.slane %v4448, 1
    %v4701 = vrot.slane %v4449, 1
    %v4702 = vsel %vm1631, %v4700, %v4701
    %v4703 = vrot.slane %v4450, 1
    %v4704 = vsel %vm1631, %v4701, %v4703
    %v4705 = vrot.slane %v4451, 1
    %v4706 = vrot.slane %v4452, 1
    %v4707 = vsel %vm1631, %v4705, %v4706
    %v4708 = vrot.slane %v4453, 1
    %v4709 = vsel %vm1631, %v4706, %v4708
    %v4774 = vrot.slane %v4358, 2
    %v4775 = vrot.slane %v4359, 2
    %v4776 = vsel %vm1856, %v4774, %v4775
    %v4777 = vrot.slane %v4360, 2
    %v4778 = vsel %vm1856, %v4775, %v4777
    %v4779 = vrot.slane %v4361, 2
    %v4780 = vrot.slane %v4362, 2
    %v4781 = vsel %vm1856, %v4779, %v4780
    %v4782 = vrot.slane %v4363, 2
    %v4783 = vsel %vm1856, %v4780, %v4782
    %v4784 = vrot.slane %v4364, 2
    %v4785 = vrot.slane %v4365, 2
    %v4786 = vsel %vm1856, %v4784, %v4785
    %v4787 = vrot.slane %v4366, 2
    %v4788 = vsel %vm1856, %v4785, %v4787
    %v4789 = vrot.slane %v4367, 2
    %v4790 = vrot.slane %v4368, 2
    %v4791 = vsel %vm1856, %v4789, %v4790
    %v4792 = vrot.slane %v4369, 2
    %v4793 = vsel %vm1856, %v4790, %v4792
    %v4794 = vrot.slane %v4370, 2
    %v4795 = vrot.slane %v4371, 2
    %v4796 = vsel %vm1856, %v4794, %v4795
    %v4797 = vrot.slane %v4372, 2
    %v4798 = vsel %vm1856, %v4795, %v4797
    %v4799 = vrot.slane %v4373, 2
    %v4800 = vrot.slane %v4374, 2
    %v4801 = vsel %vm1856, %v4799, %v4800
    %v4802 = vrot.slane %v4375, 2
    %v4803 = vsel %vm1856, %v4800, %v4802
    %v4804 = vrot.slane %v4376, 2
    %v4805 = vrot.slane %v4377, 2
    %v4806 = vsel %vm1856, %v4804, %v4805
    %v4807 = vrot.slane %v4378, 2
    %v4808 = vsel %vm1856, %v4805, %v4807
    %v4809 = vrot.slane %v4379, 2
    %v4810 = vrot.slane %v4380, 2
    %v4811 = vsel %vm1856, %v4809, %v4810
    %v4812 = vrot.slane %v4381, 2
    %v4813 = vsel %vm1856, %v4810, %v4812
    %v4814 = vrot.slane %v4382, 2
    %v4815 = vrot.slane %v4383, 2
    %v4816 = vsel %vm1856, %v4814, %v4815
    %v4817 = vrot.slane %v4384, 2
    %v4818 = vsel %vm1856, %v4815, %v4817
    %v4819 = vrot.slane %v4385, 2
    %v4820 = vrot.slane %v4386, 2
    %v4821 = vsel %vm1856, %v4819, %v4820
    %v4822 = vrot.slane %v4387, 2
    %v4823 = vsel %vm1856, %v4820, %v4822
    %v4824 = vrot.slane %v4388, 2
    %v4825 = vrot.slane %v4389, 2
    %v4826 = vsel %vm1856, %v4824, %v4825
    %v4827 = vrot.slane %v4390, 2
    %v4828 = vsel %vm1856, %v4825, %v4827
    %v4829 = vrot.slane %v4391, 2
    %v4830 = vrot.slane %v4392, 2
    %v4831 = vsel %vm1856, %v4829, %v4830
    %v4832 = vrot.slane %v4393, 2
    %v4833 = vsel %vm1856, %v4830, %v4832
    %v4834 = vrot.slane %v4394, 2
    %v4835 = vrot.slane %v4395, 2
    %v4836 = vsel %vm1856, %v4834, %v4835
    %v4837 = vrot.slane %v4396, 2
    %v4838 = vsel %vm1856, %v4835, %v4837
    %v4839 = vrot.slane %v4397, 2
    %v4840 = vrot.slane %v4398, 2
    %v4841 = vsel %vm1856, %v4839, %v4840
    %v4842 = vrot.slane %v4399, 2
    %v4843 = vsel %vm1856, %v4840, %v4842
    %v4844 = vrot.slane %v4400, 2
    %v4845 = vrot.slane %v4401, 2
    %v4846 = vsel %vm1856, %v4844, %v4845
    %v4847 = vrot.slane %v4402, 2
    %v4848 = vsel %vm1856, %v4845, %v4847
    %v4849 = vrot.slane %v4403, 2
    %v4850 = vrot.slane %v4404, 2
    %v4851 = vsel %vm1856, %v4849, %v4850
    %v4852 = vrot.slane %v4405, 2
    %v4853 = vsel %vm1856, %v4850, %v4852
    %v4854 = vrot.slane %v4406, 2
    %v4855 = vrot.slane %v4407, 2
    %v4856 = vsel %vm1856, %v4854, %v4855
    %v4857 = vrot.slane %v4408, 2
    %v4858 = vsel %vm1856, %v4855, %v4857
    %v4859 = vrot.slane %v4409, 2
    %v4860 = vrot.slane %v4410, 2
    %v4861 = vsel %vm1856, %v4859, %v4860
    %v4862 = vrot.slane %v4411, 2
    %v4863 = vsel %vm1856, %v4860, %v4862
    %v4864 = vrot.slane %v4412, 2
    %v4865 = vrot.slane %v4413, 2
    %v4866 = vsel %vm1856, %v4864, %v4865
    %v4867 = vrot.slane %v4414, 2
    %v4868 = vsel %vm1856, %v4865, %v4867
    %v4869 = vrot.slane %v4415, 2
    %v4870 = vrot.slane %v4416, 2
    %v4871 = vsel %vm1856, %v4869, %v4870
    %v4872 = vrot.slane %v4417, 2
    %v4873 = vsel %vm1856, %v4870, %v4872
    %v4874 = vrot.slane %v4418, 2
    %v4875 = vrot.slane %v4419, 2
    %v4876 = vsel %vm1856, %v4874, %v4875
    %v4877 = vrot.slane %v4420, 2
    %v4878 = vsel %vm1856, %v4875, %v4877
    %v4879 = vrot.slane %v4421, 2
    %v4880 = vrot.slane %v4422, 2
    %v4881 = vsel %vm1856, %v4879, %v4880
    %v4882 = vrot.slane %v4423, 2
    %v4883 = vsel %vm1856, %v4880, %v4882
    %v4884 = vrot.slane %v4424, 2
    %v4885 = vrot.slane %v4425, 2
    %v4886 = vsel %vm1856, %v4884, %v4885
    %v4887 = vrot.slane %v4426, 2
    %v4888 = vsel %vm1856, %v4885, %v4887
    %v4889 = vrot.slane %v4427, 2
    %v4890 = vrot.slane %v4428, 2
    %v4891 = vsel %vm1856, %v4889, %v4890
    %v4892 = vrot.slane %v4429, 2
    %v4893 = vsel %vm1856, %v4890, %v4892
    %v4894 = vrot.slane %v4430, 2
    %v4895 = vrot.slane %v4431, 2
    %v4896 = vsel %vm1856, %v4894, %v4895
    %v4897 = vrot.slane %v4432, 2
    %v4898 = vsel %vm1856, %v4895, %v4897
    %v4899 = vrot.slane %v4433, 2
    %v4900 = vrot.slane %v4434, 2
    %v4901 = vsel %vm1856, %v4899, %v4900
    %v4902 = vrot.slane %v4435, 2
    %v4903 = vsel %vm1856, %v4900, %v4902
    %v4904 = vrot.slane %v4436, 2
    %v4905 = vrot.slane %v4437, 2
    %v4906 = vsel %vm1856, %v4904, %v4905
    %v4907 = vrot.slane %v4438, 2
    %v4908 = vsel %vm1856, %v4905, %v4907
    %v4909 = vrot.slane %v4439, 2
    %v4910 = vrot.slane %v4440, 2
    %v4911 = vsel %vm1856, %v4909, %v4910
    %v4912 = vrot.slane %v4441, 2
    %v4913 = vsel %vm1856, %v4910, %v4912
    %v4914 = vrot.slane %v4442, 2
    %v4915 = vrot.slane %v4443, 2
    %v4916 = vsel %vm1856, %v4914, %v4915
    %v4917 = vrot.slane %v4444, 2
    %v4918 = vsel %vm1856, %v4915, %v4917
    %v4919 = vrot.slane %v4445, 2
    %v4920 = vrot.slane %v4446, 2
    %v4921 = vsel %vm1856, %v4919, %v4920
    %v4922 = vrot.slane %v4447, 2
    %v4923 = vsel %vm1856, %v4920, %v4922
    %v4924 = vrot.slane %v4448, 2
    %v4925 = vrot.slane %v4449, 2
    %v4926 = vsel %vm1856, %v4924, %v4925
    %v4927 = vrot.slane %v4450, 2
    %v4928 = vsel %vm1856, %v4925, %v4927
    %v4929 = vrot.slane %v4451, 2
    %v4930 = vrot.slane %v4452, 2
    %v4931 = vsel %vm1856, %v4929, %v4930
    %v4932 = vrot.slane %v4453, 2
    %v4933 = vsel %vm1856, %v4930, %v4932
    %v4998 = vld [vmem:[#allocation8 + $0x300] sm:$0xff]
    %v4999 = vld [vmem:[#allocation8 + $0x308] sm:$0xff]
    %v5000 = vld [vmem:[#allocation8 + $0x310] sm:$0xff]
    %v5001 = vld [vmem:[#allocation8 + $0x318] sm:$0xff]
    %v5002 = vld [vmem:[#allocation8 + $0x320] sm:$0xff]
    %v5003 = vld [vmem:[#allocation8 + $0x328] sm:$0xff]
    %v5004 = vld [vmem:[#allocation8 + $0x330] sm:$0xff]
    %v5005 = vld [vmem:[#allocation8 + $0x338] sm:$0xff]
    %v5006 = vld [vmem:[#allocation8 + $0x340] sm:$0xff]
    %v5007 = vld [vmem:[#allocation8 + $0x348] sm:$0xff]
    %v5008 = vld [vmem:[#allocation8 + $0x350] sm:$0xff]
    %v5009 = vld [vmem:[#allocation8 + $0x358] sm:$0xff]
    %v5010 = vld [vmem:[#allocation8 + $0x360] sm:$0xff]
    %v5011 = vld [vmem:[#allocation8 + $0x368] sm:$0xff]
    %v5012 = vld [vmem:[#allocation8 + $0x370] sm:$0xff]
    %v5013 = vld [vmem:[#allocation8 + $0x378] sm:$0xff]
    %v5014 = vld [vmem:[#allocation8 + $0x380] sm:$0xff]
    %v5015 = vld [vmem:[#allocation8 + $0x388] sm:$0xff]
    %v5016 = vld [vmem:[#allocation8 + $0x390] sm:$0xff]
    %v5017 = vld [vmem:[#allocation8 + $0x398] sm:$0xff]
    %v5018 = vld [vmem:[#allocation8 + $0x3a0] sm:$0xff]
    %v5019 = vld [vmem:[#allocation8 + $0x3a8] sm:$0xff]
    %v5020 = vld [vmem:[#allocation8 + $0x3b0] sm:$0xff]
    %v5021 = vld [vmem:[#allocation8 + $0x3b8] sm:$0xff]
    %v5022 = vld [vmem:[#allocation8 + $0x3c0] sm:$0xff]
    %v5023 = vld [vmem:[#allocation8 + $0x3c8] sm:$0xff]
    %v5024 = vld [vmem:[#allocation8 + $0x3d0] sm:$0xff]
    %v5025 = vld [vmem:[#allocation8 + $0x3d8] sm:$0xff]
    %v5026 = vld [vmem:[#allocation8 + $0x3e0] sm:$0xff]
    %v5027 = vld [vmem:[#allocation8 + $0x3e8] sm:$0xff]
    %v5028 = vld [vmem:[#allocation8 + $0x3f0] sm:$0xff]
    %v5029 = vld [vmem:[#allocation8 + $0x3f8] sm:$0xff]
    %v5030 = vld [vmem:[#allocation8 + $0x400] sm:$0xff]
    %v5031 = vld [vmem:[#allocation8 + $0x408] sm:$0xff]
    %v5032 = vld [vmem:[#allocation8 + $0x410] sm:$0xff]
    %v5033 = vld [vmem:[#allocation8 + $0x418] sm:$0xff]
    %v5034 = vld [vmem:[#allocation8 + $0x420] sm:$0xff]
    %v5035 = vld [vmem:[#allocation8 + $0x428] sm:$0xff]
    %v5036 = vld [vmem:[#allocation8 + $0x430] sm:$0xff]
    %v5037 = vld [vmem:[#allocation8 + $0x438] sm:$0xff]
    %v5038 = vld [vmem:[#allocation8 + $0x440] sm:$0xff]
    %v5039 = vld [vmem:[#allocation8 + $0x448] sm:$0xff]
    %v5040 = vld [vmem:[#allocation8 + $0x450] sm:$0xff]
    %v5041 = vld [vmem:[#allocation8 + $0x458] sm:$0xff]
    %v5042 = vld [vmem:[#allocation8 + $0x460] sm:$0xff]
    %v5043 = vld [vmem:[#allocation8 + $0x468] sm:$0xff]
    %v5044 = vld [vmem:[#allocation8 + $0x470] sm:$0xff]
    %v5045 = vld [vmem:[#allocation8 + $0x478] sm:$0xff]
    %5046 = vmatprep.subr.mxu0 0.0
    %5047 = vmatpush1.msra.mxu0 %v5013
    %5048 = vmatprep.subr.mxu0 0.0
    %5049 = vmatpush1.msra.mxu0 %v5012
    %5050 = vmatprep.subr.mxu0 0.0
    %5051 = vmatpush1.msra.mxu0 %v5011
    %5052 = vmatprep.subr.mxu0 0.0
    %5053 = vmatpush1.msra.mxu0 %v5010
    %5054 = vmatprep.subr.mxu0 0.0
    %5055 = vmatpush1.msra.mxu0 %v5009
    %5056 = vmatprep.subr.mxu0 0.0
    %5057 = vmatpush1.msra.mxu0 %v5008
    %5058 = vmatprep.subr.mxu0 0.0
    %5059 = vmatpush1.msra.mxu0 %v5007
    %5060 = vmatprep.subr.mxu0 0.0
    %5061 = vmatpush1.msra.mxu0 %v5006
    %5062 = vmatprep.subr.mxu0 0.0
    %5063 = vmatpush1.msra.mxu0 %v5005
    %5064 = vmatprep.subr.mxu0 0.0
    %5065 = vmatpush1.msra.mxu0 %v5004
    %5066 = vmatprep.subr.mxu0 0.0
    %5067 = vmatpush1.msra.mxu0 %v5003
    %5068 = vmatprep.subr.mxu0 0.0
    %5069 = vmatpush1.msra.mxu0 %v5002
    %5070 = vmatprep.subr.mxu0 0.0
    %5071 = vmatpush1.msra.mxu0 %v5001
    %5072 = vmatprep.subr.mxu0 0.0
    %5073 = vmatpush1.msra.mxu0 %v5000
    %5074 = vmatprep.subr.mxu0 0.0
    %5075 = vmatpush1.msra.mxu0 %v4999
    %5076 = vmatprep.subr.mxu0 0.0
    %5077 = vmatpush1.msra.mxu0 %v4998
    %5078 = vmatprep.subr.mxu0 0.0
    %5079 = vmatpush2.msra.mxu0 %v5029
    %5080 = vmatprep.subr.mxu0 0.0
    %5081 = vmatpush2.msra.mxu0 %v5028
    %5082 = vmatprep.subr.mxu0 0.0
    %5083 = vmatpush2.msra.mxu0 %v5027
    %5084 = vmatprep.subr.mxu0 0.0
    %5085 = vmatpush2.msra.mxu0 %v5026
    %5086 = vmatprep.subr.mxu0 0.0
    %5087 = vmatpush2.msra.mxu0 %v5025
    %5088 = vmatprep.subr.mxu0 0.0
    %5089 = vmatpush2.msra.mxu0 %v5024
    %5090 = vmatprep.subr.mxu0 0.0
    %5091 = vmatpush2.msra.mxu0 %v5023
    %5092 = vmatprep.subr.mxu0 0.0
    %5093 = vmatpush2.msra.mxu0 %v5022
    %5094 = vmatprep.subr.mxu0 0.0
    %5095 = vmatpush2.msra.mxu0 %v5021
    %5096 = vmatprep.subr.mxu0 0.0
    %5097 = vmatpush2.msra.mxu0 %v5020
    %5098 = vmatprep.subr.mxu0 0.0
    %5099 = vmatpush2.msra.mxu0 %v5019
    %5100 = vmatprep.subr.mxu0 0.0
    %5101 = vmatpush2.msra.mxu0 %v5018
    %5102 = vmatprep.subr.mxu0 0.0
    %5103 = vmatpush2.msra.mxu0 %v5017
    %5104 = vmatprep.subr.mxu0 0.0
    %5105 = vmatpush2.msra.mxu0 %v5016
    %5106 = vmatprep.subr.mxu0 0.0
    %5107 = vmatpush2.msra.mxu0 %v5015
    %5108 = vmatprep.subr.mxu0 0.0
    %5109 = vmatpush2.msra.mxu0 %v5014
    %5110 = vmatprep.mubr.f32.mxu0 %v4552
    %5111 = vmatmul.mubr.f32.gmra.mxu0 %v4358
    %v5112 = vpop.f32.mrf.mxu0
    %v5113 = vadd.f32 0.0, %v5112
    %v5114 = vpop.f32.mrf.mxu0
    %5115 = vmatprep.mubr.f32.mxu0 %v4554
    %5116 = vmatmul.mubr.f32.gmra.mxu0 %v4359
    %v5117 = vpop.f32.mrf.mxu0
    %v5118 = vadd.f32 0.0, %v5117
    %v5119 = vpop.f32.mrf.mxu0
    %5120 = vmatprep.mubr.f32.mxu0 %v4557
    %5121 = vmatmul.mubr.f32.gmra.mxu0 %v4361
    %v5122 = vpop.f32.mrf.mxu0
    %v5123 = vadd.f32 0.0, %v5122
    %v5124 = vpop.f32.mrf.mxu0
    %5125 = vmatprep.mubr.f32.mxu0 %v4559
    %5126 = vmatmul.mubr.f32.gmra.mxu0 %v4362
    %v5127 = vpop.f32.mrf.mxu0
    %v5128 = vadd.f32 0.0, %v5127
    %v5129 = vpop.f32.mrf.mxu0
    %5130 = vmatprep.mubr.f32.mxu0 %v4562
    %5131 = vmatmul.mubr.f32.gmra.mxu0 %v4364
    %v5132 = vpop.f32.mrf.mxu0
    %v5133 = vadd.f32 0.0, %v5132
    %v5134 = vpop.f32.mrf.mxu0
    %5135 = vmatprep.mubr.f32.mxu0 %v4564
    %5136 = vmatmul.mubr.f32.gmra.mxu0 %v4365
    %v5137 = vpop.f32.mrf.mxu0
    %v5138 = vadd.f32 0.0, %v5137
    %v5139 = vpop.f32.mrf.mxu0
    %5140 = vmatprep.mubr.f32.mxu0 %v4567
    %5141 = vmatmul.mubr.f32.gmra.mxu0 %v4367
    %v5142 = vpop.f32.mrf.mxu0
    %v5143 = vadd.f32 0.0, %v5142
    %v5144 = vpop.f32.mrf.mxu0
    %5145 = vmatprep.mubr.f32.mxu0 %v4569
    %5146 = vmatmul.mubr.f32.gmra.mxu0 %v4368
    %v5147 = vpop.f32.mrf.mxu0
    %v5148 = vadd.f32 0.0, %v5147
    %v5149 = vpop.f32.mrf.mxu0
    %5150 = vmatprep.mubr.f32.mxu0 %v4572
    %5151 = vmatmul.mubr.f32.gmra.mxu0 %v4370
    %v5152 = vpop.f32.mrf.mxu0
    %v5153 = vadd.f32 0.0, %v5152
    %v5154 = vpop.f32.mrf.mxu0
    %5155 = vmatprep.mubr.f32.mxu0 %v4574
    %5156 = vmatmul.mubr.f32.gmra.mxu0 %v4371
    %v5157 = vpop.f32.mrf.mxu0
    %v5158 = vadd.f32 0.0, %v5157
    %v5159 = vpop.f32.mrf.mxu0
    %5160 = vmatprep.mubr.f32.mxu0 %v4577
    %5161 = vmatmul.mubr.f32.gmra.mxu0 %v4373
    %v5162 = vpop.f32.mrf.mxu0
    %v5163 = vadd.f32 0.0, %v5162
    %v5164 = vpop.f32.mrf.mxu0
    %5165 = vmatprep.mubr.f32.mxu0 %v4579
    %5166 = vmatmul.mubr.f32.gmra.mxu0 %v4374
    %v5167 = vpop.f32.mrf.mxu0
    %v5168 = vadd.f32 0.0, %v5167
    %v5169 = vpop.f32.mrf.mxu0
    %5170 = vmatprep.mubr.f32.mxu0 %v4582
    %5171 = vmatmul.mubr.f32.gmra.mxu0 %v4376
    %v5172 = vpop.f32.mrf.mxu0
    %v5173 = vadd.f32 0.0, %v5172
    %v5174 = vpop.f32.mrf.mxu0
    %5175 = vmatprep.mubr.f32.mxu0 %v4584
    %5176 = vmatmul.mubr.f32.gmra.mxu0 %v4377
    %v5177 = vpop.f32.mrf.mxu0
    %v5178 = vadd.f32 0.0, %v5177
    %v5179 = vpop.f32.mrf.mxu0
    %5180 = vmatprep.mubr.f32.mxu0 %v4587
    %5181 = vmatmul.mubr.f32.gmra.mxu0 %v4379
    %v5182 = vpop.f32.mrf.mxu0
    %v5183 = vadd.f32 0.0, %v5182
    %v5184 = vpop.f32.mrf.mxu0
    %5185 = vmatprep.mubr.f32.mxu0 %v4589
    %5186 = vmatmul.mubr.f32.gmra.mxu0 %v4380
    %v5187 = vpop.f32.mrf.mxu0
    %v5188 = vadd.f32 0.0, %v5187
    %v5189 = vpop.f32.mrf.mxu0
    %5190 = vmatprep.mubr.f32.mxu0 %v4592
    %5191 = vmatmul.mubr.f32.gmra.mxu0 %v4382
    %v5192 = vpop.f32.mrf.mxu0
    %v5193 = vadd.f32 0.0, %v5192
    %v5194 = vpop.f32.mrf.mxu0
    %5195 = vmatprep.mubr.f32.mxu0 %v4594
    %5196 = vmatmul.mubr.f32.gmra.mxu0 %v4383
    %v5197 = vpop.f32.mrf.mxu0
    %v5198 = vadd.f32 0.0, %v5197
    %v5199 = vpop.f32.mrf.mxu0
    %5200 = vmatprep.mubr.f32.mxu0 %v4597
    %5201 = vmatmul.mubr.f32.gmra.mxu0 %v4385
    %v5202 = vpop.f32.mrf.mxu0
    %v5203 = vadd.f32 0.0, %v5202
    %v5204 = vpop.f32.mrf.mxu0
    %5205 = vmatprep.mubr.f32.mxu0 %v4599
    %5206 = vmatmul.mubr.f32.gmra.mxu0 %v4386
    %v5207 = vpop.f32.mrf.mxu0
    %v5208 = vadd.f32 0.0, %v5207
    %v5209 = vpop.f32.mrf.mxu0
    %5210 = vmatprep.mubr.f32.mxu0 %v4602
    %5211 = vmatmul.mubr.f32.gmra.mxu0 %v4388
    %v5212 = vpop.f32.mrf.mxu0
    %v5213 = vadd.f32 0.0, %v5212
    %v5214 = vpop.f32.mrf.mxu0
    %5215 = vmatprep.mubr.f32.mxu0 %v4604
    %5216 = vmatmul.mubr.f32.gmra.mxu0 %v4389
    %v5217 = vpop.f32.mrf.mxu0
    %v5218 = vadd.f32 0.0, %v5217
    %v5219 = vpop.f32.mrf.mxu0
    %5220 = vmatprep.mubr.f32.mxu0 %v4607
    %5221 = vmatmul.mubr.f32.gmra.mxu0 %v4391
    %v5222 = vpop.f32.mrf.mxu0
    %v5223 = vadd.f32 0.0, %v5222
    %v5224 = vpop.f32.mrf.mxu0
    %5225 = vmatprep.mubr.f32.mxu0 %v4609
    %5226 = vmatmul.mubr.f32.gmra.mxu0 %v4392
    %v5227 = vpop.f32.mrf.mxu0
    %v5228 = vadd.f32 0.0, %v5227
    %v5229 = vpop.f32.mrf.mxu0
    %5230 = vmatprep.mubr.f32.mxu0 %v4612
    %5231 = vmatmul.mubr.f32.gmra.mxu0 %v4394
    %v5232 = vpop.f32.mrf.mxu0
    %v5233 = vadd.f32 0.0, %v5232
    %v5234 = vpop.f32.mrf.mxu0
    %5235 = vmatprep.mubr.f32.mxu0 %v4614
    %5236 = vmatmul.mubr.f32.gmra.mxu0 %v4395
    %v5237 = vpop.f32.mrf.mxu0
    %v5238 = vadd.f32 0.0, %v5237
    %v5239 = vpop.f32.mrf.mxu0
    %5240 = vmatprep.mubr.f32.mxu0 %v4617
    %5241 = vmatmul.mubr.f32.gmra.mxu0 %v4397
    %v5242 = vpop.f32.mrf.mxu0
    %v5243 = vadd.f32 0.0, %v5242
    %v5244 = vpop.f32.mrf.mxu0
    %5245 = vmatprep.mubr.f32.mxu0 %v4619
    %5246 = vmatmul.mubr.f32.gmra.mxu0 %v4398
    %v5247 = vpop.f32.mrf.mxu0
    %v5248 = vadd.f32 0.0, %v5247
    %v5249 = vpop.f32.mrf.mxu0
    %5250 = vmatprep.mubr.f32.mxu0 %v4622
    %5251 = vmatmul.mubr.f32.gmra.mxu0 %v4400
    %v5252 = vpop.f32.mrf.mxu0
    %v5253 = vadd.f32 0.0, %v5252
    %v5254 = vpop.f32.mrf.mxu0
    %5255 = vmatprep.mubr.f32.mxu0 %v4624
    %5256 = vmatmul.mubr.f32.gmra.mxu0 %v4401
    %v5257 = vpop.f32.mrf.mxu0
    %v5258 = vadd.f32 0.0, %v5257
    %v5259 = vpop.f32.mrf.mxu0
    %5260 = vmatprep.mubr.f32.mxu0 %v4627
    %5261 = vmatmul.mubr.f32.gmra.mxu0 %v4403
    %v5262 = vpop.f32.mrf.mxu0
    %v5263 = vadd.f32 0.0, %v5262
    %v5264 = vpop.f32.mrf.mxu0
    %5265 = vmatprep.mubr.f32.mxu0 %v4629
    %5266 = vmatmul.mubr.f32.gmra.mxu0 %v4404
    %v5267 = vpop.f32.mrf.mxu0
    %v5268 = vadd.f32 0.0, %v5267
    %v5269 = vpop.f32.mrf.mxu0
    %5270 = vmatprep.mubr.f32.mxu0 %v4632
    %5271 = vmatmul.mubr.f32.gmra.mxu0 %v4406
    %v5272 = vpop.f32.mrf.mxu0
    %v5273 = vadd.f32 0.0, %v5272
    %v5274 = vpop.f32.mrf.mxu0
    %5275 = vmatprep.mubr.f32.mxu0 %v4634
    %5276 = vmatmul.mubr.f32.gmra.mxu0 %v4407
    %v5277 = vpop.f32.mrf.mxu0
    %v5278 = vadd.f32 0.0, %v5277
    %v5279 = vpop.f32.mrf.mxu0
    %5280 = vmatprep.mubr.f32.mxu0 %v4637
    %5281 = vmatmul.mubr.f32.gmra.mxu0 %v4409
    %v5282 = vpop.f32.mrf.mxu0
    %v5283 = vadd.f32 0.0, %v5282
    %v5284 = vpop.f32.mrf.mxu0
    %5285 = vmatprep.mubr.f32.mxu0 %v4639
    %5286 = vmatmul.mubr.f32.gmra.mxu0 %v4410
    %v5287 = vpop.f32.mrf.mxu0
    %v5288 = vadd.f32 0.0, %v5287
    %v5289 = vpop.f32.mrf.mxu0
    %5290 = vmatprep.mubr.f32.mxu0 %v4642
    %5291 = vmatmul.mubr.f32.gmra.mxu0 %v4412
    %v5292 = vpop.f32.mrf.mxu0
    %v5293 = vadd.f32 0.0, %v5292
    %v5294 = vpop.f32.mrf.mxu0
    %5295 = vmatprep.mubr.f32.mxu0 %v4644
    %5296 = vmatmul.mubr.f32.gmra.mxu0 %v4413
    %v5297 = vpop.f32.mrf.mxu0
    %v5298 = vadd.f32 0.0, %v5297
    %v5299 = vpop.f32.mrf.mxu0
    %5300 = vmatprep.mubr.f32.mxu0 %v4647
    %5301 = vmatmul.mubr.f32.gmra.mxu0 %v4415
    %v5302 = vpop.f32.mrf.mxu0
    %v5303 = vadd.f32 0.0, %v5302
    %v5304 = vpop.f32.mrf.mxu0
    %5305 = vmatprep.mubr.f32.mxu0 %v4649
    %5306 = vmatmul.mubr.f32.gmra.mxu0 %v4416
    %v5307 = vpop.f32.mrf.mxu0
    %v5308 = vadd.f32 0.0, %v5307
    %v5309 = vpop.f32.mrf.mxu0
    %5310 = vmatprep.mubr.f32.mxu0 %v4652
    %5311 = vmatmul.mubr.f32.gmra.mxu0 %v4418
    %v5312 = vpop.f32.mrf.mxu0
    %v5313 = vadd.f32 0.0, %v5312
    %v5314 = vpop.f32.mrf.mxu0
    %5315 = vmatprep.mubr.f32.mxu0 %v4654
    %5316 = vmatmul.mubr.f32.gmra.mxu0 %v4419
    %v5317 = vpop.f32.mrf.mxu0
    %v5318 = vadd.f32 0.0, %v5317
    %v5319 = vpop.f32.mrf.mxu0
    %5320 = vmatprep.mubr.f32.mxu0 %v4657
    %5321 = vmatmul.mubr.f32.gmra.mxu0 %v4421
    %v5322 = vpop.f32.mrf.mxu0
    %v5323 = vadd.f32 0.0, %v5322
    %v5324 = vpop.f32.mrf.mxu0
    %5325 = vmatprep.mubr.f32.mxu0 %v4659
    %5326 = vmatmul.mubr.f32.gmra.mxu0 %v4422
    %v5327 = vpop.f32.mrf.mxu0
    %v5328 = vadd.f32 0.0, %v5327
    %v5329 = vpop.f32.mrf.mxu0
    %5330 = vmatprep.mubr.f32.mxu0 %v4662
    %5331 = vmatmul.mubr.f32.gmra.mxu0 %v4424
    %v5332 = vpop.f32.mrf.mxu0
    %v5333 = vadd.f32 0.0, %v5332
    %v5334 = vpop.f32.mrf.mxu0
    %5335 = vmatprep.mubr.f32.mxu0 %v4664
    %5336 = vmatmul.mubr.f32.gmra.mxu0 %v4425
    %v5337 = vpop.f32.mrf.mxu0
    %v5338 = vadd.f32 0.0, %v5337
    %v5339 = vpop.f32.mrf.mxu0
    %5340 = vmatprep.mubr.f32.mxu0 %v4667
    %5341 = vmatmul.mubr.f32.gmra.mxu0 %v4427
    %v5342 = vpop.f32.mrf.mxu0
    %v5343 = vadd.f32 0.0, %v5342
    %v5344 = vpop.f32.mrf.mxu0
    %5345 = vmatprep.mubr.f32.mxu0 %v4669
    %5346 = vmatmul.mubr.f32.gmra.mxu0 %v4428
    %v5347 = vpop.f32.mrf.mxu0
    %v5348 = vadd.f32 0.0, %v5347
    %v5349 = vpop.f32.mrf.mxu0
    %5350 = vmatprep.mubr.f32.mxu0 %v4672
    %5351 = vmatmul.mubr.f32.gmra.mxu0 %v4430
    %v5352 = vpop.f32.mrf.mxu0
    %v5353 = vadd.f32 0.0, %v5352
    %v5354 = vpop.f32.mrf.mxu0
    %5355 = vmatprep.mubr.f32.mxu0 %v4674
    %5356 = vmatmul.mubr.f32.gmra.mxu0 %v4431
    %v5357 = vpop.f32.mrf.mxu0
    %v5358 = vadd.f32 0.0, %v5357
    %v5359 = vpop.f32.mrf.mxu0
    %5360 = vmatprep.mubr.f32.mxu0 %v4677
    %5361 = vmatmul.mubr.f32.gmra.mxu0 %v4433
    %v5362 = vpop.f32.mrf.mxu0
    %v5363 = vadd.f32 0.0, %v5362
    %v5364 = vpop.f32.mrf.mxu0
    %5365 = vmatprep.mubr.f32.mxu0 %v4679
    %5366 = vmatmul.mubr.f32.gmra.mxu0 %v4434
    %v5367 = vpop.f32.mrf.mxu0
    %v5368 = vadd.f32 0.0, %v5367
    %v5369 = vpop.f32.mrf.mxu0
    %5370 = vmatprep.mubr.f32.mxu0 %v4682
    %5371 = vmatmul.mubr.f32.gmra.mxu0 %v4436
    %v5372 = vpop.f32.mrf.mxu0
    %v5373 = vadd.f32 0.0, %v5372
    %v5374 = vpop.f32.mrf.mxu0
    %5375 = vmatprep.mubr.f32.mxu0 %v4684
    %5376 = vmatmul.mubr.f32.gmra.mxu0 %v4437
    %v5377 = vpop.f32.mrf.mxu0
    %v5378 = vadd.f32 0.0, %v5377
    %v5379 = vpop.f32.mrf.mxu0
    %5380 = vmatprep.mubr.f32.mxu0 %v4687
    %5381 = vmatmul.mubr.f32.gmra.mxu0 %v4439
    %v5382 = vpop.f32.mrf.mxu0
    %v5383 = vadd.f32 0.0, %v5382
    %v5384 = vpop.f32.mrf.mxu0
    %5385 = vmatprep.mubr.f32.mxu0 %v4689
    %5386 = vmatmul.mubr.f32.gmra.mxu0 %v4440
    %v5387 = vpop.f32.mrf.mxu0
    %v5388 = vadd.f32 0.0, %v5387
    %v5389 = vpop.f32.mrf.mxu0
    %5390 = vmatprep.mubr.f32.mxu0 %v4692
    %5391 = vmatmul.mubr.f32.gmra.mxu0 %v4442
    %v5392 = vpop.f32.mrf.mxu0
    %v5393 = vadd.f32 0.0, %v5392
    %v5394 = vpop.f32.mrf.mxu0
    %5395 = vmatprep.mubr.f32.mxu0 %v4694
    %5396 = vmatmul.mubr.f32.gmra.mxu0 %v4443
    %v5397 = vpop.f32.mrf.mxu0
    %v5398 = vadd.f32 0.0, %v5397
    %v5399 = vpop.f32.mrf.mxu0
    %5400 = vmatprep.mubr.f32.mxu0 %v4697
    %5401 = vmatmul.mubr.f32.gmra.mxu0 %v4445
    %v5402 = vpop.f32.mrf.mxu0
    %v5403 = vadd.f32 0.0, %v5402
    %v5404 = vpop.f32.mrf.mxu0
    %5405 = vmatprep.mubr.f32.mxu0 %v4699
    %5406 = vmatmul.mubr.f32.gmra.mxu0 %v4446
    %v5407 = vpop.f32.mrf.mxu0
    %v5408 = vadd.f32 0.0, %v5407
    %v5409 = vpop.f32.mrf.mxu0
    %5410 = vmatprep.mubr.f32.mxu0 %v4702
    %5411 = vmatmul.mubr.f32.gmra.mxu0 %v4448
    %v5412 = vpop.f32.mrf.mxu0
    %v5413 = vadd.f32 0.0, %v5412
    %v5414 = vpop.f32.mrf.mxu0
    %5415 = vmatprep.mubr.f32.mxu0 %v4704
    %5416 = vmatmul.mubr.f32.gmra.mxu0 %v4449
    %v5417 = vpop.f32.mrf.mxu0
    %v5418 = vadd.f32 0.0, %v5417
    %v5419 = vpop.f32.mrf.mxu0
    %5420 = vmatprep.mubr.f32.mxu0 %v4707
    %5421 = vmatmul.mubr.f32.gmra.mxu0 %v4451
    %v5422 = vpop.f32.mrf.mxu0
    %v5423 = vadd.f32 0.0, %v5422
    %v5424 = vpop.f32.mrf.mxu0
    %5425 = vmatprep.mubr.f32.mxu0 %v4709
    %5426 = vmatmul.mubr.f32.gmra.mxu0 %v4452
    %v5427 = vpop.f32.mrf.mxu0
    %v5428 = vadd.f32 0.0, %v5427
    %v5429 = vpop.f32.mrf.mxu0
    %5430 = vdwg.mxu0
    %5431 = vmatprep.subr.mxu0 0.0
    %5432 = vmatpush1.msra.mxu0 %v5045
    %5433 = vmatprep.subr.mxu0 0.0
    %5434 = vmatpush1.msra.mxu0 %v5044
    %5435 = vmatprep.subr.mxu0 0.0
    %5436 = vmatpush1.msra.mxu0 %v5043
    %5437 = vmatprep.subr.mxu0 0.0
    %5438 = vmatpush1.msra.mxu0 %v5042
    %5439 = vmatprep.subr.mxu0 0.0
    %5440 = vmatpush1.msra.mxu0 %v5041
    %5441 = vmatprep.subr.mxu0 0.0
    %5442 = vmatpush1.msra.mxu0 %v5040
    %5443 = vmatprep.subr.mxu0 0.0
    %5444 = vmatpush1.msra.mxu0 %v5039
    %5445 = vmatprep.subr.mxu0 0.0
    %5446 = vmatpush1.msra.mxu0 %v5038
    %5447 = vmatprep.subr.mxu0 0.0
    %5448 = vmatpush1.msra.mxu0 %v5037
    %5449 = vmatprep.subr.mxu0 0.0
    %5450 = vmatpush1.msra.mxu0 %v5036
    %5451 = vmatprep.subr.mxu0 0.0
    %5452 = vmatpush1.msra.mxu0 %v5035
    %5453 = vmatprep.subr.mxu0 0.0
    %5454 = vmatpush1.msra.mxu0 %v5034
    %5455 = vmatprep.subr.mxu0 0.0
    %5456 = vmatpush1.msra.mxu0 %v5033
    %5457 = vmatprep.subr.mxu0 0.0
    %5458 = vmatpush1.msra.mxu0 %v5032
    %5459 = vmatprep.subr.mxu0 0.0
    %5460 = vmatpush1.msra.mxu0 %v5031
    %5461 = vmatprep.subr.mxu0 0.0
    %5462 = vmatpush1.msra.mxu0 %v5030
    %5463 = vmatprep.subr.mxu0 0.0
    %5464 = vmatpush2.msra.mxu0 0.0
    %5465 = vmatprep.subr.mxu0 0.0
    %5466 = vmatpush2.msra.mxu0 0.0
    %5467 = vmatprep.subr.mxu0 0.0
    %5468 = vmatpush2.msra.mxu0 0.0
    %5469 = vmatprep.subr.mxu0 0.0
    %5470 = vmatpush2.msra.mxu0 0.0
    %5471 = vmatprep.subr.mxu0 0.0
    %5472 = vmatpush2.msra.mxu0 0.0
    %5473 = vmatprep.subr.mxu0 0.0
    %5474 = vmatpush2.msra.mxu0 0.0
    %5475 = vmatprep.subr.mxu0 0.0
    %5476 = vmatpush2.msra.mxu0 0.0
    %5477 = vmatprep.subr.mxu0 0.0
    %5478 = vmatpush2.msra.mxu0 0.0
    %5479 = vmatprep.subr.mxu0 0.0
    %5480 = vmatpush2.msra.mxu0 0.0
    %5481 = vmatprep.subr.mxu0 0.0
    %5482 = vmatpush2.msra.mxu0 0.0
    %5483 = vmatprep.subr.mxu0 0.0
    %5484 = vmatpush2.msra.mxu0 0.0
    %5485 = vmatprep.subr.mxu0 0.0
    %5486 = vmatpush2.msra.mxu0 0.0
    %5487 = vmatprep.subr.mxu0 0.0
    %5488 = vmatpush2.msra.mxu0 0.0
    %5489 = vmatprep.subr.mxu0 0.0
    %5490 = vmatpush2.msra.mxu0 0.0
    %5491 = vmatprep.subr.mxu0 0.0
    %5492 = vmatpush2.msra.mxu0 0.0
    %5493 = vmatprep.subr.mxu0 0.0
    %5494 = vmatpush2.msra.mxu0 0.0
    %5495 = vmatprep.mubr.f32.mxu0 0.0
    %5496 = vmatmul.mubr.f32.gmra.mxu0 %v4776
    %v5497 = vpop.f32.mrf.mxu0
    %v5498 = vadd.f32 %v5113, %v5497
    %v5499 = vpop.f32.mrf.mxu0
    %5500 = vmatprep.mubr.f32.mxu0 0.0
    %5501 = vmatmul.mubr.f32.gmra.mxu0 %v4778
    %v5502 = vpop.f32.mrf.mxu0
    %v5503 = vadd.f32 %v5118, %v5502
    %v5504 = vpop.f32.mrf.mxu0
    %5505 = vmatprep.mubr.f32.mxu0 0.0
    %5506 = vmatmul.mubr.f32.gmra.mxu0 %v4781
    %v5507 = vpop.f32.mrf.mxu0
    %v5508 = vadd.f32 %v5123, %v5507
    %v5509 = vpop.f32.mrf.mxu0
    %5510 = vmatprep.mubr.f32.mxu0 0.0
    %5511 = vmatmul.mubr.f32.gmra.mxu0 %v4783
    %v5512 = vpop.f32.mrf.mxu0
    %v5513 = vadd.f32 %v5128, %v5512
    %v5514 = vpop.f32.mrf.mxu0
    %5515 = vmatprep.mubr.f32.mxu0 0.0
    %5516 = vmatmul.mubr.f32.gmra.mxu0 %v4786
    %v5517 = vpop.f32.mrf.mxu0
    %v5518 = vadd.f32 %v5133, %v5517
    %v5519 = vpop.f32.mrf.mxu0
    %5520 = vmatprep.mubr.f32.mxu0 0.0
    %5521 = vmatmul.mubr.f32.gmra.mxu0 %v4788
    %v5522 = vpop.f32.mrf.mxu0
    %v5523 = vadd.f32 %v5138, %v5522
    %v5524 = vpop.f32.mrf.mxu0
    %5525 = vmatprep.mubr.f32.mxu0 0.0
    %5526 = vmatmul.mubr.f32.gmra.mxu0 %v4791
    %v5527 = vpop.f32.mrf.mxu0
    %v5528 = vadd.f32 %v5143, %v5527
    %v5529 = vpop.f32.mrf.mxu0
    %5530 = vmatprep.mubr.f32.mxu0 0.0
    %5531 = vmatmul.mubr.f32.gmra.mxu0 %v4793
    %v5532 = vpop.f32.mrf.mxu0
    %v5533 = vadd.f32 %v5148, %v5532
    %v5534 = vpop.f32.mrf.mxu0
    %5535 = vmatprep.mubr.f32.mxu0 0.0
    %5536 = vmatmul.mubr.f32.gmra.mxu0 %v4796
    %v5537 = vpop.f32.mrf.mxu0
    %v5538 = vadd.f32 %v5153, %v5537
    %v5539 = vpop.f32.mrf.mxu0
    %5540 = vmatprep.mubr.f32.mxu0 0.0
    %5541 = vmatmul.mubr.f32.gmra.mxu0 %v4798
    %v5542 = vpop.f32.mrf.mxu0
    %v5543 = vadd.f32 %v5158, %v5542
    %v5544 = vpop.f32.mrf.mxu0
    %5545 = vmatprep.mubr.f32.mxu0 0.0
    %5546 = vmatmul.mubr.f32.gmra.mxu0 %v4801
    %v5547 = vpop.f32.mrf.mxu0
    %v5548 = vadd.f32 %v5163, %v5547
    %v5549 = vpop.f32.mrf.mxu0
    %5550 = vmatprep.mubr.f32.mxu0 0.0
    %5551 = vmatmul.mubr.f32.gmra.mxu0 %v4803
    %v5552 = vpop.f32.mrf.mxu0
    %v5553 = vadd.f32 %v5168, %v5552
    %v5554 = vpop.f32.mrf.mxu0
    %5555 = vmatprep.mubr.f32.mxu0 0.0
    %5556 = vmatmul.mubr.f32.gmra.mxu0 %v4806
    %v5557 = vpop.f32.mrf.mxu0
    %v5558 = vadd.f32 %v5173, %v5557
    %v5559 = vpop.f32.mrf.mxu0
    %5560 = vmatprep.mubr.f32.mxu0 0.0
    %5561 = vmatmul.mubr.f32.gmra.mxu0 %v4808
    %v5562 = vpop.f32.mrf.mxu0
    %v5563 = vadd.f32 %v5178, %v5562
    %v5564 = vpop.f32.mrf.mxu0
    %5565 = vmatprep.mubr.f32.mxu0 0.0
    %5566 = vmatmul.mubr.f32.gmra.mxu0 %v4811
    %v5567 = vpop.f32.mrf.mxu0
    %v5568 = vadd.f32 %v5183, %v5567
    %v5569 = vpop.f32.mrf.mxu0
    %5570 = vmatprep.mubr.f32.mxu0 0.0
    %5571 = vmatmul.mubr.f32.gmra.mxu0 %v4813
    %v5572 = vpop.f32.mrf.mxu0
    %v5573 = vadd.f32 %v5188, %v5572
    %v5574 = vpop.f32.mrf.mxu0
    %5575 = vmatprep.mubr.f32.mxu0 0.0
    %5576 = vmatmul.mubr.f32.gmra.mxu0 %v4816
    %v5577 = vpop.f32.mrf.mxu0
    %v5578 = vadd.f32 %v5193, %v5577
    %v5579 = vpop.f32.mrf.mxu0
    %5580 = vmatprep.mubr.f32.mxu0 0.0
    %5581 = vmatmul.mubr.f32.gmra.mxu0 %v4818
    %v5582 = vpop.f32.mrf.mxu0
    %v5583 = vadd.f32 %v5198, %v5582
    %v5584 = vpop.f32.mrf.mxu0
    %5585 = vmatprep.mubr.f32.mxu0 0.0
    %5586 = vmatmul.mubr.f32.gmra.mxu0 %v4821
    %v5587 = vpop.f32.mrf.mxu0
    %v5588 = vadd.f32 %v5203, %v5587
    %v5589 = vpop.f32.mrf.mxu0
    %5590 = vmatprep.mubr.f32.mxu0 0.0
    %5591 = vmatmul.mubr.f32.gmra.mxu0 %v4823
    %v5592 = vpop.f32.mrf.mxu0
    %v5593 = vadd.f32 %v5208, %v5592
    %v5594 = vpop.f32.mrf.mxu0
    %5595 = vmatprep.mubr.f32.mxu0 0.0
    %5596 = vmatmul.mubr.f32.gmra.mxu0 %v4826
    %v5597 = vpop.f32.mrf.mxu0
    %v5598 = vadd.f32 %v5213, %v5597
    %v5599 = vpop.f32.mrf.mxu0
    %5600 = vmatprep.mubr.f32.mxu0 0.0
    %5601 = vmatmul.mubr.f32.gmra.mxu0 %v4828
    %v5602 = vpop.f32.mrf.mxu0
    %v5603 = vadd.f32 %v5218, %v5602
    %v5604 = vpop.f32.mrf.mxu0
    %5605 = vmatprep.mubr.f32.mxu0 0.0
    %5606 = vmatmul.mubr.f32.gmra.mxu0 %v4831
    %v5607 = vpop.f32.mrf.mxu0
    %v5608 = vadd.f32 %v5223, %v5607
    %v5609 = vpop.f32.mrf.mxu0
    %5610 = vmatprep.mubr.f32.mxu0 0.0
    %5611 = vmatmul.mubr.f32.gmra.mxu0 %v4833
    %v5612 = vpop.f32.mrf.mxu0
    %v5613 = vadd.f32 %v5228, %v5612
    %v5614 = vpop.f32.mrf.mxu0
    %5615 = vmatprep.mubr.f32.mxu0 0.0
    %5616 = vmatmul.mubr.f32.gmra.mxu0 %v4836
    %v5617 = vpop.f32.mrf.mxu0
    %v5618 = vadd.f32 %v5233, %v5617
    %v5619 = vpop.f32.mrf.mxu0
    %5620 = vmatprep.mubr.f32.mxu0 0.0
    %5621 = vmatmul.mubr.f32.gmra.mxu0 %v4838
    %v5622 = vpop.f32.mrf.mxu0
    %v5623 = vadd.f32 %v5238, %v5622
    %v5624 = vpop.f32.mrf.mxu0
    %5625 = vmatprep.mubr.f32.mxu0 0.0
    %5626 = vmatmul.mubr.f32.gmra.mxu0 %v4841
    %v5627 = vpop.f32.mrf.mxu0
    %v5628 = vadd.f32 %v5243, %v5627
    %v5629 = vpop.f32.mrf.mxu0
    %5630 = vmatprep.mubr.f32.mxu0 0.0
    %5631 = vmatmul.mubr.f32.gmra.mxu0 %v4843
    %v5632 = vpop.f32.mrf.mxu0
    %v5633 = vadd.f32 %v5248, %v5632
    %v5634 = vpop.f32.mrf.mxu0
    %5635 = vmatprep.mubr.f32.mxu0 0.0
    %5636 = vmatmul.mubr.f32.gmra.mxu0 %v4846
    %v5637 = vpop.f32.mrf.mxu0
    %v5638 = vadd.f32 %v5253, %v5637
    %v5639 = vpop.f32.mrf.mxu0
    %5640 = vmatprep.mubr.f32.mxu0 0.0
    %5641 = vmatmul.mubr.f32.gmra.mxu0 %v4848
    %v5642 = vpop.f32.mrf.mxu0
    %v5643 = vadd.f32 %v5258, %v5642
    %v5644 = vpop.f32.mrf.mxu0
    %5645 = vmatprep.mubr.f32.mxu0 0.0
    %5646 = vmatmul.mubr.f32.gmra.mxu0 %v4851
    %v5647 = vpop.f32.mrf.mxu0
    %v5648 = vadd.f32 %v5263, %v5647
    %v5649 = vpop.f32.mrf.mxu0
    %5650 = vmatprep.mubr.f32.mxu0 0.0
    %5651 = vmatmul.mubr.f32.gmra.mxu0 %v4853
    %v5652 = vpop.f32.mrf.mxu0
    %v5653 = vadd.f32 %v5268, %v5652
    %v5654 = vpop.f32.mrf.mxu0
    %5655 = vmatprep.mubr.f32.mxu0 0.0
    %5656 = vmatmul.mubr.f32.gmra.mxu0 %v4856
    %v5657 = vpop.f32.mrf.mxu0
    %v5658 = vadd.f32 %v5273, %v5657
    %v5659 = vpop.f32.mrf.mxu0
    %5660 = vmatprep.mubr.f32.mxu0 0.0
    %5661 = vmatmul.mubr.f32.gmra.mxu0 %v4858
    %v5662 = vpop.f32.mrf.mxu0
    %v5663 = vadd.f32 %v5278, %v5662
    %v5664 = vpop.f32.mrf.mxu0
    %5665 = vmatprep.mubr.f32.mxu0 0.0
    %5666 = vmatmul.mubr.f32.gmra.mxu0 %v4861
    %v5667 = vpop.f32.mrf.mxu0
    %v5668 = vadd.f32 %v5283, %v5667
    %v5669 = vpop.f32.mrf.mxu0
    %5670 = vmatprep.mubr.f32.mxu0 0.0
    %5671 = vmatmul.mubr.f32.gmra.mxu0 %v4863
    %v5672 = vpop.f32.mrf.mxu0
    %v5673 = vadd.f32 %v5288, %v5672
    %v5674 = vpop.f32.mrf.mxu0
    %5675 = vmatprep.mubr.f32.mxu0 0.0
    %5676 = vmatmul.mubr.f32.gmra.mxu0 %v4866
    %v5677 = vpop.f32.mrf.mxu0
    %v5678 = vadd.f32 %v5293, %v5677
    %v5679 = vpop.f32.mrf.mxu0
    %5680 = vmatprep.mubr.f32.mxu0 0.0
    %5681 = vmatmul.mubr.f32.gmra.mxu0 %v4868
    %v5682 = vpop.f32.mrf.mxu0
    %v5683 = vadd.f32 %v5298, %v5682
    %v5684 = vpop.f32.mrf.mxu0
    %5685 = vmatprep.mubr.f32.mxu0 0.0
    %5686 = vmatmul.mubr.f32.gmra.mxu0 %v4871
    %v5687 = vpop.f32.mrf.mxu0
    %v5688 = vadd.f32 %v5303, %v5687
    %v5689 = vpop.f32.mrf.mxu0
    %5690 = vmatprep.mubr.f32.mxu0 0.0
    %5691 = vmatmul.mubr.f32.gmra.mxu0 %v4873
    %v5692 = vpop.f32.mrf.mxu0
    %v5693 = vadd.f32 %v5308, %v5692
    %v5694 = vpop.f32.mrf.mxu0
    %5695 = vmatprep.mubr.f32.mxu0 0.0
    %5696 = vmatmul.mubr.f32.gmra.mxu0 %v4876
    %v5697 = vpop.f32.mrf.mxu0
    %v5698 = vadd.f32 %v5313, %v5697
    %v5699 = vpop.f32.mrf.mxu0
    %5700 = vmatprep.mubr.f32.mxu0 0.0
    %5701 = vmatmul.mubr.f32.gmra.mxu0 %v4878
    %v5702 = vpop.f32.mrf.mxu0
    %v5703 = vadd.f32 %v5318, %v5702
    %v5704 = vpop.f32.mrf.mxu0
    %5705 = vmatprep.mubr.f32.mxu0 0.0
    %5706 = vmatmul.mubr.f32.gmra.mxu0 %v4881
    %v5707 = vpop.f32.mrf.mxu0
    %v5708 = vadd.f32 %v5323, %v5707
    %v5709 = vpop.f32.mrf.mxu0
    %5710 = vmatprep.mubr.f32.mxu0 0.0
    %5711 = vmatmul.mubr.f32.gmra.mxu0 %v4883
    %v5712 = vpop.f32.mrf.mxu0
    %v5713 = vadd.f32 %v5328, %v5712
    %v5714 = vpop.f32.mrf.mxu0
    %5715 = vmatprep.mubr.f32.mxu0 0.0
    %5716 = vmatmul.mubr.f32.gmra.mxu0 %v4886
    %v5717 = vpop.f32.mrf.mxu0
    %v5718 = vadd.f32 %v5333, %v5717
    %v5719 = vpop.f32.mrf.mxu0
    %5720 = vmatprep.mubr.f32.mxu0 0.0
    %5721 = vmatmul.mubr.f32.gmra.mxu0 %v4888
    %v5722 = vpop.f32.mrf.mxu0
    %v5723 = vadd.f32 %v5338, %v5722
    %v5724 = vpop.f32.mrf.mxu0
    %5725 = vmatprep.mubr.f32.mxu0 0.0
    %5726 = vmatmul.mubr.f32.gmra.mxu0 %v4891
    %v5727 = vpop.f32.mrf.mxu0
    %v5728 = vadd.f32 %v5343, %v5727
    %v5729 = vpop.f32.mrf.mxu0
    %5730 = vmatprep.mubr.f32.mxu0 0.0
    %5731 = vmatmul.mubr.f32.gmra.mxu0 %v4893
    %v5732 = vpop.f32.mrf.mxu0
    %v5733 = vadd.f32 %v5348, %v5732
    %v5734 = vpop.f32.mrf.mxu0
    %5735 = vmatprep.mubr.f32.mxu0 0.0
    %5736 = vmatmul.mubr.f32.gmra.mxu0 %v4896
    %v5737 = vpop.f32.mrf.mxu0
    %v5738 = vadd.f32 %v5353, %v5737
    %v5739 = vpop.f32.mrf.mxu0
    %5740 = vmatprep.mubr.f32.mxu0 0.0
    %5741 = vmatmul.mubr.f32.gmra.mxu0 %v4898
    %v5742 = vpop.f32.mrf.mxu0
    %v5743 = vadd.f32 %v5358, %v5742
    %v5744 = vpop.f32.mrf.mxu0
    %5745 = vmatprep.mubr.f32.mxu0 0.0
    %5746 = vmatmul.mubr.f32.gmra.mxu0 %v4901
    %v5747 = vpop.f32.mrf.mxu0
    %v5748 = vadd.f32 %v5363, %v5747
    %v5749 = vpop.f32.mrf.mxu0
    %5750 = vmatprep.mubr.f32.mxu0 0.0
    %5751 = vmatmul.mubr.f32.gmra.mxu0 %v4903
    %v5752 = vpop.f32.mrf.mxu0
    %v5753 = vadd.f32 %v5368, %v5752
    %v5754 = vpop.f32.mrf.mxu0
    %5755 = vmatprep.mubr.f32.mxu0 0.0
    %5756 = vmatmul.mubr.f32.gmra.mxu0 %v4906
    %v5757 = vpop.f32.mrf.mxu0
    %v5758 = vadd.f32 %v5373, %v5757
    %v5759 = vpop.f32.mrf.mxu0
    %5760 = vmatprep.mubr.f32.mxu0 0.0
    %5761 = vmatmul.mubr.f32.gmra.mxu0 %v4908
    %v5762 = vpop.f32.mrf.mxu0
    %v5763 = vadd.f32 %v5378, %v5762
    %v5764 = vpop.f32.mrf.mxu0
    %5765 = vmatprep.mubr.f32.mxu0 0.0
    %5766 = vmatmul.mubr.f32.gmra.mxu0 %v4911
    %v5767 = vpop.f32.mrf.mxu0
    %v5768 = vadd.f32 %v5383, %v5767
    %v5769 = vpop.f32.mrf.mxu0
    %5770 = vmatprep.mubr.f32.mxu0 0.0
    %5771 = vmatmul.mubr.f32.gmra.mxu0 %v4913
    %v5772 = vpop.f32.mrf.mxu0
    %v5773 = vadd.f32 %v5388, %v5772
    %v5774 = vpop.f32.mrf.mxu0
    %5775 = vmatprep.mubr.f32.mxu0 0.0
    %5776 = vmatmul.mubr.f32.gmra.mxu0 %v4916
    %v5777 = vpop.f32.mrf.mxu0
    %v5778 = vadd.f32 %v5393, %v5777
    %v5779 = vpop.f32.mrf.mxu0
    %5780 = vmatprep.mubr.f32.mxu0 0.0
    %5781 = vmatmul.mubr.f32.gmra.mxu0 %v4918
    %v5782 = vpop.f32.mrf.mxu0
    %v5783 = vadd.f32 %v5398, %v5782
    %v5784 = vpop.f32.mrf.mxu0
    %5785 = vmatprep.mubr.f32.mxu0 0.0
    %5786 = vmatmul.mubr.f32.gmra.mxu0 %v4921
    %v5787 = vpop.f32.mrf.mxu0
    %v5788 = vadd.f32 %v5403, %v5787
    %v5789 = vpop.f32.mrf.mxu0
    %5790 = vmatprep.mubr.f32.mxu0 0.0
    %5791 = vmatmul.mubr.f32.gmra.mxu0 %v4923
    %v5792 = vpop.f32.mrf.mxu0
    %v5793 = vadd.f32 %v5408, %v5792
    %v5794 = vpop.f32.mrf.mxu0
    %5795 = vmatprep.mubr.f32.mxu0 0.0
    %5796 = vmatmul.mubr.f32.gmra.mxu0 %v4926
    %v5797 = vpop.f32.mrf.mxu0
    %v5798 = vadd.f32 %v5413, %v5797
    %v5799 = vpop.f32.mrf.mxu0
    %5800 = vmatprep.mubr.f32.mxu0 0.0
    %5801 = vmatmul.mubr.f32.gmra.mxu0 %v4928
    %v5802 = vpop.f32.mrf.mxu0
    %v5803 = vadd.f32 %v5418, %v5802
    %v5804 = vpop.f32.mrf.mxu0
    %5805 = vmatprep.mubr.f32.mxu0 0.0
    %5806 = vmatmul.mubr.f32.gmra.mxu0 %v4931
    %v5807 = vpop.f32.mrf.mxu0
    %v5808 = vadd.f32 %v5423, %v5807
    %v5809 = vpop.f32.mrf.mxu0
    %5810 = vmatprep.mubr.f32.mxu0 0.0
    %5811 = vmatmul.mubr.f32.gmra.mxu0 %v4933
    %v5812 = vpop.f32.mrf.mxu0
    %v5813 = vadd.f32 %v5428, %v5812
    %v5814 = vpop.f32.mrf.mxu0
    %5815 = vdwg.mxu0
    %v5816 = vadd.f32 %v4039, %v5498
    %v5817 = vadd.f32 %v4044, %v5503
    %v5818 = vadd.f32 %v4049, %v5508
    %v5819 = vadd.f32 %v4054, %v5513
    %v5820 = vadd.f32 %v4059, %v5518
    %v5821 = vadd.f32 %v4064, %v5523
    %v5822 = vadd.f32 %v4069, %v5528
    %v5823 = vadd.f32 %v4074, %v5533
    %v5824 = vadd.f32 %v4079, %v5538
    %v5825 = vadd.f32 %v4084, %v5543
    %v5826 = vadd.f32 %v4089, %v5548
    %v5827 = vadd.f32 %v4094, %v5553
    %v5828 = vadd.f32 %v4099, %v5558
    %v5829 = vadd.f32 %v4104, %v5563
    %v5830 = vadd.f32 %v4109, %v5568
    %v5831 = vadd.f32 %v4114, %v5573
    %v5832 = vadd.f32 %v4119, %v5578
    %v5833 = vadd.f32 %v4124, %v5583
    %v5834 = vadd.f32 %v4129, %v5588
    %v5835 = vadd.f32 %v4134, %v5593
    %v5836 = vadd.f32 %v4139, %v5598
    %v5837 = vadd.f32 %v4144, %v5603
    %v5838 = vadd.f32 %v4149, %v5608
    %v5839 = vadd.f32 %v4154, %v5613
    %v5840 = vadd.f32 %v4159, %v5618
    %v5841 = vadd.f32 %v4164, %v5623
    %v5842 = vadd.f32 %v4169, %v5628
    %v5843 = vadd.f32 %v4174, %v5633
    %v5844 = vadd.f32 %v4179, %v5638
    %v5845 = vadd.f32 %v4184, %v5643
    %v5846 = vadd.f32 %v4189, %v5648
    %v5847 = vadd.f32 %v4194, %v5653
    %v5848 = vadd.f32 %v4199, %v5658
    %v5849 = vadd.f32 %v4204, %v5663
    %v5850 = vadd.f32 %v4209, %v5668
    %v5851 = vadd.f32 %v4214, %v5673
    %v5852 = vadd.f32 %v4219, %v5678
    %v5853 = vadd.f32 %v4224, %v5683
    %v5854 = vadd.f32 %v4229, %v5688
    %v5855 = vadd.f32 %v4234, %v5693
    %v5856 = vadd.f32 %v4239, %v5698
    %v5857 = vadd.f32 %v4244, %v5703
    %v5858 = vadd.f32 %v4249, %v5708
    %v5859 = vadd.f32 %v4254, %v5713
    %v5860 = vadd.f32 %v4259, %v5718
    %v5861 = vadd.f32 %v4264, %v5723
    %v5862 = vadd.f32 %v4269, %v5728
    %v5863 = vadd.f32 %v4274, %v5733
    %v5864 = vadd.f32 %v4279, %v5738
    %v5865 = vadd.f32 %v4284, %v5743
    %v5866 = vadd.f32 %v4289, %v5748
    %v5867 = vadd.f32 %v4294, %v5753
    %v5868 = vadd.f32 %v4299, %v5758
    %v5869 = vadd.f32 %v4304, %v5763
    %v5870 = vadd.f32 %v4309, %v5768
    %v5871 = vadd.f32 %v4314, %v5773
    %v5872 = vadd.f32 %v4319, %v5778
    %v5873 = vadd.f32 %v4324, %v5783
    %v5874 = vadd.f32 %v4329, %v5788
    %v5875 = vadd.f32 %v4334, %v5793
    %v5876 = vadd.f32 %v4339, %v5798
    %v5877 = vadd.f32 %v4344, %v5803
    %v5878 = vadd.f32 %v4349, %v5808
    %v5879 = vadd.f32 %v4354, %v5813
    %v5880 = vadd.f32 %v5816, %v5817
    %v5881 = vadd.f32 %v5880, %v5818
    %v5882 = vadd.f32 %v5881, %v5819
    %v5883 = vadd.f32 %v5882, %v5820
    %v5884 = vadd.f32 %v5883, %v5821
    %v5885 = vadd.f32 %v5884, %v5822
    %v5886 = vadd.f32 %v5885, %v5823
    %v5887 = vadd.f32 %v5886, %v5824
    %v5888 = vadd.f32 %v5887, %v5825
    %v5889 = vadd.f32 %v5888, %v5826
    %v5890 = vadd.f32 %v5889, %v5827
    %v5891 = vadd.f32 %v5890, %v5828
    %v5892 = vadd.f32 %v5891, %v5829
    %v5893 = vadd.f32 %v5892, %v5830
    %v5894 = vadd.f32 %v5893, %v5831
    %v5895 = vadd.f32 %v5894, %v5832
    %v5896 = vadd.f32 %v5895, %v5833
    %v5897 = vadd.f32 %v5896, %v5834
    %v5898 = vadd.f32 %v5897, %v5835
    %v5899 = vadd.f32 %v5898, %v5836
    %v5900 = vadd.f32 %v5899, %v5837
    %v5901 = vadd.f32 %v5900, %v5838
    %v5902 = vadd.f32 %v5901, %v5839
    %v5903 = vadd.f32 %v5902, %v5840
    %v5904 = vadd.f32 %v5903, %v5841
    %v5905 = vadd.f32 %v5904, %v5842
    %v5906 = vadd.f32 %v5905, %v5843
    %v5907 = vadd.f32 %v5906, %v5844
    %v5908 = vadd.f32 %v5907, %v5845
    %v5909 = vadd.f32 %v5908, %v5846
    %v5910 = vadd.f32 %v5909, %v5847
    %v5911 = vadd.f32 %v5910, %v5848
    %v5912 = vadd.f32 %v5911, %v5849
    %v5913 = vadd.f32 %v5912, %v5850
    %v5914 = vadd.f32 %v5913, %v5851
    %v5915 = vadd.f32 %v5914, %v5852
    %v5916 = vadd.f32 %v5915, %v5853
    %v5917 = vadd.f32 %v5916, %v5854
    %v5918 = vadd.f32 %v5917, %v5855
    %v5919 = vadd.f32 %v5918, %v5856
    %v5920 = vadd.f32 %v5919, %v5857
    %v5921 = vadd.f32 %v5920, %v5858
    %v5922 = vadd.f32 %v5921, %v5859
    %v5923 = vadd.f32 %v5922, %v5860
    %v5924 = vadd.f32 %v5923, %v5861
    %v5925 = vadd.f32 %v5924, %v5862
    %v5926 = vadd.f32 %v5925, %v5863
    %v5927 = vadd.f32 %v5926, %v5864
    %v5928 = vadd.f32 %v5927, %v5865
    %v5929 = vadd.f32 %v5928, %v5866
    %v5930 = vadd.f32 %v5929, %v5867
    %v5931 = vadd.f32 %v5930, %v5868
    %v5932 = vadd.f32 %v5931, %v5869
    %v5933 = vadd.f32 %v5932, %v5870
    %v5934 = vadd.f32 %v5933, %v5871
    %v5935 = vadd.f32 %v5934, %v5872
    %v5936 = vadd.f32 %v5935, %v5873
    %v5937 = vadd.f32 %v5936, %v5874
    %v5938 = vadd.f32 %v5937, %v5875
    %v5939 = vadd.f32 %v5938, %v5876
    %v5940 = vadd.f32 %v5939, %v5877
    %v5941 = vadd.f32 %v5940, %v5878
    %v5942 = vadd.f32 %v5941, %v5879
    %v5943 = vrot.slane %v5942, 4
    %v5944 = vadd.f32 %v5942, %v5943
    %v5945 = vrot.slane %v5944, 2
    %v5946 = vadd.f32 %v5944, %v5945
    %v5947 = vrot.slane %v5946, 1
    %v5948 = vadd.f32 %v5946, %v5947
    %v5949 = vmul.f32 %v5948, 0.001953125
    %v5950 = vsub.f32 %v5816, %v5949
    %v5951 = vsub.f32 %v5817, %v5949
    %v5952 = vsub.f32 %v5818, %v5949
    %v5953 = vsub.f32 %v5819, %v5949
    %v5954 = vsub.f32 %v5820, %v5949
    %v5955 = vsub.f32 %v5821, %v5949
    %v5956 = vsub.f32 %v5822, %v5949
    %v5957 = vsub.f32 %v5823, %v5949
    %v5958 = vsub.f32 %v5824, %v5949
    %v5959 = vsub.f32 %v5825, %v5949
    %v5960 = vsub.f32 %v5826, %v5949
    %v5961 = vsub.f32 %v5827, %v5949
    %v5962 = vsub.f32 %v5828, %v5949
    %v5963 = vsub.f32 %v5829, %v5949
    %v5964 = vsub.f32 %v5830, %v5949
    %v5965 = vsub.f32 %v5831, %v5949
    %v5966 = vsub.f32 %v5832, %v5949
    %v5967 = vsub.f32 %v5833, %v5949
    %v5968 = vsub.f32 %v5834, %v5949
    %v5969 = vsub.f32 %v5835, %v5949
    %v5970 = vsub.f32 %v5836, %v5949
    %v5971 = vsub.f32 %v5837, %v5949
    %v5972 = vsub.f32 %v5838, %v5949
    %v5973 = vsub.f32 %v5839, %v5949
    %v5974 = vsub.f32 %v5840, %v5949
    %v5975 = vsub.f32 %v5841, %v5949
    %v5976 = vsub.f32 %v5842, %v5949
    %v5977 = vsub.f32 %v5843, %v5949
    %v5978 = vsub.f32 %v5844, %v5949
    %v5979 = vsub.f32 %v5845, %v5949
    %v5980 = vsub.f32 %v5846, %v5949
    %v5981 = vsub.f32 %v5847, %v5949
    %v5982 = vsub.f32 %v5848, %v5949
    %v5983 = vsub.f32 %v5849, %v5949
    %v5984 = vsub.f32 %v5850, %v5949
    %v5985 = vsub.f32 %v5851, %v5949
    %v5986 = vsub.f32 %v5852, %v5949
    %v5987 = vsub.f32 %v5853, %v5949
    %v5988 = vsub.f32 %v5854, %v5949
    %v5989 = vsub.f32 %v5855, %v5949
    %v5990 = vsub.f32 %v5856, %v5949
    %v5991 = vsub.f32 %v5857, %v5949
    %v5992 = vsub.f32 %v5858, %v5949
    %v5993 = vsub.f32 %v5859, %v5949
    %v5994 = vsub.f32 %v5860, %v5949
    %v5995 = vsub.f32 %v5861, %v5949
    %v5996 = vsub.f32 %v5862, %v5949
    %v5997 = vsub.f32 %v5863, %v5949
    %v5998 = vsub.f32 %v5864, %v5949
    %v5999 = vsub.f32 %v5865, %v5949
    %v6000 = vsub.f32 %v5866, %v5949
    %v6001 = vsub.f32 %v5867, %v5949
    %v6002 = vsub.f32 %v5868, %v5949
    %v6003 = vsub.f32 %v5869, %v5949
    %v6004 = vsub.f32 %v5870, %v5949
    %v6005 = vsub.f32 %v5871, %v5949
    %v6006 = vsub.f32 %v5872, %v5949
    %v6007 = vsub.f32 %v5873, %v5949
    %v6008 = vsub.f32 %v5874, %v5949
    %v6009 = vsub.f32 %v5875, %v5949
    %v6010 = vsub.f32 %v5876, %v5949
    %v6011 = vsub.f32 %v5877, %v5949
    %v6012 = vsub.f32 %v5878, %v5949
    %v6013 = vsub.f32 %v5879, %v5949
    %v6014 = vmul.f32 %v5950, %v5950
    %v6015 = vmul.f32 %v5951, %v5951
    %v6016 = vmul.f32 %v5952, %v5952
    %v6017 = vmul.f32 %v5953, %v5953
    %v6018 = vmul.f32 %v5954, %v5954
    %v6019 = vmul.f32 %v5955, %v5955
    %v6020 = vmul.f32 %v5956, %v5956
    %v6021 = vmul.f32 %v5957, %v5957
    %v6022 = vmul.f32 %v5958, %v5958
    %v6023 = vmul.f32 %v5959, %v5959
    %v6024 = vmul.f32 %v5960, %v5960
    %v6025 = vmul.f32 %v5961, %v5961
    %v6026 = vmul.f32 %v5962, %v5962
    %v6027 = vmul.f32 %v5963, %v5963
    %v6028 = vmul.f32 %v5964, %v5964
    %v6029 = vmul.f32 %v5965, %v5965
    %v6030 = vmul.f32 %v5966, %v5966
    %v6031 = vmul.f32 %v5967, %v5967
    %v6032 = vmul.f32 %v5968, %v5968
    %v6033 = vmul.f32 %v5969, %v5969
    %v6034 = vmul.f32 %v5970, %v5970
    %v6035 = vmul.f32 %v5971, %v5971
    %v6036 = vmul.f32 %v5972, %v5972
    %v6037 = vmul.f32 %v5973, %v5973
    %v6038 = vmul.f32 %v5974, %v5974
    %v6039 = vmul.f32 %v5975, %v5975
    %v6040 = vmul.f32 %v5976, %v5976
    %v6041 = vmul.f32 %v5977, %v5977
    %v6042 = vmul.f32 %v5978, %v5978
    %v6043 = vmul.f32 %v5979, %v5979
    %v6044 = vmul.f32 %v5980, %v5980
    %v6045 = vmul.f32 %v5981, %v5981
    %v6046 = vmul.f32 %v5982, %v5982
    %v6047 = vmul.f32 %v5983, %v5983
    %v6048 = vmul.f32 %v5984, %v5984
    %v6049 = vmul.f32 %v5985, %v5985
    %v6050 = vmul.f32 %v5986, %v5986
    %v6051 = vmul.f32 %v5987, %v5987
    %v6052 = vmul.f32 %v5988, %v5988
    %v6053 = vmul.f32 %v5989, %v5989
    %v6054 = vmul.f32 %v5990, %v5990
    %v6055 = vmul.f32 %v5991, %v5991
    %v6056 = vmul.f32 %v5992, %v5992
    %v6057 = vmul.f32 %v5993, %v5993
    %v6058 = vmul.f32 %v5994, %v5994
    %v6059 = vmul.f32 %v5995, %v5995
    %v6060 = vmul.f32 %v5996, %v5996
    %v6061 = vmul.f32 %v5997, %v5997
    %v6062 = vmul.f32 %v5998, %v5998
    %v6063 = vmul.f32 %v5999, %v5999
    %v6064 = vmul.f32 %v6000, %v6000
    %v6065 = vmul.f32 %v6001, %v6001
    %v6066 = vmul.f32 %v6002, %v6002
    %v6067 = vmul.f32 %v6003, %v6003
    %v6068 = vmul.f32 %v6004, %v6004
    %v6069 = vmul.f32 %v6005, %v6005
    %v6070 = vmul.f32 %v6006, %v6006
    %v6071 = vmul.f32 %v6007, %v6007
    %v6072 = vmul.f32 %v6008, %v6008
    %v6073 = vmul.f32 %v6009, %v6009
    %v6074 = vmul.f32 %v6010, %v6010
    %v6075 = vmul.f32 %v6011, %v6011
    %v6076 = vmul.f32 %v6012, %v6012
    %v6077 = vmul.f32 %v6013, %v6013
    %v6078 = vadd.f32 %v6014, %v6015
    %v6079 = vadd.f32 %v6078, %v6016
    %v6080 = vadd.f32 %v6079, %v6017
    %v6081 = vadd.f32 %v6080, %v6018
    %v6082 = vadd.f32 %v6081, %v6019
    %v6083 = vadd.f32 %v6082, %v6020
    %v6084 = vadd.f32 %v6083, %v6021
    %v6085 = vadd.f32 %v6084, %v6022
    %v6086 = vadd.f32 %v6085, %v6023
    %v6087 = vadd.f32 %v6086, %v6024
    %v6088 = vadd.f32 %v6087, %v6025
    %v6089 = vadd.f32 %v6088, %v6026
    %v6090 = vadd.f32 %v6089, %v6027
    %v6091 = vadd.f32 %v6090, %v6028
    %v6092 = vadd.f32 %v6091, %v6029
    %v6093 = vadd.f32 %v6092, %v6030
    %v6094 = vadd.f32 %v6093, %v6031
    %v6095 = vadd.f32 %v6094, %v6032
    %v6096 = vadd.f32 %v6095, %v6033
    %v6097 = vadd.f32 %v6096, %v6034
    %v6098 = vadd.f32 %v6097, %v6035
    %v6099 = vadd.f32 %v6098, %v6036
    %v6100 = vadd.f32 %v6099, %v6037
    %v6101 = vadd.f32 %v6100, %v6038
    %v6102 = vadd.f32 %v6101, %v6039
    %v6103 = vadd.f32 %v6102, %v6040
    %v6104 = vadd.f32 %v6103, %v6041
    %v6105 = vadd.f32 %v6104, %v6042
    %v6106 = vadd.f32 %v6105, %v6043
    %v6107 = vadd.f32 %v6106, %v6044
    %v6108 = vadd.f32 %v6107, %v6045
    %v6109 = vadd.f32 %v6108, %v6046
    %v6110 = vadd.f32 %v6109, %v6047
    %v6111 = vadd.f32 %v6110, %v6048
    %v6112 = vadd.f32 %v6111, %v6049
    %v6113 = vadd.f32 %v6112, %v6050
    %v6114 = vadd.f32 %v6113, %v6051
    %v6115 = vadd.f32 %v6114, %v6052
    %v6116 = vadd.f32 %v6115, %v6053
    %v6117 = vadd.f32 %v6116, %v6054
    %v6118 = vadd.f32 %v6117, %v6055
    %v6119 = vadd.f32 %v6118, %v6056
    %v6120 = vadd.f32 %v6119, %v6057
    %v6121 = vadd.f32 %v6120, %v6058
    %v6122 = vadd.f32 %v6121, %v6059
    %v6123 = vadd.f32 %v6122, %v6060
    %v6124 = vadd.f32 %v6123, %v6061
    %v6125 = vadd.f32 %v6124, %v6062
    %v6126 = vadd.f32 %v6125, %v6063
    %v6127 = vadd.f32 %v6126, %v6064
    %v6128 = vadd.f32 %v6127, %v6065
    %v6129 = vadd.f32 %v6128, %v6066
    %v6130 = vadd.f32 %v6129, %v6067
    %v6131 = vadd.f32 %v6130, %v6068
    %v6132 = vadd.f32 %v6131, %v6069
    %v6133 = vadd.f32 %v6132, %v6070
    %v6134 = vadd.f32 %v6133, %v6071
    %v6135 = vadd.f32 %v6134, %v6072
    %v6136 = vadd.f32 %v6135, %v6073
    %v6137 = vadd.f32 %v6136, %v6074
    %v6138 = vadd.f32 %v6137, %v6075
    %v6139 = vadd.f32 %v6138, %v6076
    %v6140 = vadd.f32 %v6139, %v6077
    %v6141 = vrot.slane %v6140, 4
    %v6142 = vadd.f32 %v6140, %v6141
    %v6143 = vrot.slane %v6142, 2
    %v6144 = vadd.f32 %v6142, %v6143
    %v6145 = vrot.slane %v6144, 1
    %v6146 = vadd.f32 %v6144, %v6145
    %v6147 = vmul.f32 %v6146, 0.001953125
    %v6148 = vadd.f32 %v6147, 1e-05
    %v6149 = vrsqrt.pop %v6148
    %v6150 = vld [vmem:[%s5] sm:$0x1]
    %v6151 = vmul.f32 %v6149, %v6150
    %v6152 = vlaneseq
    %v6153 = vshrl.u32 %v6152, 7
    %v6154 = vsub.s32 0, %v6153
    %v6155 = vrot.slane %v6151, %v6154
    %v6156 = vmul.f32 %v5950, %v6155
    %v6157 = vmul.f32 %v5951, %v6155
    %v6158 = vmul.f32 %v5952, %v6155
    %v6159 = vmul.f32 %v5953, %v6155
    %v6160 = vmul.f32 %v5954, %v6155
    %v6161 = vmul.f32 %v5955, %v6155
    %v6162 = vmul.f32 %v5956, %v6155
    %v6163 = vmul.f32 %v5957, %v6155
    %v6164 = vmul.f32 %v5958, %v6155
    %v6165 = vmul.f32 %v5959, %v6155
    %v6166 = vmul.f32 %v5960, %v6155
    %v6167 = vmul.f32 %v5961, %v6155
    %v6168 = vmul.f32 %v5962, %v6155
    %v6169 = vmul.f32 %v5963, %v6155
    %v6170 = vmul.f32 %v5964, %v6155
    %v6171 = vmul.f32 %v5965, %v6155
    %v6172 = vmul.f32 %v5966, %v6155
    %v6173 = vmul.f32 %v5967, %v6155
    %v6174 = vmul.f32 %v5968, %v6155
    %v6175 = vmul.f32 %v5969, %v6155
    %v6176 = vmul.f32 %v5970, %v6155
    %v6177 = vmul.f32 %v5971, %v6155
    %v6178 = vmul.f32 %v5972, %v6155
    %v6179 = vmul.f32 %v5973, %v6155
    %v6180 = vmul.f32 %v5974, %v6155
    %v6181 = vmul.f32 %v5975, %v6155
    %v6182 = vmul.f32 %v5976, %v6155
    %v6183 = vmul.f32 %v5977, %v6155
    %v6184 = vmul.f32 %v5978, %v6155
    %v6185 = vmul.f32 %v5979, %v6155
    %v6186 = vmul.f32 %v5980, %v6155
    %v6187 = vmul.f32 %v5981, %v6155
    %v6188 = vmul.f32 %v5982, %v6155
    %v6189 = vmul.f32 %v5983, %v6155
    %v6190 = vmul.f32 %v5984, %v6155
    %v6191 = vmul.f32 %v5985, %v6155
    %v6192 = vmul.f32 %v5986, %v6155
    %v6193 = vmul.f32 %v5987, %v6155
    %v6194 = vmul.f32 %v5988, %v6155
    %v6195 = vmul.f32 %v5989, %v6155
    %v6196 = vmul.f32 %v5990, %v6155
    %v6197 = vmul.f32 %v5991, %v6155
    %v6198 = vmul.f32 %v5992, %v6155
    %v6199 = vmul.f32 %v5993, %v6155
    %v6200 = vmul.f32 %v5994, %v6155
    %v6201 = vmul.f32 %v5995, %v6155
    %v6202 = vmul.f32 %v5996, %v6155
    %v6203 = vmul.f32 %v5997, %v6155
    %v6204 = vmul.f32 %v5998, %v6155
    %v6205 = vmul.f32 %v5999, %v6155
    %v6206 = vmul.f32 %v6000, %v6155
    %v6207 = vmul.f32 %v6001, %v6155
    %v6208 = vmul.f32 %v6002, %v6155
    %v6209 = vmul.f32 %v6003, %v6155
    %v6210 = vmul.f32 %v6004, %v6155
    %v6211 = vmul.f32 %v6005, %v6155
    %v6212 = vmul.f32 %v6006, %v6155
    %v6213 = vmul.f32 %v6007, %v6155
    %v6214 = vmul.f32 %v6008, %v6155
    %v6215 = vmul.f32 %v6009, %v6155
    %v6216 = vmul.f32 %v6010, %v6155
    %v6217 = vmul.f32 %v6011, %v6155
    %v6218 = vmul.f32 %v6012, %v6155
    %v6219 = vmul.f32 %v6013, %v6155
    %v6220 = vld [vmem:[%s6] sm:$0x1]
    %v6222 = vlaneseq
    %v6223 = vshrl.u32 %v6222, 7
    %v6224 = vsub.s32 0, %v6223
    %v6225 = vrot.slane %v6220, %v6224
    %v6227 = vadd.f32 %v6156, %v6225
    %v6228 = vadd.f32 %v6157, %v6225
    %v6229 = vadd.f32 %v6158, %v6225
    %v6230 = vadd.f32 %v6159, %v6225
    %v6231 = vadd.f32 %v6160, %v6225
    %v6232 = vadd.f32 %v6161, %v6225
    %v6233 = vadd.f32 %v6162, %v6225
    %v6234 = vadd.f32 %v6163, %v6225
    %v6235 = vadd.f32 %v6164, %v6225
    %v6236 = vadd.f32 %v6165, %v6225
    %v6237 = vadd.f32 %v6166, %v6225
    %v6238 = vadd.f32 %v6167, %v6225
    %v6239 = vadd.f32 %v6168, %v6225
    %v6240 = vadd.f32 %v6169, %v6225
    %v6241 = vadd.f32 %v6170, %v6225
    %v6242 = vadd.f32 %v6171, %v6225
    %v6243 = vadd.f32 %v6172, %v6225
    %v6244 = vadd.f32 %v6173, %v6225
    %v6245 = vadd.f32 %v6174, %v6225
    %v6246 = vadd.f32 %v6175, %v6225
    %v6247 = vadd.f32 %v6176, %v6225
    %v6248 = vadd.f32 %v6177, %v6225
    %v6249 = vadd.f32 %v6178, %v6225
    %v6250 = vadd.f32 %v6179, %v6225
    %v6251 = vadd.f32 %v6180, %v6225
    %v6252 = vadd.f32 %v6181, %v6225
    %v6253 = vadd.f32 %v6182, %v6225
    %v6254 = vadd.f32 %v6183, %v6225
    %v6255 = vadd.f32 %v6184, %v6225
    %v6256 = vadd.f32 %v6185, %v6225
    %v6257 = vadd.f32 %v6186, %v6225
    %v6258 = vadd.f32 %v6187, %v6225
    %v6259 = vadd.f32 %v6188, %v6225
    %v6260 = vadd.f32 %v6189, %v6225
    %v6261 = vadd.f32 %v6190, %v6225
    %v6262 = vadd.f32 %v6191, %v6225
    %v6263 = vadd.f32 %v6192, %v6225
    %v6264 = vadd.f32 %v6193, %v6225
    %v6265 = vadd.f32 %v6194, %v6225
    %v6266 = vadd.f32 %v6195, %v6225
    %v6267 = vadd.f32 %v6196, %v6225
    %v6268 = vadd.f32 %v6197, %v6225
    %v6269 = vadd.f32 %v6198, %v6225
    %v6270 = vadd.f32 %v6199, %v6225
    %v6271 = vadd.f32 %v6200, %v6225
    %v6272 = vadd.f32 %v6201, %v6225
    %v6273 = vadd.f32 %v6202, %v6225
    %v6274 = vadd.f32 %v6203, %v6225
    %v6275 = vadd.f32 %v6204, %v6225
    %v6276 = vadd.f32 %v6205, %v6225
    %v6277 = vadd.f32 %v6206, %v6225
    %v6278 = vadd.f32 %v6207, %v6225
    %v6279 = vadd.f32 %v6208, %v6225
    %v6280 = vadd.f32 %v6209, %v6225
    %v6281 = vadd.f32 %v6210, %v6225
    %v6282 = vadd.f32 %v6211, %v6225
    %v6283 = vadd.f32 %v6212, %v6225
    %v6284 = vadd.f32 %v6213, %v6225
    %v6285 = vadd.f32 %v6214, %v6225
    %v6286 = vadd.f32 %v6215, %v6225
    %v6287 = vadd.f32 %v6216, %v6225
    %v6288 = vadd.f32 %v6217, %v6225
    %v6289 = vadd.f32 %v6218, %v6225
    %v6290 = vadd.f32 %v6219, %v6225
    %v6291 = vmax.f32 %v6227, 0.0
    %v6292 = vmax.f32 %v6228, 0.0
    %v6293 = vmax.f32 %v6229, 0.0
    %v6294 = vmax.f32 %v6230, 0.0
    %v6295 = vmax.f32 %v6231, 0.0
    %v6296 = vmax.f32 %v6232, 0.0
    %v6297 = vmax.f32 %v6233, 0.0
    %v6298 = vmax.f32 %v6234, 0.0
    %v6299 = vmax.f32 %v6235, 0.0
    %v6300 = vmax.f32 %v6236, 0.0
    %v6301 = vmax.f32 %v6237, 0.0
    %v6302 = vmax.f32 %v6238, 0.0
    %v6303 = vmax.f32 %v6239, 0.0
    %v6304 = vmax.f32 %v6240, 0.0
    %v6305 = vmax.f32 %v6241, 0.0
    %v6306 = vmax.f32 %v6242, 0.0
    %v6307 = vmax.f32 %v6243, 0.0
    %v6308 = vmax.f32 %v6244, 0.0
    %v6309 = vmax.f32 %v6245, 0.0
    %v6310 = vmax.f32 %v6246, 0.0
    %v6311 = vmax.f32 %v6247, 0.0
    %v6312 = vmax.f32 %v6248, 0.0
    %v6313 = vmax.f32 %v6249, 0.0
    %v6314 = vmax.f32 %v6250, 0.0
    %v6315 = vmax.f32 %v6251, 0.0
    %v6316 = vmax.f32 %v6252, 0.0
    %v6317 = vmax.f32 %v6253, 0.0
    %v6318 = vmax.f32 %v6254, 0.0
    %v6319 = vmax.f32 %v6255, 0.0
    %v6320 = vmax.f32 %v6256, 0.0
    %v6321 = vmax.f32 %v6257, 0.0
    %v6322 = vmax.f32 %v6258, 0.0
    %v6323 = vmax.f32 %v6259, 0.0
    %v6324 = vmax.f32 %v6260, 0.0
    %v6325 = vmax.f32 %v6261, 0.0
    %v6326 = vmax.f32 %v6262, 0.0
    %v6327 = vmax.f32 %v6263, 0.0
    %v6328 = vmax.f32 %v6264, 0.0
    %v6329 = vmax.f32 %v6265, 0.0
    %v6330 = vmax.f32 %v6266, 0.0
    %v6331 = vmax.f32 %v6267, 0.0
    %v6332 = vmax.f32 %v6268, 0.0
    %v6333 = vmax.f32 %v6269, 0.0
    %v6334 = vmax.f32 %v6270, 0.0
    %v6335 = vmax.f32 %v6271, 0.0
    %v6336 = vmax.f32 %v6272, 0.0
    %v6337 = vmax.f32 %v6273, 0.0
    %v6338 = vmax.f32 %v6274, 0.0
    %v6339 = vmax.f32 %v6275, 0.0
    %v6340 = vmax.f32 %v6276, 0.0
    %v6341 = vmax.f32 %v6277, 0.0
    %v6342 = vmax.f32 %v6278, 0.0
    %v6343 = vmax.f32 %v6279, 0.0
    %v6344 = vmax.f32 %v6280, 0.0
    %v6345 = vmax.f32 %v6281, 0.0
    %v6346 = vmax.f32 %v6282, 0.0
    %v6347 = vmax.f32 %v6283, 0.0
    %v6348 = vmax.f32 %v6284, 0.0
    %v6349 = vmax.f32 %v6285, 0.0
    %v6350 = vmax.f32 %v6286, 0.0
    %v6351 = vmax.f32 %v6287, 0.0
    %v6352 = vmax.f32 %v6288, 0.0
    %v6353 = vmax.f32 %v6289, 0.0
    %v6354 = vmax.f32 %v6290, 0.0
    %6355 = vst [vmem:[#allocation9] sm:$0xff] %v6291
    %6356 = vst [vmem:[#allocation9 + $0x8] sm:$0xff] %v6292
    %6357 = vst [vmem:[#allocation9 + $0x10] sm:$0xff] %v6293
    %6358 = vst [vmem:[#allocation9 + $0x18] sm:$0xff] %v6294
    %6359 = vst [vmem:[#allocation9 + $0x20] sm:$0xff] %v6295
    %6360 = vst [vmem:[#allocation9 + $0x28] sm:$0xff] %v6296
    %6361 = vst [vmem:[#allocation9 + $0x30] sm:$0xff] %v6297
    %6362 = vst [vmem:[#allocation9 + $0x38] sm:$0xff] %v6298
    %6363 = vst [vmem:[#allocation9 + $0x40] sm:$0xff] %v6299
    %6364 = vst [vmem:[#allocation9 + $0x48] sm:$0xff] %v6300
    %6365 = vst [vmem:[#allocation9 + $0x50] sm:$0xff] %v6301
    %6366 = vst [vmem:[#allocation9 + $0x58] sm:$0xff] %v6302
    %6367 = vst [vmem:[#allocation9 + $0x60] sm:$0xff] %v6303
    %6368 = vst [vmem:[#allocation9 + $0x68] sm:$0xff] %v6304
    %6369 = vst [vmem:[#allocation9 + $0x70] sm:$0xff] %v6305
    %6370 = vst [vmem:[#allocation9 + $0x78] sm:$0xff] %v6306
    %6371 = vst [vmem:[#allocation9 + $0x80] sm:$0xff] %v6307
    %6372 = vst [vmem:[#allocation9 + $0x88] sm:$0xff] %v6308
    %6373 = vst [vmem:[#allocation9 + $0x90] sm:$0xff] %v6309
    %6374 = vst [vmem:[#allocation9 + $0x98] sm:$0xff] %v6310
    %6375 = vst [vmem:[#allocation9 + $0xa0] sm:$0xff] %v6311
    %6376 = vst [vmem:[#allocation9 + $0xa8] sm:$0xff] %v6312
    %6377 = vst [vmem:[#allocation9 + $0xb0] sm:$0xff] %v6313
    %6378 = vst [vmem:[#allocation9 + $0xb8] sm:$0xff] %v6314
    %6379 = vst [vmem:[#allocation9 + $0xc0] sm:$0xff] %v6315
    %6380 = vst [vmem:[#allocation9 + $0xc8] sm:$0xff] %v6316
    %6381 = vst [vmem:[#allocation9 + $0xd0] sm:$0xff] %v6317
    %6382 = vst [vmem:[#allocation9 + $0xd8] sm:$0xff] %v6318
    %6383 = vst [vmem:[#allocation9 + $0xe0] sm:$0xff] %v6319
    %6384 = vst [vmem:[#allocation9 + $0xe8] sm:$0xff] %v6320
    %6385 = vst [vmem:[#allocation9 + $0xf0] sm:$0xff] %v6321
    %6386 = vst [vmem:[#allocation9 + $0xf8] sm:$0xff] %v6322
    %6387 = vst [vmem:[#allocation9 + $0x100] sm:$0xff] %v6323
    %6388 = vst [vmem:[#allocation9 + $0x108] sm:$0xff] %v6324
    %6389 = vst [vmem:[#allocation9 + $0x110] sm:$0xff] %v6325
    %6390 = vst [vmem:[#allocation9 + $0x118] sm:$0xff] %v6326
    %6391 = vst [vmem:[#allocation9 + $0x120] sm:$0xff] %v6327
    %6392 = vst [vmem:[#allocation9 + $0x128] sm:$0xff] %v6328
    %6393 = vst [vmem:[#allocation9 + $0x130] sm:$0xff] %v6329
    %6394 = vst [vmem:[#allocation9 + $0x138] sm:$0xff] %v6330
    %6395 = vst [vmem:[#allocation9 + $0x140] sm:$0xff] %v6331
    %6396 = vst [vmem:[#allocation9 + $0x148] sm:$0xff] %v6332
    %6397 = vst [vmem:[#allocation9 + $0x150] sm:$0xff] %v6333
    %6398 = vst [vmem:[#allocation9 + $0x158] sm:$0xff] %v6334
    %6399 = vst [vmem:[#allocation9 + $0x160] sm:$0xff] %v6335
    %6400 = vst [vmem:[#allocation9 + $0x168] sm:$0xff] %v6336
    %6401 = vst [vmem:[#allocation9 + $0x170] sm:$0xff] %v6337
    %6402 = vst [vmem:[#allocation9 + $0x178] sm:$0xff] %v6338
    %6403 = vst [vmem:[#allocation9 + $0x180] sm:$0xff] %v6339
    %6404 = vst [vmem:[#allocation9 + $0x188] sm:$0xff] %v6340
    %6405 = vst [vmem:[#allocation9 + $0x190] sm:$0xff] %v6341
    %6406 = vst [vmem:[#allocation9 + $0x198] sm:$0xff] %v6342
    %6407 = vst [vmem:[#allocation9 + $0x1a0] sm:$0xff] %v6343
    %6408 = vst [vmem:[#allocation9 + $0x1a8] sm:$0xff] %v6344
    %6409 = vst [vmem:[#allocation9 + $0x1b0] sm:$0xff] %v6345
    %6410 = vst [vmem:[#allocation9 + $0x1b8] sm:$0xff] %v6346
    %6411 = vst [vmem:[#allocation9 + $0x1c0] sm:$0xff] %v6347
    %6412 = vst [vmem:[#allocation9 + $0x1c8] sm:$0xff] %v6348
    %6413 = vst [vmem:[#allocation9 + $0x1d0] sm:$0xff] %v6349
    %6414 = vst [vmem:[#allocation9 + $0x1d8] sm:$0xff] %v6350
    %6415 = vst [vmem:[#allocation9 + $0x1e0] sm:$0xff] %v6351
    %6416 = vst [vmem:[#allocation9 + $0x1e8] sm:$0xff] %v6352
    %6417 = vst [vmem:[#allocation9 + $0x1f0] sm:$0xff] %v6353
    %6418 = vst [vmem:[#allocation9 + $0x1f8] sm:$0xff] %v6354
    // Predicated region
    $region42: #{tpu_custom_call.1} parent=1 // pred_check
      _
    $region43: #{tpu_custom_call.1} parent=1 // pred_check_branch
      %6420 = sbr.rel (0) target = $region45
    $region44: #{tpu_custom_call.1} parent=1 // pred_region
      %s6422 = ssub.s32 8192, 8192
      %6423 = vsyncadd [#allocation5], %s6422
      %s6424 = sshll.u32 [#allocation9], 4
      %s6425 = int_to_ptr.vmem [resolvable:$true] %s6424
      %6430 = dma.vmem_to_hbm [thread:$0]  %s6425, 8192, %s7, [#allocation5], 128, 128, 8
    $region45: #{tpu_custom_call.1} parent=1 // pred_fallthru
      _
    // Predicated region
    $region46: #{tpu_custom_call.1} parent=1 // pred_check
      _
    $region47: #{tpu_custom_call.1} parent=1 // pred_check_branch
      %6432 = sbr.rel (0) target = $region49
    $region48: #{tpu_custom_call.1} parent=1 // pred_region
      %6433 = dma.done [#allocation5], 8192
    $region49: #{tpu_custom_call.1} parent=1 // pred_fallthru
      _
    %6434 = vsyncpa [#allocation4], 1
    %6435 = vsyncpa [#allocation7], 1
    %6436 = vsyncpa [#allocation5], 1

</llo_original>
